<compile_context>
chip_gen: v6e
topology: v6e:2x2x1
jax: 0.10.0
libtpu: 0.0.40
codegen_flags: <defaults>
</compile_context>

<pallas_src>
import functools

import jax
import jax.numpy as jnp
import numpy as np
from jax.experimental import pallas as pl
from jax.experimental.pallas import tpu as pltpu

BN_EPS = 1e-5


def _round_up(x, m):
    return (x + m - 1) // m * m


def _pad_axis(x, axis, target):
    pad = target - x.shape[axis]
    if pad <= 0:
        return x
    widths = [(0, 0)] * x.ndim
    widths[axis] = (0, pad)
    return jnp.pad(x, widths)


# --------------------------------------------------------------------------------------
# Fused kernel: conv_kernel + conv_search (as im2col matmuls) -> depthwise xcorr -> 1x1 head.
# One grid step per batch element; all intermediates live in VMEM.
# --------------------------------------------------------------------------------------
def _fused_forward_kernel(kpat_ref, spat_ref, wkm_ref, wsm_ref, whm_ref,
                          shk_ref, shs_ref, shh_ref,
                          o_ref, sf_ref, kf_ref,
                          *, kh, kw, sw, acc_rows):
    cp = o_ref.shape[-1]

    # conv_kernel branch: (khw_pad, KP) @ (KP, CP) + shift, ReLU  -> kf (VMEM resident)
    kf = jnp.dot(kpat_ref[0], wkm_ref[...], preferred_element_type=jnp.float32)
    kf_ref[...] = jnp.maximum(kf + shk_ref[...], 0.0)

    # conv_search branch: (r_pad, KP) @ (KP, CP) + shift, ReLU    -> sf (VMEM resident)
    sf = jnp.dot(spat_ref[0], wsm_ref[...], preferred_element_type=jnp.float32)
    sf_ref[...] = jnp.maximum(sf + shs_ref[...], 0.0)

    # depthwise cross-correlation, flat-row trick:
    #   feat[i, j, c] = sum_{u,v} sf2d[i+u, j+v, c] * kf2d[u, v, c]
    # with sf flattened row-major (row = h*sw + w):
    #   (i+u)*sw + (j+v) = (i*sw + j) + (u*sw + v)
    # so each tap is one contiguous row-offset slice of the flat sf slab.  Accumulator
    # rows index q = i*sw + j; columns j >= ow (and rows >= oh*sw) are garbage and are
    # cropped in the wrapper.
    acc = jnp.zeros((acc_rows, cp), jnp.float32)
    for u in range(kh):
        for v in range(kw):
            off = u * sw + v                      # row offset into the flat sf slab
            t = u * kw + v                        # row index into the flat kf slab
            tap = sf_ref[pl.ds(off, acc_rows), :]             # (acc_rows, CP), lane-dense
            acc = acc + tap * kf_ref[pl.ds(t, 1), :]          # broadcast over rows

    # head: 1x1 conv + folded BN + ReLU, directly on the dense accumulator.
    y = jnp.dot(acc.astype(whm_ref.dtype), whm_ref[...],
                preferred_element_type=jnp.float32)
    o_ref[0] = jnp.maximum(y + shh_ref[...], 0.0).astype(o_ref.dtype)


# --------------------------------------------------------------------------------------
# Wrapper glue (plain JAX): layout, im2col, BN folding, padding to lane-dense shapes.
# --------------------------------------------------------------------------------------
def _im2col3x3(x_nhwc):
    B, H, W, C = x_nhwc.shape
    Ho, Wo = H - 2, W - 2
    cols = [x_nhwc[:, a:a + Ho, b:b + Wo, :] for a in range(3) for b in range(3)]
    p = jnp.stack(cols, axis=3)                   # (B, Ho, Wo, 9, C)
    return p.reshape(B, Ho * Wo, 9 * C), (Ho, Wo)


def _bn_fold(bn):
    gamma, beta, mean, var = bn
    scale = gamma / jnp.sqrt(var + BN_EPS)
    shift = beta - mean * scale
    return scale, shift


def _conv3x3_weight_to_mat(w_oihw):
    # torch Conv2d weight (O, I, 3, 3) -> (9*I, O), matching im2col feature order.
    out_c = w_oihw.shape[0]
    return jnp.transpose(w_oihw, (2, 3, 1, 0)).reshape(-1, out_c)


def latent_dw_xcorr_cls_forward(kernel_nchw, search_nchw, params, *,
                                mxu_dtype=jnp.float32):
    B, Cin, _, _ = kernel_nchw.shape
    hidden = params["conv_kernel_w"].shape[0]

    k_nhwc = jnp.transpose(kernel_nchw, (0, 2, 3, 1))
    s_nhwc = jnp.transpose(search_nchw, (0, 2, 3, 1))

    kpat, (kh, kw) = _im2col3x3(k_nhwc)           # (B, kh*kw, 9*Cin)
    spat, (sh, sw) = _im2col3x3(s_nhwc)           # (B, sh*sw, 9*Cin)

    K = 9 * Cin
    KP = _round_up(K, 128)                        # lane-aligned contraction dim
    CP = _round_up(hidden, 128)                   # lane-dense (padded) channel dim

    oh, ow = sh - kh + 1, sw - kw + 1
    acc_rows = _round_up(oh * sw, 8)              # dense xcorr/head row count
    khw_pad = _round_up(kh * kw, 8)
    max_off = (kh - 1) * sw + (kw - 1)
    r_pad = _round_up(max_off + acc_rows, 8)      # flat sf slab rows (>= sh*sw)

    kpat = _pad_axis(_pad_axis(kpat, 1, khw_pad), 2, KP).astype(mxu_dtype)
    spat = _pad_axis(_pad_axis(spat, 1, r_pad), 2, KP).astype(mxu_dtype)

    # Fold BN scale into the weights; keep shifts separate (added in-kernel before ReLU).
    sc_k, shf_k = _bn_fold(params["bn_kernel"])
    sc_s, shf_s = _bn_fold(params["bn_search"])
    sc_h, shf_h = _bn_fold(params["bn_head"])

    wk_mat = _conv3x3_weight_to_mat(params["conv_kernel_w"]) * sc_k[None, :]
    ws_mat = _conv3x3_weight_to_mat(params["conv_search_w"]) * sc_s[None, :]
    wh_mat = params["head_w"][:, :, 0, 0].T * sc_h[None, :]

    wk_mat = _pad_axis(_pad_axis(wk_mat, 0, KP), 1, CP).astype(mxu_dtype)
    ws_mat = _pad_axis(_pad_axis(ws_mat, 0, KP), 1, CP).astype(mxu_dtype)
    wh_mat = _pad_axis(_pad_axis(wh_mat, 0, CP), 1, CP).astype(mxu_dtype)

    sh_k = _pad_axis(shf_k[None, :], 1, CP).astype(jnp.float32)
    sh_s = _pad_axis(shf_s[None, :], 1, CP).astype(jnp.float32)
    sh_h = _pad_axis(shf_h[None, :], 1, CP).astype(jnp.float32)

    kern = functools.partial(_fused_forward_kernel,
                             kh=kh, kw=kw, sw=sw, acc_rows=acc_rows)

    out = pl.pallas_call(
        kern,
        out_shape=jax.ShapeDtypeStruct((B, acc_rows, CP), jnp.float32),
        grid_spec=pltpu.PrefetchScalarGridSpec(
            num_scalar_prefetch=0,
            grid=(B,),
            in_specs=[
                pl.BlockSpec((1, khw_pad, KP), lambda b: (b, 0, 0)),   # kernel patches
                pl.BlockSpec((1, r_pad, KP), lambda b: (b, 0, 0)),     # search patches
                pl.BlockSpec((KP, CP), lambda b: (0, 0)),              # conv_kernel weight
                pl.BlockSpec((KP, CP), lambda b: (0, 0)),              # conv_search weight
                pl.BlockSpec((CP, CP), lambda b: (0, 0)),              # head weight
                pl.BlockSpec((1, CP), lambda b: (0, 0)),               # shift (kernel BN)
                pl.BlockSpec((1, CP), lambda b: (0, 0)),               # shift (search BN)
                pl.BlockSpec((1, CP), lambda b: (0, 0)),               # shift (head BN)
            ],
            out_specs=pl.BlockSpec((1, acc_rows, CP), lambda b: (b, 0, 0)),
            scratch_shapes=[
                pltpu.VMEM((r_pad, CP), jnp.float32),     # sf: search features (flat)
                pltpu.VMEM((khw_pad, CP), jnp.float32),   # kf: template features (flat)
            ],
        ),
        compiler_params=pltpu.CompilerParams(
            dimension_semantics=("arbitrary",)),
    )(kpat, spat, wk_mat, ws_mat, wh_mat, sh_k, sh_s, sh_h)

    # Crop the flat-trick garbage columns / rows and the padded channels; back to NCHW.
    out = out[:, :oh * sw, :].reshape(B, oh, sw, CP)[:, :, :ow, :hidden]
    return jnp.transpose(out, (0, 3, 1, 2))


# --------------------------------------------------------------------------------------
# Pure-JAX reference (for correctness check).
# --------------------------------------------------------------------------------------
def ref_forward(kernel_nchw, search_nchw, params):
    def conv_bn_relu(x, w, bn):
        y = jax.lax.conv_general_dilated(
            x, w, window_strides=(1, 1), padding="VALID",
            dimension_numbers=("NCHW", "OIHW", "NCHW"))
        g, b, m, v = bn
        scale = g / jnp.sqrt(v + BN_EPS)
        shift = b - m * scale
        y = y * scale[None, :, None, None] + shift[None, :, None, None]
        return jnp.maximum(y, 0.0)

    kf = conv_bn_relu(kernel_nchw, params["conv_kernel_w"], params["bn_kernel"])
    sf = conv_bn_relu(search_nchw, params["conv_search_w"], params["bn_search"])

    B, C, Hk, Wk = kf.shape
    x = sf.reshape(1, B * C, sf.shape[2], sf.shape[3])
    kk = kf.reshape(B * C, 1, Hk, Wk)
    feat = jax.lax.conv_general_dilated(
        x, kk, window_strides=(1, 1), padding="VALID",
        dimension_numbers=("NCHW", "OIHW", "NCHW"),
        feature_group_count=B * C)
    feat = feat.reshape(B, C, feat.shape[2], feat.shape[3])

    return conv_bn_relu(feat, params["head_w"], params["bn_head"])


if __name__ == "__main__":
    key = jax.random.PRNGKey(0)
    B, Cin, hidden = 2, 4, 32
    out_channels = 8                               # only used for (unused) last_weights0
    Hk_in = Wk_in = 8                              # template / "kernel" input
    Hs_in = Ws_in = 16                             # search input

    keys = jax.random.split(key, 17)

    def bn_params(k0, k1, k2, k3):
        gamma = 1.0 + 0.1 * jax.random.normal(k0, (hidden,), jnp.float32)
        beta = 0.1 * jax.random.normal(k1, (hidden,), jnp.float32)
        mean = 0.1 * jax.random.normal(k2, (hidden,), jnp.float32)
        var = 0.5 + jax.random.uniform(k3, (hidden,), jnp.float32)
        return (gamma, beta, mean, var)

    params = {
        "conv_kernel_w": 0.1 * jax.random.normal(keys[0], (hidden, Cin, 3, 3), jnp.float32),
        "conv_search_w": 0.1 * jax.random.normal(keys[1], (hidden, Cin, 3, 3), jnp.float32),
        "head_w":        0.1 * jax.random.normal(keys[2], (hidden, hidden, 1, 1), jnp.float32),
        "bn_kernel": bn_params(keys[3], keys[4], keys[5], keys[6]),
        "bn_search": bn_params(keys[7], keys[8], keys[9], keys[10]),
        "bn_head":   bn_params(keys[11], keys[12], keys[13], keys[14]),
    }
    # Present in the module but unused by forward():
    last_weights0 = jnp.zeros((out_channels, hidden, 1, 1), jnp.float32)
    last_bias0 = jnp.zeros((out_channels,), jnp.float32)

    kernel_in = jax.random.normal(keys[15], (B, Cin, Hk_in, Wk_in), jnp.float32)
    search_in = jax.random.normal(keys[16], (B, Cin, Hs_in, Ws_in), jnp.float32)

    ref = np.asarray(ref_forward(kernel_in, search_in, params))

    # f32 MXU inputs: strict check (v5e default path).
    out_f32 = latent_dw_xcorr_cls_forward(kernel_in, search_in, params,
                                          mxu_dtype=jnp.float32)
    out_f32 = jax.block_until_ready(out_f32)
    np.testing.assert_allclose(np.asarray(out_f32), ref, rtol=1e-4, atol=1e-4)

    # bf16 MXU inputs, f32 accumulation: v6e/v7x perf path, looser (bf16-rounding) check.
    out_bf16 = latent_dw_xcorr_cls_forward(kernel_in, search_in, params,
                                           mxu_dtype=jnp.bfloat16)
    out_bf16 = jax.block_until_ready(out_bf16)
    np.testing.assert_allclose(np.asarray(out_bf16), ref,
                               rtol=5e-2, atol=5e-2 * float(np.abs(ref).max()))

    print("KERNEL_OK")
</pallas_src>

<mosaic_0001>
module attributes {stable_mosaic.version = 11 : i64} {
  func.func @_fused_forward_kernel(%arg0: i32, %arg1: memref<1x40x128xf32, #tpu.memory_space<vmem>>, %arg2: memref<1x208x128xf32, #tpu.memory_space<vmem>>, %arg3: memref<128x128xf32, #tpu.memory_space<vmem>>, %arg4: memref<128x128xf32, #tpu.memory_space<vmem>>, %arg5: memref<128x128xf32, #tpu.memory_space<vmem>>, %arg6: memref<1x128xf32, #tpu.memory_space<vmem>>, %arg7: memref<1x128xf32, #tpu.memory_space<vmem>>, %arg8: memref<1x128xf32, #tpu.memory_space<vmem>>, %arg9: memref<1x128x128xf32, #tpu.memory_space<vmem>>, %arg10: memref<208x128xf32, #tpu.memory_space<vmem>>, %arg11: memref<40x128xf32, #tpu.memory_space<vmem>>) attributes {dimension_semantics = [#tpu.dimension_semantics<arbitrary>], iteration_bounds = array<i64: 2>, scalar_prefetch = 0 : i64, scratch_operands = 2 : i64, tpu.core_type = #tpu.core_type<tc>, window_params = [{transform_indices = @transform_0, window_bounds = array<i64: 1, 40, 128>}, {transform_indices = @transform_1, window_bounds = array<i64: 1, 208, 128>}, {pipeline_mode = #tpu.pipeline_mode<synchronous>, transform_indices = @transform_2, window_bounds = array<i64: 128, 128>}, {pipeline_mode = #tpu.pipeline_mode<synchronous>, transform_indices = @transform_3, window_bounds = array<i64: 128, 128>}, {pipeline_mode = #tpu.pipeline_mode<synchronous>, transform_indices = @transform_4, window_bounds = array<i64: 128, 128>}, {pipeline_mode = #tpu.pipeline_mode<synchronous>, transform_indices = @transform_5, window_bounds = array<i64: 1, 128>}, {pipeline_mode = #tpu.pipeline_mode<synchronous>, transform_indices = @transform_6, window_bounds = array<i64: 1, 128>}, {pipeline_mode = #tpu.pipeline_mode<synchronous>, transform_indices = @transform_7, window_bounds = array<i64: 1, 128>}, {transform_indices = @transform_8, window_bounds = array<i64: 1, 128, 128>}]} {
    %c0 = arith.constant 0 : index
    %c0_0 = arith.constant 0 : index
    %c0_1 = arith.constant 0 : index
    %0 = vector.load %arg1[%c0, %c0_0, %c0_1] : memref<1x40x128xf32, #tpu.memory_space<vmem>>, vector<1x40x128xf32>
    %1 = vector.shape_cast %0 : vector<1x40x128xf32> to vector<40x128xf32>
    %c0_2 = arith.constant 0 : index
    %c0_3 = arith.constant 0 : index
    %2 = vector.load %arg3[%c0_2, %c0_3] : memref<128x128xf32, #tpu.memory_space<vmem>>, vector<128x128xf32>
    %cst = arith.constant dense<0.000000e+00> : vector<40x128xf32>
    %3 = tpu.matmul %1, %2, %cst {dimension_numbers = #tpu.dot_dimension_numbers<[1], [0], [0], [1], [0, 0, 1, 1], [], []>} : vector<40x128xf32>, vector<128x128xf32>, vector<40x128xf32> -> vector<40x128xf32>
    %c0_4 = arith.constant 0 : index
    %c0_5 = arith.constant 0 : index
    %4 = vector.load %arg6[%c0_4, %c0_5] : memref<1x128xf32, #tpu.memory_space<vmem>>, vector<1x128xf32>
    %5 = vector.broadcast %4 : vector<1x128xf32> to vector<40x128xf32>
    %6 = arith.addf %3, %5 : vector<40x128xf32>
    %cst_6 = arith.constant 0.000000e+00 : f32
    %7 = vector.broadcast %cst_6 : f32 to vector<40x128xf32>
    %8 = arith.maximumf %6, %7 : vector<40x128xf32>
    %c0_7 = arith.constant 0 : index
    %c0_8 = arith.constant 0 : index
    %9 = vector.load %arg11[%c0_7, %c0_8] : memref<40x128xf32, #tpu.memory_space<vmem>>, vector<40x128xf32>
    tpu.vector_store %arg11[%c0_7, %c0_8], %8 {strides = array<i32>} : memref<40x128xf32, #tpu.memory_space<vmem>>, vector<40x128xf32>,
    %c0_9 = arith.constant 0 : index
    %c0_10 = arith.constant 0 : index
    %c0_11 = arith.constant 0 : index
    %10 = vector.load %arg2[%c0_9, %c0_10, %c0_11] : memref<1x208x128xf32, #tpu.memory_space<vmem>>, vector<1x208x128xf32>
    %11 = vector.shape_cast %10 : vector<1x208x128xf32> to vector<208x128xf32>
    %c0_12 = arith.constant 0 : index
    %c0_13 = arith.constant 0 : index
    %12 = vector.load %arg4[%c0_12, %c0_13] : memref<128x128xf32, #tpu.memory_space<vmem>>, vector<128x128xf32>
    %cst_14 = arith.constant dense<0.000000e+00> : vector<208x128xf32>
    %13 = tpu.matmul %11, %12, %cst_14 {dimension_numbers = #tpu.dot_dimension_numbers<[1], [0], [0], [1], [0, 0, 1, 1], [], []>} : vector<208x128xf32>, vector<128x128xf32>, vector<208x128xf32> -> vector<208x128xf32>
    %c0_15 = arith.constant 0 : index
    %c0_16 = arith.constant 0 : index
    %14 = vector.load %arg7[%c0_15, %c0_16] : memref<1x128xf32, #tpu.memory_space<vmem>>, vector<1x128xf32>
    %15 = vector.broadcast %14 : vector<1x128xf32> to vector<208x128xf32>
    %16 = arith.addf %13, %15 : vector<208x128xf32>
    %cst_17 = arith.constant 0.000000e+00 : f32
    %17 = vector.broadcast %cst_17 : f32 to vector<208x128xf32>
    %18 = arith.maximumf %16, %17 : vector<208x128xf32>
    %c0_18 = arith.constant 0 : index
    %c0_19 = arith.constant 0 : index
    %19 = vector.load %arg10[%c0_18, %c0_19] : memref<208x128xf32, #tpu.memory_space<vmem>>, vector<208x128xf32>
    tpu.vector_store %arg10[%c0_18, %c0_19], %18 {strides = array<i32>} : memref<208x128xf32, #tpu.memory_space<vmem>>, vector<208x128xf32>,
    %cst_20 = arith.constant 0.000000e+00 : f32
    %20 = vector.broadcast %cst_20 : f32 to vector<128x128xf32>
    %c0_21 = arith.constant 0 : index
    %c0_22 = arith.constant 0 : index
    %21 = vector.load %arg10[%c0_21, %c0_22] : memref<208x128xf32, #tpu.memory_space<vmem>>, vector<128x128xf32>
    %c0_23 = arith.constant 0 : index
    %c0_24 = arith.constant 0 : index
    %22 = vector.load %arg11[%c0_23, %c0_24] : memref<40x128xf32, #tpu.memory_space<vmem>>, vector<1x128xf32>
    %23 = vector.broadcast %22 : vector<1x128xf32> to vector<128x128xf32>
    %24 = arith.mulf %21, %23 : vector<128x128xf32>
    %25 = arith.addf %20, %24 : vector<128x128xf32>
    %c1 = arith.constant 1 : index
    %c0_25 = arith.constant 0 : index
    %26 = vector.load %arg10[%c1, %c0_25] : memref<208x128xf32, #tpu.memory_space<vmem>>, vector<128x128xf32>
    %c1_26 = arith.constant 1 : index
    %c0_27 = arith.constant 0 : index
    %27 = vector.load %arg11[%c1_26, %c0_27] : memref<40x128xf32, #tpu.memory_space<vmem>>, vector<1x128xf32>
    %28 = vector.broadcast %27 : vector<1x128xf32> to vector<128x128xf32>
    %29 = arith.mulf %26, %28 : vector<128x128xf32>
    %30 = arith.addf %25, %29 : vector<128x128xf32>
    %c2 = arith.constant 2 : index
    %c0_28 = arith.constant 0 : index
    %31 = vector.load %arg10[%c2, %c0_28] : memref<208x128xf32, #tpu.memory_space<vmem>>, vector<128x128xf32>
    %c2_29 = arith.constant 2 : index
    %c0_30 = arith.constant 0 : index
    %32 = vector.load %arg11[%c2_29, %c0_30] : memref<40x128xf32, #tpu.memory_space<vmem>>, vector<1x128xf32>
    %33 = vector.broadcast %32 : vector<1x128xf32> to vector<128x128xf32>
    %34 = arith.mulf %31, %33 : vector<128x128xf32>
    %35 = arith.addf %30, %34 : vector<128x128xf32>
    %c3 = arith.constant 3 : index
    %c0_31 = arith.constant 0 : index
    %36 = vector.load %arg10[%c3, %c0_31] : memref<208x128xf32, #tpu.memory_space<vmem>>, vector<128x128xf32>
    %c3_32 = arith.constant 3 : index
    %c0_33 = arith.constant 0 : index
    %37 = vector.load %arg11[%c3_32, %c0_33] : memref<40x128xf32, #tpu.memory_space<vmem>>, vector<1x128xf32>
    %38 = vector.broadcast %37 : vector<1x128xf32> to vector<128x128xf32>
    %39 = arith.mulf %36, %38 : vector<128x128xf32>
    %40 = arith.addf %35, %39 : vector<128x128xf32>
    %c4 = arith.constant 4 : index
    %c0_34 = arith.constant 0 : index
    %41 = vector.load %arg10[%c4, %c0_34] : memref<208x128xf32, #tpu.memory_space<vmem>>, vector<128x128xf32>
    %c4_35 = arith.constant 4 : index
    %c0_36 = arith.constant 0 : index
    %42 = vector.load %arg11[%c4_35, %c0_36] : memref<40x128xf32, #tpu.memory_space<vmem>>, vector<1x128xf32>
    %43 = vector.broadcast %42 : vector<1x128xf32> to vector<128x128xf32>
    %44 = arith.mulf %41, %43 : vector<128x128xf32>
    %45 = arith.addf %40, %44 : vector<128x128xf32>
    %c5 = arith.constant 5 : index
    %c0_37 = arith.constant 0 : index
    %46 = vector.load %arg10[%c5, %c0_37] : memref<208x128xf32, #tpu.memory_space<vmem>>, vector<128x128xf32>
    %c5_38 = arith.constant 5 : index
    %c0_39 = arith.constant 0 : index
    %47 = vector.load %arg11[%c5_38, %c0_39] : memref<40x128xf32, #tpu.memory_space<vmem>>, vector<1x128xf32>
    %48 = vector.broadcast %47 : vector<1x128xf32> to vector<128x128xf32>
    %49 = arith.mulf %46, %48 : vector<128x128xf32>
    %50 = arith.addf %45, %49 : vector<128x128xf32>
    %c14 = arith.constant 14 : index
    %c0_40 = arith.constant 0 : index
    %51 = vector.load %arg10[%c14, %c0_40] : memref<208x128xf32, #tpu.memory_space<vmem>>, vector<128x128xf32>
    %c6 = arith.constant 6 : index
    %c0_41 = arith.constant 0 : index
    %52 = vector.load %arg11[%c6, %c0_41] : memref<40x128xf32, #tpu.memory_space<vmem>>, vector<1x128xf32>
    %53 = vector.broadcast %52 : vector<1x128xf32> to vector<128x128xf32>
    %54 = arith.mulf %51, %53 : vector<128x128xf32>
    %55 = arith.addf %50, %54 : vector<128x128xf32>
    %c15 = arith.constant 15 : index
    %c0_42 = arith.constant 0 : index
    %56 = vector.load %arg10[%c15, %c0_42] : memref<208x128xf32, #tpu.memory_space<vmem>>, vector<128x128xf32>
    %c7 = arith.constant 7 : index
    %c0_43 = arith.constant 0 : index
    %57 = vector.load %arg11[%c7, %c0_43] : memref<40x128xf32, #tpu.memory_space<vmem>>, vector<1x128xf32>
    %58 = vector.broadcast %57 : vector<1x128xf32> to vector<128x128xf32>
    %59 = arith.mulf %56, %58 : vector<128x128xf32>
    %60 = arith.addf %55, %59 : vector<128x128xf32>
    %c16 = arith.constant 16 : index
    %c0_44 = arith.constant 0 : index
    %61 = vector.load %arg10[%c16, %c0_44] : memref<208x128xf32, #tpu.memory_space<vmem>>, vector<128x128xf32>
    %c8 = arith.constant 8 : index
    %c0_45 = arith.constant 0 : index
    %62 = vector.load %arg11[%c8, %c0_45] : memref<40x128xf32, #tpu.memory_space<vmem>>, vector<1x128xf32>
    %63 = vector.broadcast %62 : vector<1x128xf32> to vector<128x128xf32>
    %64 = arith.mulf %61, %63 : vector<128x128xf32>
    %65 = arith.addf %60, %64 : vector<128x128xf32>
    %c17 = arith.constant 17 : index
    %c0_46 = arith.constant 0 : index
    %66 = vector.load %arg10[%c17, %c0_46] : memref<208x128xf32, #tpu.memory_space<vmem>>, vector<128x128xf32>
    %c9 = arith.constant 9 : index
    %c0_47 = arith.constant 0 : index
    %67 = vector.load %arg11[%c9, %c0_47] : memref<40x128xf32, #tpu.memory_space<vmem>>, vector<1x128xf32>
    %68 = vector.broadcast %67 : vector<1x128xf32> to vector<128x128xf32>
    %69 = arith.mulf %66, %68 : vector<128x128xf32>
    %70 = arith.addf %65, %69 : vector<128x128xf32>
    %c18 = arith.constant 18 : index
    %c0_48 = arith.constant 0 : index
    %71 = vector.load %arg10[%c18, %c0_48] : memref<208x128xf32, #tpu.memory_space<vmem>>, vector<128x128xf32>
    %c10 = arith.constant 10 : index
    %c0_49 = arith.constant 0 : index
    %72 = vector.load %arg11[%c10, %c0_49] : memref<40x128xf32, #tpu.memory_space<vmem>>, vector<1x128xf32>
    %73 = vector.broadcast %72 : vector<1x128xf32> to vector<128x128xf32>
    %74 = arith.mulf %71, %73 : vector<128x128xf32>
    %75 = arith.addf %70, %74 : vector<128x128xf32>
    %c19 = arith.constant 19 : index
    %c0_50 = arith.constant 0 : index
    %76 = vector.load %arg10[%c19, %c0_50] : memref<208x128xf32, #tpu.memory_space<vmem>>, vector<128x128xf32>
    %c11 = arith.constant 11 : index
    %c0_51 = arith.constant 0 : index
    %77 = vector.load %arg11[%c11, %c0_51] : memref<40x128xf32, #tpu.memory_space<vmem>>, vector<1x128xf32>
    %78 = vector.broadcast %77 : vector<1x128xf32> to vector<128x128xf32>
    %79 = arith.mulf %76, %78 : vector<128x128xf32>
    %80 = arith.addf %75, %79 : vector<128x128xf32>
    %c28 = arith.constant 28 : index
    %c0_52 = arith.constant 0 : index
    %81 = vector.load %arg10[%c28, %c0_52] : memref<208x128xf32, #tpu.memory_space<vmem>>, vector<128x128xf32>
    %c12 = arith.constant 12 : index
    %c0_53 = arith.constant 0 : index
    %82 = vector.load %arg11[%c12, %c0_53] : memref<40x128xf32, #tpu.memory_space<vmem>>, vector<1x128xf32>
    %83 = vector.broadcast %82 : vector<1x128xf32> to vector<128x128xf32>
    %84 = arith.mulf %81, %83 : vector<128x128xf32>
    %85 = arith.addf %80, %84 : vector<128x128xf32>
    %c29 = arith.constant 29 : index
    %c0_54 = arith.constant 0 : index
    %86 = vector.load %arg10[%c29, %c0_54] : memref<208x128xf32, #tpu.memory_space<vmem>>, vector<128x128xf32>
    %c13 = arith.constant 13 : index
    %c0_55 = arith.constant 0 : index
    %87 = vector.load %arg11[%c13, %c0_55] : memref<40x128xf32, #tpu.memory_space<vmem>>, vector<1x128xf32>
    %88 = vector.broadcast %87 : vector<1x128xf32> to vector<128x128xf32>
    %89 = arith.mulf %86, %88 : vector<128x128xf32>
    %90 = arith.addf %85, %89 : vector<128x128xf32>
    %c30 = arith.constant 30 : index
    %c0_56 = arith.constant 0 : index
    %91 = vector.load %arg10[%c30, %c0_56] : memref<208x128xf32, #tpu.memory_space<vmem>>, vector<128x128xf32>
    %c14_57 = arith.constant 14 : index
    %c0_58 = arith.constant 0 : index
    %92 = vector.load %arg11[%c14_57, %c0_58] : memref<40x128xf32, #tpu.memory_space<vmem>>, vector<1x128xf32>
    %93 = vector.broadcast %92 : vector<1x128xf32> to vector<128x128xf32>
    %94 = arith.mulf %91, %93 : vector<128x128xf32>
    %95 = arith.addf %90, %94 : vector<128x128xf32>
    %c31 = arith.constant 31 : index
    %c0_59 = arith.constant 0 : index
    %96 = vector.load %arg10[%c31, %c0_59] : memref<208x128xf32, #tpu.memory_space<vmem>>, vector<128x128xf32>
    %c15_60 = arith.constant 15 : index
    %c0_61 = arith.constant 0 : index
    %97 = vector.load %arg11[%c15_60, %c0_61] : memref<40x128xf32, #tpu.memory_space<vmem>>, vector<1x128xf32>
    %98 = vector.broadcast %97 : vector<1x128xf32> to vector<128x128xf32>
    %99 = arith.mulf %96, %98 : vector<128x128xf32>
    %100 = arith.addf %95, %99 : vector<128x128xf32>
    %c32 = arith.constant 32 : index
    %c0_62 = arith.constant 0 : index
    %101 = vector.load %arg10[%c32, %c0_62] : memref<208x128xf32, #tpu.memory_space<vmem>>, vector<128x128xf32>
    %c16_63 = arith.constant 16 : index
    %c0_64 = arith.constant 0 : index
    %102 = vector.load %arg11[%c16_63, %c0_64] : memref<40x128xf32, #tpu.memory_space<vmem>>, vector<1x128xf32>
    %103 = vector.broadcast %102 : vector<1x128xf32> to vector<128x128xf32>
    %104 = arith.mulf %101, %103 : vector<128x128xf32>
    %105 = arith.addf %100, %104 : vector<128x128xf32>
    %c33 = arith.constant 33 : index
    %c0_65 = arith.constant 0 : index
    %106 = vector.load %arg10[%c33, %c0_65] : memref<208x128xf32, #tpu.memory_space<vmem>>, vector<128x128xf32>
    %c17_66 = arith.constant 17 : index
    %c0_67 = arith.constant 0 : index
    %107 = vector.load %arg11[%c17_66, %c0_67] : memref<40x128xf32, #tpu.memory_space<vmem>>, vector<1x128xf32>
    %108 = vector.broadcast %107 : vector<1x128xf32> to vector<128x128xf32>
    %109 = arith.mulf %106, %108 : vector<128x128xf32>
    %110 = arith.addf %105, %109 : vector<128x128xf32>
    %c42 = arith.constant 42 : index
    %c0_68 = arith.constant 0 : index
    %111 = vector.load %arg10[%c42, %c0_68] : memref<208x128xf32, #tpu.memory_space<vmem>>, vector<128x128xf32>
    %c18_69 = arith.constant 18 : index
    %c0_70 = arith.constant 0 : index
    %112 = vector.load %arg11[%c18_69, %c0_70] : memref<40x128xf32, #tpu.memory_space<vmem>>, vector<1x128xf32>
    %113 = vector.broadcast %112 : vector<1x128xf32> to vector<128x128xf32>
    %114 = arith.mulf %111, %113 : vector<128x128xf32>
    %115 = arith.addf %110, %114 : vector<128x128xf32>
    %c43 = arith.constant 43 : index
    %c0_71 = arith.constant 0 : index
    %116 = vector.load %arg10[%c43, %c0_71] : memref<208x128xf32, #tpu.memory_space<vmem>>, vector<128x128xf32>
    %c19_72 = arith.constant 19 : index
    %c0_73 = arith.constant 0 : index
    %117 = vector.load %arg11[%c19_72, %c0_73] : memref<40x128xf32, #tpu.memory_space<vmem>>, vector<1x128xf32>
    %118 = vector.broadcast %117 : vector<1x128xf32> to vector<128x128xf32>
    %119 = arith.mulf %116, %118 : vector<128x128xf32>
    %120 = arith.addf %115, %119 : vector<128x128xf32>
    %c44 = arith.constant 44 : index
    %c0_74 = arith.constant 0 : index
    %121 = vector.load %arg10[%c44, %c0_74] : memref<208x128xf32, #tpu.memory_space<vmem>>, vector<128x128xf32>
    %c20 = arith.constant 20 : index
    %c0_75 = arith.constant 0 : index
    %122 = vector.load %arg11[%c20, %c0_75] : memref<40x128xf32, #tpu.memory_space<vmem>>, vector<1x128xf32>
    %123 = vector.broadcast %122 : vector<1x128xf32> to vector<128x128xf32>
    %124 = arith.mulf %121, %123 : vector<128x128xf32>
    %125 = arith.addf %120, %124 : vector<128x128xf32>
    %c45 = arith.constant 45 : index
    %c0_76 = arith.constant 0 : index
    %126 = vector.load %arg10[%c45, %c0_76] : memref<208x128xf32, #tpu.memory_space<vmem>>, vector<128x128xf32>
    %c21 = arith.constant 21 : index
    %c0_77 = arith.constant 0 : index
    %127 = vector.load %arg11[%c21, %c0_77] : memref<40x128xf32, #tpu.memory_space<vmem>>, vector<1x128xf32>
    %128 = vector.broadcast %127 : vector<1x128xf32> to vector<128x128xf32>
    %129 = arith.mulf %126, %128 : vector<128x128xf32>
    %130 = arith.addf %125, %129 : vector<128x128xf32>
    %c46 = arith.constant 46 : index
    %c0_78 = arith.constant 0 : index
    %131 = vector.load %arg10[%c46, %c0_78] : memref<208x128xf32, #tpu.memory_space<vmem>>, vector<128x128xf32>
    %c22 = arith.constant 22 : index
    %c0_79 = arith.constant 0 : index
    %132 = vector.load %arg11[%c22, %c0_79] : memref<40x128xf32, #tpu.memory_space<vmem>>, vector<1x128xf32>
    %133 = vector.broadcast %132 : vector<1x128xf32> to vector<128x128xf32>
    %134 = arith.mulf %131, %133 : vector<128x128xf32>
    %135 = arith.addf %130, %134 : vector<128x128xf32>
    %c47 = arith.constant 47 : index
    %c0_80 = arith.constant 0 : index
    %136 = vector.load %arg10[%c47, %c0_80] : memref<208x128xf32, #tpu.memory_space<vmem>>, vector<128x128xf32>
    %c23 = arith.constant 23 : index
    %c0_81 = arith.constant 0 : index
    %137 = vector.load %arg11[%c23, %c0_81] : memref<40x128xf32, #tpu.memory_space<vmem>>, vector<1x128xf32>
    %138 = vector.broadcast %137 : vector<1x128xf32> to vector<128x128xf32>
    %139 = arith.mulf %136, %138 : vector<128x128xf32>
    %140 = arith.addf %135, %139 : vector<128x128xf32>
    %c56 = arith.constant 56 : index
    %c0_82 = arith.constant 0 : index
    %141 = vector.load %arg10[%c56, %c0_82] : memref<208x128xf32, #tpu.memory_space<vmem>>, vector<128x128xf32>
    %c24 = arith.constant 24 : index
    %c0_83 = arith.constant 0 : index
    %142 = vector.load %arg11[%c24, %c0_83] : memref<40x128xf32, #tpu.memory_space<vmem>>, vector<1x128xf32>
    %143 = vector.broadcast %142 : vector<1x128xf32> to vector<128x128xf32>
    %144 = arith.mulf %141, %143 : vector<128x128xf32>
    %145 = arith.addf %140, %144 : vector<128x128xf32>
    %c57 = arith.constant 57 : index
    %c0_84 = arith.constant 0 : index
    %146 = vector.load %arg10[%c57, %c0_84] : memref<208x128xf32, #tpu.memory_space<vmem>>, vector<128x128xf32>
    %c25 = arith.constant 25 : index
    %c0_85 = arith.constant 0 : index
    %147 = vector.load %arg11[%c25, %c0_85] : memref<40x128xf32, #tpu.memory_space<vmem>>, vector<1x128xf32>
    %148 = vector.broadcast %147 : vector<1x128xf32> to vector<128x128xf32>
    %149 = arith.mulf %146, %148 : vector<128x128xf32>
    %150 = arith.addf %145, %149 : vector<128x128xf32>
    %c58 = arith.constant 58 : index
    %c0_86 = arith.constant 0 : index
    %151 = vector.load %arg10[%c58, %c0_86] : memref<208x128xf32, #tpu.memory_space<vmem>>, vector<128x128xf32>
    %c26 = arith.constant 26 : index
    %c0_87 = arith.constant 0 : index
    %152 = vector.load %arg11[%c26, %c0_87] : memref<40x128xf32, #tpu.memory_space<vmem>>, vector<1x128xf32>
    %153 = vector.broadcast %152 : vector<1x128xf32> to vector<128x128xf32>
    %154 = arith.mulf %151, %153 : vector<128x128xf32>
    %155 = arith.addf %150, %154 : vector<128x128xf32>
    %c59 = arith.constant 59 : index
    %c0_88 = arith.constant 0 : index
    %156 = vector.load %arg10[%c59, %c0_88] : memref<208x128xf32, #tpu.memory_space<vmem>>, vector<128x128xf32>
    %c27 = arith.constant 27 : index
    %c0_89 = arith.constant 0 : index
    %157 = vector.load %arg11[%c27, %c0_89] : memref<40x128xf32, #tpu.memory_space<vmem>>, vector<1x128xf32>
    %158 = vector.broadcast %157 : vector<1x128xf32> to vector<128x128xf32>
    %159 = arith.mulf %156, %158 : vector<128x128xf32>
    %160 = arith.addf %155, %159 : vector<128x128xf32>
    %c60 = arith.constant 60 : index
    %c0_90 = arith.constant 0 : index
    %161 = vector.load %arg10[%c60, %c0_90] : memref<208x128xf32, #tpu.memory_space<vmem>>, vector<128x128xf32>
    %c28_91 = arith.constant 28 : index
    %c0_92 = arith.constant 0 : index
    %162 = vector.load %arg11[%c28_91, %c0_92] : memref<40x128xf32, #tpu.memory_space<vmem>>, vector<1x128xf32>
    %163 = vector.broadcast %162 : vector<1x128xf32> to vector<128x128xf32>
    %164 = arith.mulf %161, %163 : vector<128x128xf32>
    %165 = arith.addf %160, %164 : vector<128x128xf32>
    %c61 = arith.constant 61 : index
    %c0_93 = arith.constant 0 : index
    %166 = vector.load %arg10[%c61, %c0_93] : memref<208x128xf32, #tpu.memory_space<vmem>>, vector<128x128xf32>
    %c29_94 = arith.constant 29 : index
    %c0_95 = arith.constant 0 : index
    %167 = vector.load %arg11[%c29_94, %c0_95] : memref<40x128xf32, #tpu.memory_space<vmem>>, vector<1x128xf32>
    %168 = vector.broadcast %167 : vector<1x128xf32> to vector<128x128xf32>
    %169 = arith.mulf %166, %168 : vector<128x128xf32>
    %170 = arith.addf %165, %169 : vector<128x128xf32>
    %c70 = arith.constant 70 : index
    %c0_96 = arith.constant 0 : index
    %171 = vector.load %arg10[%c70, %c0_96] : memref<208x128xf32, #tpu.memory_space<vmem>>, vector<128x128xf32>
    %c30_97 = arith.constant 30 : index
    %c0_98 = arith.constant 0 : index
    %172 = vector.load %arg11[%c30_97, %c0_98] : memref<40x128xf32, #tpu.memory_space<vmem>>, vector<1x128xf32>
    %173 = vector.broadcast %172 : vector<1x128xf32> to vector<128x128xf32>
    %174 = arith.mulf %171, %173 : vector<128x128xf32>
    %175 = arith.addf %170, %174 : vector<128x128xf32>
    %c71 = arith.constant 71 : index
    %c0_99 = arith.constant 0 : index
    %176 = vector.load %arg10[%c71, %c0_99] : memref<208x128xf32, #tpu.memory_space<vmem>>, vector<128x128xf32>
    %c31_100 = arith.constant 31 : index
    %c0_101 = arith.constant 0 : index
    %177 = vector.load %arg11[%c31_100, %c0_101] : memref<40x128xf32, #tpu.memory_space<vmem>>, vector<1x128xf32>
    %178 = vector.broadcast %177 : vector<1x128xf32> to vector<128x128xf32>
    %179 = arith.mulf %176, %178 : vector<128x128xf32>
    %180 = arith.addf %175, %179 : vector<128x128xf32>
    %c72 = arith.constant 72 : index
    %c0_102 = arith.constant 0 : index
    %181 = vector.load %arg10[%c72, %c0_102] : memref<208x128xf32, #tpu.memory_space<vmem>>, vector<128x128xf32>
    %c32_103 = arith.constant 32 : index
    %c0_104 = arith.constant 0 : index
    %182 = vector.load %arg11[%c32_103, %c0_104] : memref<40x128xf32, #tpu.memory_space<vmem>>, vector<1x128xf32>
    %183 = vector.broadcast %182 : vector<1x128xf32> to vector<128x128xf32>
    %184 = arith.mulf %181, %183 : vector<128x128xf32>
    %185 = arith.addf %180, %184 : vector<128x128xf32>
    %c73 = arith.constant 73 : index
    %c0_105 = arith.constant 0 : index
    %186 = vector.load %arg10[%c73, %c0_105] : memref<208x128xf32, #tpu.memory_space<vmem>>, vector<128x128xf32>
    %c33_106 = arith.constant 33 : index
    %c0_107 = arith.constant 0 : index
    %187 = vector.load %arg11[%c33_106, %c0_107] : memref<40x128xf32, #tpu.memory_space<vmem>>, vector<1x128xf32>
    %188 = vector.broadcast %187 : vector<1x128xf32> to vector<128x128xf32>
    %189 = arith.mulf %186, %188 : vector<128x128xf32>
    %190 = arith.addf %185, %189 : vector<128x128xf32>
    %c74 = arith.constant 74 : index
    %c0_108 = arith.constant 0 : index
    %191 = vector.load %arg10[%c74, %c0_108] : memref<208x128xf32, #tpu.memory_space<vmem>>, vector<128x128xf32>
    %c34 = arith.constant 34 : index
    %c0_109 = arith.constant 0 : index
    %192 = vector.load %arg11[%c34, %c0_109] : memref<40x128xf32, #tpu.memory_space<vmem>>, vector<1x128xf32>
    %193 = vector.broadcast %192 : vector<1x128xf32> to vector<128x128xf32>
    %194 = arith.mulf %191, %193 : vector<128x128xf32>
    %195 = arith.addf %190, %194 : vector<128x128xf32>
    %c75 = arith.constant 75 : index
    %c0_110 = arith.constant 0 : index
    %196 = vector.load %arg10[%c75, %c0_110] : memref<208x128xf32, #tpu.memory_space<vmem>>, vector<128x128xf32>
    %c35 = arith.constant 35 : index
    %c0_111 = arith.constant 0 : index
    %197 = vector.load %arg11[%c35, %c0_111] : memref<40x128xf32, #tpu.memory_space<vmem>>, vector<1x128xf32>
    %198 = vector.broadcast %197 : vector<1x128xf32> to vector<128x128xf32>
    %199 = arith.mulf %196, %198 : vector<128x128xf32>
    %200 = arith.addf %195, %199 : vector<128x128xf32>
    %c0_112 = arith.constant 0 : index
    %c0_113 = arith.constant 0 : index
    %201 = vector.load %arg5[%c0_112, %c0_113] : memref<128x128xf32, #tpu.memory_space<vmem>>, vector<128x128xf32>
    %cst_114 = arith.constant dense<0.000000e+00> : vector<128x128xf32>
    %202 = tpu.matmul %200, %201, %cst_114 {dimension_numbers = #tpu.dot_dimension_numbers<[1], [0], [0], [1], [0, 0, 1, 1], [], []>} : vector<128x128xf32>, vector<128x128xf32>, vector<128x128xf32> -> vector<128x128xf32>
    %c0_115 = arith.constant 0 : index
    %c0_116 = arith.constant 0 : index
    %203 = vector.load %arg8[%c0_115, %c0_116] : memref<1x128xf32, #tpu.memory_space<vmem>>, vector<1x128xf32>
    %204 = vector.broadcast %203 : vector<1x128xf32> to vector<128x128xf32>
    %205 = arith.addf %202, %204 : vector<128x128xf32>
    %cst_117 = arith.constant 0.000000e+00 : f32
    %206 = vector.broadcast %cst_117 : f32 to vector<128x128xf32>
    %207 = arith.maximumf %205, %206 : vector<128x128xf32>
    %c0_118 = arith.constant 0 : index
    %c0_119 = arith.constant 0 : index
    %c0_120 = arith.constant 0 : index
    %208 = vector.load %arg9[%c0_118, %c0_119, %c0_120] : memref<1x128x128xf32, #tpu.memory_space<vmem>>, vector<1x128x128xf32>
    %209 = vector.shape_cast %208 : vector<1x128x128xf32> to vector<128x128xf32>
    %210 = vector.shape_cast %207 : vector<128x128xf32> to vector<1x128x128xf32>
    tpu.vector_store %arg9[%c0_118, %c0_119, %c0_120], %210 {strides = array<i32>} : memref<1x128x128xf32, #tpu.memory_space<vmem>>, vector<1x128x128xf32>,
    return
  }
  func.func @transform_0(%arg0: i32) -> (i32, i32, i32) {
    %c0_i32 = arith.constant 0 : i32
    %c0_i32_0 = arith.constant 0 : i32
    %c0_i32_1 = arith.constant 0 : i32
    return %arg0, %c0_i32, %c0_i32_0 : i32, i32, i32
  }
  func.func @transform_1(%arg0: i32) -> (i32, i32, i32) {
    %c0_i32 = arith.constant 0 : i32
    %c0_i32_0 = arith.constant 0 : i32
    %c0_i32_1 = arith.constant 0 : i32
    return %arg0, %c0_i32, %c0_i32_0 : i32, i32, i32
  }
  func.func @transform_2(%arg0: i32) -> (i32, i32) {
    %c0_i32 = arith.constant 0 : i32
    %c0_i32_0 = arith.constant 0 : i32
    %c0_i32_1 = arith.constant 0 : i32
    return %c0_i32, %c0_i32_0 : i32, i32
  }
  func.func @transform_3(%arg0: i32) -> (i32, i32) {
    %c0_i32 = arith.constant 0 : i32
    %c0_i32_0 = arith.constant 0 : i32
    %c0_i32_1 = arith.constant 0 : i32
    return %c0_i32, %c0_i32_0 : i32, i32
  }
  func.func @transform_4(%arg0: i32) -> (i32, i32) {
    %c0_i32 = arith.constant 0 : i32
    %c0_i32_0 = arith.constant 0 : i32
    %c0_i32_1 = arith.constant 0 : i32
    return %c0_i32, %c0_i32_0 : i32, i32
  }
  func.func @transform_5(%arg0: i32) -> (i32, i32) {
    %c0_i32 = arith.constant 0 : i32
    %c0_i32_0 = arith.constant 0 : i32
    %c0_i32_1 = arith.constant 0 : i32
    return %c0_i32, %c0_i32_0 : i32, i32
  }
  func.func @transform_6(%arg0: i32) -> (i32, i32) {
    %c0_i32 = arith.constant 0 : i32
    %c0_i32_0 = arith.constant 0 : i32
    %c0_i32_1 = arith.constant 0 : i32
    return %c0_i32, %c0_i32_0 : i32, i32
  }
  func.func @transform_7(%arg0: i32) -> (i32, i32) {
    %c0_i32 = arith.constant 0 : i32
    %c0_i32_0 = arith.constant 0 : i32
    %c0_i32_1 = arith.constant 0 : i32
    return %c0_i32, %c0_i32_0 : i32, i32
  }
  func.func @transform_8(%arg0: i32) -> (i32, i32, i32) {
    %c0_i32 = arith.constant 0 : i32
    %c0_i32_0 = arith.constant 0 : i32
    %c0_i32_1 = arith.constant 0 : i32
    return %arg0, %c0_i32, %c0_i32_0 : i32, i32, i32
  }
}

</mosaic_0001>

<llo_original>
// kernel: tpu_custom_call.1
$region0: #{tpu_custom_call.1}
  #allocation0 [shape = 'u32[]', space=smem, size = 0x4, offset = 0x4, fixed_abs, tag = 'smem constant byte address 0x4 - core index']
  #allocation1 [shape = 'u32[144,128]{1,0:T(1,128)}', space=vmem, size = 0x12000, scoped, tag = 'internal scratch']
  #allocation2 [shape = 'f32[208,128]{1,0:T(8,128)}', space=vmem, size = 0x1a000, scoped, tag = 'scratch operand']
  #allocation3 [shape = 'f32[40,128]{1,0:T(8,128)}', space=vmem, size = 0x5000, scoped, tag = 'scratch operand']
  %s0 = inlined_call_operand.hbm [shape: f32[2,40,128], index: 0, kind: input, shape index: {}]
  %s1 = inlined_call_operand.hbm [shape: f32[2,208,128], index: 1, kind: input, shape index: {}]
  %s2 = inlined_call_operand.hbm [shape: f32[128,128], index: 2, kind: input, shape index: {}]
  %s3 = inlined_call_operand.hbm [shape: f32[128,128], index: 3, kind: input, shape index: {}]
  %s4 = inlined_call_operand.hbm [shape: f32[128,128], index: 4, kind: input, shape index: {}]
  %s5 = inlined_call_operand.vmem [shape: f32[1,128], index: 5, kind: input, shape index: {}]
  %s6 = inlined_call_operand.vmem [shape: f32[1,128], index: 6, kind: input, shape index: {}]
  %s7 = inlined_call_operand.vmem [shape: f32[1,128], index: 7, kind: input, shape index: {}]
  %s8 = inlined_call_operand.hbm [shape: f32[2,128,128], index: 8, kind: output, shape index: {}]
  %s9 = sld [smem:[#allocation0]]
  $region85: #{tpu_custom_call.1} parent=0
    _
  %s11 = ssub.s32 1, %s9
  %s12 = scalar_select 0, %s11, %s9
  $region1: #{tpu_custom_call.1} parent=0
    #allocation4 [shape = 'u8[40960]{0}', space=vmem, size = 0xa000, scoped, tag = 'input window, operand 0']
    #allocation5 [shape = 's32[2]{0}', space=sflag, size = 0x8, scoped, tag = 'scoped memory for tpu_custom_call.1']
    #allocation6 [shape = 's32[2]{0}', space=sflag, size = 0x8, scoped, tag = 'scoped memory for tpu_custom_call.1']
    #allocation7 [shape = 'u8[212992]{0}', space=vmem, size = 0x34000, scoped, tag = 'input window, operand 1']
    #allocation8 [shape = 's32[2]{0}', space=sflag, size = 0x8, scoped, tag = 'scoped memory for tpu_custom_call.1']
    #allocation9 [shape = 'u8[65536]{0}', space=vmem, size = 0x10000, scoped, tag = 'input window, operand 2, single buffered']
    #allocation10 [shape = 'u8[65536]{0}', space=vmem, size = 0x10000, scoped, tag = 'input window, operand 3, single buffered']
    #allocation11 [shape = 's32[1]{0}', space=sflag, size = 0x4, scoped, tag = 'scoped memory for tpu_custom_call.1']
    #allocation12 [shape = 'u8[65536]{0}', space=vmem, size = 0x10000, scoped, tag = 'input window, operand 4, single buffered']
    #allocation13 [shape = 'u8[131072]{0}', space=vmem, size = 0x20000, scoped, tag = 'output window, operand 0']
    %13 = vsyncpa [#allocation5], 0
    %s14 = scalar_lea.sflag [#allocation5], 1
    %15 = vsyncpa %s14, 0
    %16 = vsyncpa [#allocation8], 0
    %s17 = scalar_lea.sflag [#allocation8], 1
    %18 = vsyncpa %s17, 0
    %19 = vsyncpa [#allocation11], 0
    %20 = vsyncpa [#allocation6], 0
    %s21 = scalar_lea.sflag [#allocation6], 1
    %22 = vsyncpa %s21, 0
    loop: start=0, step=1, limit=4
    $region2: #{tpu_custom_call.1} parent=1 // loop_pre_header
      _
    $region3: #{tpu_custom_call.1} parent=1 // loop_header
      %s24 = sphi 0, %s28
      %p25 = scmp.ge.s32.totalorder %s24, 4
      %s34 = sphi 0, %s36
      %s37 = sphi 0, %s34
      %s38 = sphi 0, %s37
      %s54 = sphi 0, %s38
      %s60 = sphi 0, %s62
      %s63 = sphi 0, %s60
      %s64 = sphi 0, %s63
      %s80 = sphi 0, %s64
      %s84 = sphi 0, %s84
      %s86 = sphi 0, %s84
      %s87 = sphi 0, %s86
      %s101 = sphi 0, %s87
      %s105 = sphi 0, %s105
      %s107 = sphi 0, %s105
      %s108 = sphi 0, %s107
      %s122 = sphi 0, %s108
      %s126 = sphi 0, %s126
      %s128 = sphi 0, %s126
      %s129 = sphi 0, %s128
      %s143 = sphi 0, %s129
      %s147 = sphi 0, %s147
      %s149 = sphi 0, %s147
      %s150 = sphi 0, %s149
      %s164 = sphi 0, %s150
      %s168 = sphi 0, %s168
      %s170 = sphi 0, %s168
      %s171 = sphi 0, %s170
      %s185 = sphi 0, %s171
      %s189 = sphi 0, %s189
      %s191 = sphi 0, %s189
      %s192 = sphi 0, %s191
      %s206 = sphi 0, %s192
      %s212 = sphi 0, %s214
      %s215 = sphi 0, %s212
      %s216 = sphi 0, %s215
      %s232 = sphi 0, %s216
    $region4: #{tpu_custom_call.1} parent=1 // loop_header_branch
      %27 = sbr.rel (%p25) target = $region8
    $region5: #{tpu_custom_call.1} parent=1 // loop_body
      %s29 = ssub.s32 %s24, 1
      %s30 = ssub.s32 %s24, 2
      %s31 = sadd.s32 %s24, 1
      %s32 = ssub.s32 %s24, %s31
      %p33 = scmp.eq.s32.totalorder %s32, 0
      %s35 = sadd.s32 %s34, 1
      %s36 = scalar_select %p33, %s34, %s35
      %p39 = pneg %p33
      %p40 = scmp.eq.s32.totalorder %s24, 1
      %p41 = por %p39, %p40
      %p42 = scmp.ne.s32.totalorder %s34, %s37
      %p43 = scmp.eq.s32.totalorder %s24, 0
      %p44 = por %p42, %p43
      %p45 = scmp.ne.s32.totalorder %s34, %s37
      %p46 = scmp.eq.s32.totalorder %s29, 1
      %p47 = por %p45, %p46
      %p48 = scmp.ne.s32.totalorder %s37, %s38
      %p49 = scmp.eq.s32.totalorder %s29, 0
      %p50 = por %p48, %p49
      %p51 = scmp.ne.s32.totalorder %s37, %s38
      %p52 = scmp.eq.s32.totalorder %s30, 1
      %p53 = por %p51, %p52
      %p55 = scmp.ne.s32.totalorder %s38, %s54
      %p56 = scmp.eq.s32.totalorder %s30, 0
      %p57 = por %p55, %p56
      %s58 = ssub.s32 %s24, %s31
      %p59 = scmp.eq.s32.totalorder %s58, 0
      %s61 = sadd.s32 %s60, 1
      %s62 = scalar_select %p59, %s60, %s61
      %p65 = pneg %p59
      %p66 = scmp.eq.s32.totalorder %s24, 1
      %p67 = por %p65, %p66
      %p68 = scmp.ne.s32.totalorder %s60, %s63
      %p69 = scmp.eq.s32.totalorder %s24, 0
      %p70 = por %p68, %p69
      %p71 = scmp.ne.s32.totalorder %s60, %s63
      %p72 = scmp.eq.s32.totalorder %s29, 1
      %p73 = por %p71, %p72
      %p74 = scmp.ne.s32.totalorder %s63, %s64
      %p75 = scmp.eq.s32.totalorder %s29, 0
      %p76 = por %p74, %p75
      %p77 = scmp.ne.s32.totalorder %s63, %s64
      %p78 = scmp.eq.s32.totalorder %s30, 1
      %p79 = por %p77, %p78
      %p81 = scmp.ne.s32.totalorder %s64, %s80
      %p82 = scmp.eq.s32.totalorder %s30, 0
      %p83 = por %p81, %p82
      %s85 = sadd.s32 %s84, 1
      %p88 = scmp.eq.s32.totalorder %s24, 1
      %p89 = scmp.ne.s32.totalorder %s84, %s86
      %p90 = scmp.eq.s32.totalorder %s24, 0
      %p91 = por %p89, %p90
      %p92 = scmp.ne.s32.totalorder %s84, %s86
      %p93 = scmp.eq.s32.totalorder %s29, 1
      %p94 = por %p92, %p93
      %p95 = scmp.ne.s32.totalorder %s86, %s87
      %p96 = scmp.eq.s32.totalorder %s29, 0
      %p97 = por %p95, %p96
      %p98 = scmp.ne.s32.totalorder %s86, %s87
      %p99 = scmp.eq.s32.totalorder %s30, 1
      %p100 = por %p98, %p99
      %p102 = scmp.ne.s32.totalorder %s87, %s101
      %p103 = scmp.eq.s32.totalorder %s30, 0
      %p104 = por %p102, %p103
      %s106 = sadd.s32 %s105, 1
      %p109 = scmp.eq.s32.totalorder %s24, 1
      %p110 = scmp.ne.s32.totalorder %s105, %s107
      %p111 = scmp.eq.s32.totalorder %s24, 0
      %p112 = por %p110, %p111
      %p113 = scmp.ne.s32.totalorder %s105, %s107
      %p114 = scmp.eq.s32.totalorder %s29, 1
      %p115 = por %p113, %p114
      %p116 = scmp.ne.s32.totalorder %s107, %s108
      %p117 = scmp.eq.s32.totalorder %s29, 0
      %p118 = por %p116, %p117
      %p119 = scmp.ne.s32.totalorder %s107, %s108
      %p120 = scmp.eq.s32.totalorder %s30, 1
      %p121 = por %p119, %p120
      %p123 = scmp.ne.s32.totalorder %s108, %s122
      %p124 = scmp.eq.s32.totalorder %s30, 0
      %p125 = por %p123, %p124
      %s127 = sadd.s32 %s126, 1
      %p130 = scmp.eq.s32.totalorder %s24, 1
      %p131 = scmp.ne.s32.totalorder %s126, %s128
      %p132 = scmp.eq.s32.totalorder %s24, 0
      %p133 = por %p131, %p132
      %p134 = scmp.ne.s32.totalorder %s126, %s128
      %p135 = scmp.eq.s32.totalorder %s29, 1
      %p136 = por %p134, %p135
      %p137 = scmp.ne.s32.totalorder %s128, %s129
      %p138 = scmp.eq.s32.totalorder %s29, 0
      %p139 = por %p137, %p138
      %p140 = scmp.ne.s32.totalorder %s128, %s129
      %p141 = scmp.eq.s32.totalorder %s30, 1
      %p142 = por %p140, %p141
      %p144 = scmp.ne.s32.totalorder %s129, %s143
      %p145 = scmp.eq.s32.totalorder %s30, 0
      %p146 = por %p144, %p145
      %s148 = sadd.s32 %s147, 1
      %p151 = scmp.eq.s32.totalorder %s24, 1
      %p152 = scmp.ne.s32.totalorder %s147, %s149
      %p153 = scmp.eq.s32.totalorder %s24, 0
      %p154 = por %p152, %p153
      %p155 = scmp.ne.s32.totalorder %s147, %s149
      %p156 = scmp.eq.s32.totalorder %s29, 1
      %p157 = por %p155, %p156
      %p158 = scmp.ne.s32.totalorder %s149, %s150
      %p159 = scmp.eq.s32.totalorder %s29, 0
      %p160 = por %p158, %p159
      %p161 = scmp.ne.s32.totalorder %s149, %s150
      %p162 = scmp.eq.s32.totalorder %s30, 1
      %p163 = por %p161, %p162
      %p165 = scmp.ne.s32.totalorder %s150, %s164
      %p166 = scmp.eq.s32.totalorder %s30, 0
      %p167 = por %p165, %p166
      %s169 = sadd.s32 %s168, 1
      %p172 = scmp.eq.s32.totalorder %s24, 1
      %p173 = scmp.ne.s32.totalorder %s168, %s170
      %p174 = scmp.eq.s32.totalorder %s24, 0
      %p175 = por %p173, %p174
      %p176 = scmp.ne.s32.totalorder %s168, %s170
      %p177 = scmp.eq.s32.totalorder %s29, 1
      %p178 = por %p176, %p177
      %p179 = scmp.ne.s32.totalorder %s170, %s171
      %p180 = scmp.eq.s32.totalorder %s29, 0
      %p181 = por %p179, %p180
      %p182 = scmp.ne.s32.totalorder %s170, %s171
      %p183 = scmp.eq.s32.totalorder %s30, 1
      %p184 = por %p182, %p183
      %p186 = scmp.ne.s32.totalorder %s171, %s185
      %p187 = scmp.eq.s32.totalorder %s30, 0
      %p188 = por %p186, %p187
      %s190 = sadd.s32 %s189, 1
      %p193 = scmp.eq.s32.totalorder %s24, 1
      %p194 = scmp.ne.s32.totalorder %s189, %s191
      %p195 = scmp.eq.s32.totalorder %s24, 0
      %p196 = por %p194, %p195
      %p197 = scmp.ne.s32.totalorder %s189, %s191
      %p198 = scmp.eq.s32.totalorder %s29, 1
      %p199 = por %p197, %p198
      %p200 = scmp.ne.s32.totalorder %s191, %s192
      %p201 = scmp.eq.s32.totalorder %s29, 0
      %p202 = por %p200, %p201
      %p203 = scmp.ne.s32.totalorder %s191, %s192
      %p204 = scmp.eq.s32.totalorder %s30, 1
      %p205 = por %p203, %p204
      %p207 = scmp.ne.s32.totalorder %s192, %s206
      %p208 = scmp.eq.s32.totalorder %s30, 0
      %p209 = por %p207, %p208
      %s210 = ssub.s32 %s24, %s31
      %p211 = scmp.eq.s32.totalorder %s210, 0
      %s213 = sadd.s32 %s212, 1
      %s214 = scalar_select %p211, %s212, %s213
      %p217 = pneg %p211
      %p218 = scmp.eq.s32.totalorder %s24, 1
      %p219 = por %p217, %p218
      %p220 = scmp.ne.s32.totalorder %s212, %s215
      %p221 = scmp.eq.s32.totalorder %s24, 0
      %p222 = por %p220, %p221
      %p223 = scmp.ne.s32.totalorder %s212, %s215
      %p224 = scmp.eq.s32.totalorder %s29, 1
      %p225 = por %p223, %p224
      %p226 = scmp.ne.s32.totalorder %s215, %s216
      %p227 = scmp.eq.s32.totalorder %s29, 0
      %p228 = por %p226, %p227
      %p229 = scmp.ne.s32.totalorder %s215, %s216
      %p230 = scmp.eq.s32.totalorder %s30, 1
      %p231 = por %p229, %p230
      %p233 = scmp.ne.s32.totalorder %s216, %s232
      %p234 = scmp.eq.s32.totalorder %s30, 0
      %p235 = por %p233, %p234
      %p236 = scmp.le.s32.totalorder 1, %s24
      %p237 = scmp.lt.s32.totalorder %s24, 3
      %p238 = pnand %p236, %p237
      %p239 = pneg %p238
      // Predicated region
      $region9: #{tpu_custom_call.1} parent=5 // pred_check
        _
      $region10: #{tpu_custom_call.1} parent=5 // pred_check_branch
        %241 = sbr.rel (%p238) target = $region12
      $region11: #{tpu_custom_call.1} parent=5 // pred_region
        %s242 = ssub.s32 %s24, 1
        // Predicated region
        $region13: #{tpu_custom_call.1} parent=11 // pred_check
          %p243 = pneg %p97
        $region14: #{tpu_custom_call.1} parent=11 // pred_check_branch
          %245 = sbr.rel (%p243) target = $region16
        $region15: #{tpu_custom_call.1} parent=11 // pred_region
          %s247 = ssub.s32 2048, 2048
          %248 = vsyncadd [#allocation8], %s247
          %s249 = sshll.u32 [#allocation9], 4
          %s250 = int_to_ptr.vmem [resolvable:$true] %s249
          %255 = dma.hbm_to_vmem [thread:$0]  %s2, 2048, %s250, [#allocation8], 128, 128, 8
        $region16: #{tpu_custom_call.1} parent=11 // pred_fallthru
          _
        // Predicated region
        $region17: #{tpu_custom_call.1} parent=11 // pred_check
          %p256 = pneg %p118
        $region18: #{tpu_custom_call.1} parent=11 // pred_check_branch
          %258 = sbr.rel (%p256) target = $region20
        $region19: #{tpu_custom_call.1} parent=11 // pred_region
          %s260 = ssub.s32 2048, 2048
          %261 = vsyncadd [#allocation11], %s260
          %s262 = sshll.u32 [#allocation10], 4
          %s263 = int_to_ptr.vmem [resolvable:$true] %s262
          %268 = dma.hbm_to_vmem [thread:$0]  %s3, 2048, %s263, [#allocation11], 128, 128, 8
        $region20: #{tpu_custom_call.1} parent=11 // pred_fallthru
          _
        // Predicated region
        $region21: #{tpu_custom_call.1} parent=11 // pred_check
          %p269 = pneg %p139
        $region22: #{tpu_custom_call.1} parent=11 // pred_check_branch
          %271 = sbr.rel (%p269) target = $region24
        $region23: #{tpu_custom_call.1} parent=11 // pred_region
          %s273 = ssub.s32 2048, 2048
          %274 = vsyncadd [#allocation11], %s273
          %s275 = sshll.u32 [#allocation12], 4
          %s276 = int_to_ptr.vmem [resolvable:$true] %s275
          %281 = dma.hbm_to_vmem [thread:$0]  %s4, 2048, %s276, [#allocation11], 128, 128, 8
        $region24: #{tpu_custom_call.1} parent=11 // pred_fallthru
          _
        // Predicated region
        $region25: #{tpu_custom_call.1} parent=11 // pred_check
          %p282 = pneg %p160
        $region26: #{tpu_custom_call.1} parent=11 // pred_check_branch
          %284 = sbr.rel (%p282) target = $region28
        $region27: #{tpu_custom_call.1} parent=11 // pred_region
          _
        $region28: #{tpu_custom_call.1} parent=11 // pred_fallthru
          _
        // Predicated region
        $region29: #{tpu_custom_call.1} parent=11 // pred_check
          %p285 = pneg %p181
        $region30: #{tpu_custom_call.1} parent=11 // pred_check_branch
          %287 = sbr.rel (%p285) target = $region32
        $region31: #{tpu_custom_call.1} parent=11 // pred_region
          _
        $region32: #{tpu_custom_call.1} parent=11 // pred_fallthru
          _
        // Predicated region
        $region33: #{tpu_custom_call.1} parent=11 // pred_check
          %p288 = pneg %p202
        $region34: #{tpu_custom_call.1} parent=11 // pred_check_branch
          %290 = sbr.rel (%p288) target = $region36
        $region35: #{tpu_custom_call.1} parent=11 // pred_region
          _
        $region36: #{tpu_custom_call.1} parent=11 // pred_fallthru
          _
      $region12: #{tpu_custom_call.1} parent=5 // pred_fallthru
        _
      %p291 = scmp.lt.s32.totalorder %s24, 2
      // Predicated region
      $region37: #{tpu_custom_call.1} parent=5 // pred_check
        %p292 = pneg %p291
      $region38: #{tpu_custom_call.1} parent=5 // pred_check_branch
        %294 = sbr.rel (%p292) target = $region40
      $region39: #{tpu_custom_call.1} parent=5 // pred_region
        // Predicated region
        $region41: #{tpu_custom_call.1} parent=39 // pred_check
          %p295 = pneg %p44
        $region42: #{tpu_custom_call.1} parent=39 // pred_check_branch
          %297 = sbr.rel (%p295) target = $region44
        $region43: #{tpu_custom_call.1} parent=39 // pred_region
          %s298 = sand.u32 %s34, 1
          %s299 = scalar_lea.sflag [#allocation5], %s298
          %s300 = sand.u32 %s34, 1
          %s301 = smul.addr %s300, 40
          %s302 = scalar_lea.vmem [#allocation4], %s301
          %s304 = ssub.s32 640, 640
          %305 = vsyncadd %s299, %s304
          %s306 = smul.addr %s24, 5
          %s307 = smul.addr %s306, 128
          %s308 = scalar_lea.hbm %s0, %s307
          %s309 = sshll.u32 %s302, 4
          %s310 = int_to_ptr.vmem [resolvable:$true] %s309
          %315 = dma.hbm_to_vmem [thread:$0]  %s308, 640, %s310, %s299, 128, 128, 8
        $region44: #{tpu_custom_call.1} parent=39 // pred_fallthru
          _
        // Predicated region
        $region45: #{tpu_custom_call.1} parent=39 // pred_check
          %p316 = pneg %p70
        $region46: #{tpu_custom_call.1} parent=39 // pred_check_branch
          %318 = sbr.rel (%p316) target = $region48
        $region47: #{tpu_custom_call.1} parent=39 // pred_region
          %s319 = sand.u32 %s24, 1
          %s320 = scalar_lea.sflag [#allocation8], %s319
          %s321 = sand.u32 %s60, 1
          %s322 = smul.addr %s321, 208
          %s323 = scalar_lea.vmem [#allocation7], %s322
          %s325 = ssub.s32 3328, 3328
          %326 = vsyncadd %s320, %s325
          %s327 = smul.addr %s24, 26
          %s328 = smul.addr %s327, 128
          %s329 = scalar_lea.hbm %s1, %s328
          %s330 = sshll.u32 %s323, 4
          %s331 = int_to_ptr.vmem [resolvable:$true] %s330
          %336 = dma.hbm_to_vmem [thread:$0]  %s329, 3328, %s331, %s320, 128, 128, 8
        $region48: #{tpu_custom_call.1} parent=39 // pred_fallthru
          _
      $region40: #{tpu_custom_call.1} parent=5 // pred_fallthru
        _
      %p337 = scmp.le.s32.totalorder 1, %s24
      %p338 = scmp.lt.s32.totalorder %s24, 3
      %p339 = pnand %p337, %p338
      %p340 = pneg %p339
      // Predicated region
      $region49: #{tpu_custom_call.1} parent=5 // pred_check
        _
      $region50: #{tpu_custom_call.1} parent=5 // pred_check_branch
        %342 = sbr.rel (%p339) target = $region52
      $region51: #{tpu_custom_call.1} parent=5 // pred_region
        %s343 = ssub.s32 %s24, 1
        %s344 = sand.u32 %s37, 1
        %s345 = scalar_lea.sflag [#allocation5], %s344
        %s346 = sand.u32 %s37, 1
        %s347 = smul.addr %s346, 40
        %s348 = scalar_lea.vmem [#allocation4], %s347
        // Predicated region
        $region53: #{tpu_custom_call.1} parent=51 // pred_check
          %p349 = pneg %p50
        $region54: #{tpu_custom_call.1} parent=51 // pred_check_branch
          %351 = sbr.rel (%p349) target = $region56
        $region55: #{tpu_custom_call.1} parent=51 // pred_region
          %352 = dma.done %s345, 640
        $region56: #{tpu_custom_call.1} parent=51 // pred_fallthru
          _
        %s353 = sand.u32 %s29, 1
        %s354 = scalar_lea.sflag [#allocation8], %s353
        %s355 = sand.u32 %s63, 1
        %s356 = smul.addr %s355, 208
        %s357 = scalar_lea.vmem [#allocation7], %s356
        // Predicated region
        $region57: #{tpu_custom_call.1} parent=51 // pred_check
          %p358 = pneg %p76
        $region58: #{tpu_custom_call.1} parent=51 // pred_check_branch
          %360 = sbr.rel (%p358) target = $region60
        $region59: #{tpu_custom_call.1} parent=51 // pred_region
          %361 = dma.done %s354, 3328
        $region60: #{tpu_custom_call.1} parent=51 // pred_fallthru
          _
        // Predicated region
        $region61: #{tpu_custom_call.1} parent=51 // pred_check
          %p362 = pneg %p97
        $region62: #{tpu_custom_call.1} parent=51 // pred_check_branch
          %364 = sbr.rel (%p362) target = $region64
        $region63: #{tpu_custom_call.1} parent=51 // pred_region
          %365 = dma.done [#allocation8], 2048
        $region64: #{tpu_custom_call.1} parent=51 // pred_fallthru
          _
        // Predicated region
        $region65: #{tpu_custom_call.1} parent=51 // pred_check
          %p366 = pneg %p118
        $region66: #{tpu_custom_call.1} parent=51 // pred_check_branch
          %368 = sbr.rel (%p366) target = $region68
        $region67: #{tpu_custom_call.1} parent=51 // pred_region
          %369 = dma.done [#allocation11], 2048
        $region68: #{tpu_custom_call.1} parent=51 // pred_fallthru
          _
        // Predicated region
        $region69: #{tpu_custom_call.1} parent=51 // pred_check
          %p370 = pneg %p139
        $region70: #{tpu_custom_call.1} parent=51 // pred_check_branch
          %372 = sbr.rel (%p370) target = $region72
        $region71: #{tpu_custom_call.1} parent=51 // pred_region
          %373 = dma.done [#allocation11], 2048
        $region72: #{tpu_custom_call.1} parent=51 // pred_fallthru
          _
        %s374 = sand.u32 %s37, 1
        %s375 = scalar_lea.sflag [#allocation5], %s374
        %s376 = sand.u32 %s37, 1
        %s377 = smul.addr %s376, 40
        %s378 = scalar_lea.vmem [#allocation4], %s377
        %p379 = pneg %p50
        %p380 = pneg %p47
        %s381 = sand.u32 %s29, 1
        %s382 = scalar_lea.sflag [#allocation8], %s381
        %s383 = sand.u32 %s63, 1
        %s384 = smul.addr %s383, 208
        %s385 = scalar_lea.vmem [#allocation7], %s384
        %p386 = pneg %p76
        %p387 = pneg %p73
        %p388 = pneg %p97
        %p389 = pneg %p94
        %p390 = pneg %p118
        %p391 = pneg %p115
        %p392 = pneg %p139
        %p393 = pneg %p136
        %p394 = pneg %p160
        %p395 = pneg %p157
        %p396 = pneg %p181
        %p397 = pneg %p178
        %p398 = pneg %p202
        %p399 = pneg %p199
        %p400 = pneg %p228
        %p401 = pneg %p225
        %s402 = sand.u32 %s215, 1
        %s403 = scalar_lea.sflag [#allocation6], %s402
        %s404 = sand.u32 %s215, 1
        %s405 = smul.addr %s404, 128
        %s406 = scalar_lea.vmem [#allocation13], %s405
        %v407 = vld [vmem:[%s348] sm:$0xff]
        %v408 = vld [vmem:[%s348 + $0x8] sm:$0xff]
        %v409 = vld [vmem:[%s348 + $0x10] sm:$0xff]
        %v410 = vld [vmem:[%s348 + $0x18] sm:$0xff]
        %v411 = vld [vmem:[%s348 + $0x20] sm:$0xff]
        %v412 = vld [vmem:[#allocation9] sm:$0xff]
        %v413 = vld [vmem:[#allocation9 + $0x8] sm:$0xff]
        %v414 = vld [vmem:[#allocation9 + $0x10] sm:$0xff]
        %v415 = vld [vmem:[#allocation9 + $0x18] sm:$0xff]
        %v416 = vld [vmem:[#allocation9 + $0x20] sm:$0xff]
        %v417 = vld [vmem:[#allocation9 + $0x28] sm:$0xff]
        %v418 = vld [vmem:[#allocation9 + $0x30] sm:$0xff]
        %v419 = vld [vmem:[#allocation9 + $0x38] sm:$0xff]
        %v420 = vld [vmem:[#allocation9 + $0x40] sm:$0xff]
        %v421 = vld [vmem:[#allocation9 + $0x48] sm:$0xff]
        %v422 = vld [vmem:[#allocation9 + $0x50] sm:$0xff]
        %v423 = vld [vmem:[#allocation9 + $0x58] sm:$0xff]
        %v424 = vld [vmem:[#allocation9 + $0x60] sm:$0xff]
        %v425 = vld [vmem:[#allocation9 + $0x68] sm:$0xff]
        %v426 = vld [vmem:[#allocation9 + $0x70] sm:$0xff]
        %v427 = vld [vmem:[#allocation9 + $0x78] sm:$0xff]
        %v428 = vld [vmem:[%s5] sm:$0x1]
        %v430 = vlaneseq
        %v431 = vshrl.u32 %v430, 7
        %v432 = vsub.s32 0, %v431
        %v433 = vrot.slane %v428, %v432
        %435 = vmatprep.subr.mxu0 0.0
        %436 = vmatpush1.msra.mxu0 %v427
        %437 = vmatprep.subr.mxu0 0.0
        %438 = vmatpush1.msra.mxu0 %v426
        %439 = vmatprep.subr.mxu0 0.0
        %440 = vmatpush1.msra.mxu0 %v425
        %441 = vmatprep.subr.mxu0 0.0
        %442 = vmatpush1.msra.mxu0 %v424
        %443 = vmatprep.subr.mxu0 0.0
        %444 = vmatpush1.msra.mxu0 %v423
        %445 = vmatprep.subr.mxu0 0.0
        %446 = vmatpush1.msra.mxu0 %v422
        %447 = vmatprep.subr.mxu0 0.0
        %448 = vmatpush1.msra.mxu0 %v421
        %449 = vmatprep.subr.mxu0 0.0
        %450 = vmatpush1.msra.mxu0 %v420
        %451 = vmatprep.subr.mxu0 0.0
        %452 = vmatpush1.msra.mxu0 %v419
        %453 = vmatprep.subr.mxu0 0.0
        %454 = vmatpush1.msra.mxu0 %v418
        %455 = vmatprep.subr.mxu0 0.0
        %456 = vmatpush1.msra.mxu0 %v417
        %457 = vmatprep.subr.mxu0 0.0
        %458 = vmatpush1.msra.mxu0 %v416
        %459 = vmatprep.subr.mxu0 0.0
        %460 = vmatpush1.msra.mxu0 %v415
        %461 = vmatprep.subr.mxu0 0.0
        %462 = vmatpush1.msra.mxu0 %v414
        %463 = vmatprep.subr.mxu0 0.0
        %464 = vmatpush1.msra.mxu0 %v413
        %465 = vmatprep.subr.mxu0 0.0
        %466 = vmatpush1.msra.mxu0 %v412
        %467 = vmatprep.subr.mxu0 0.0
        %468 = vmatpush2.msra.mxu0 0.0
        %469 = vmatprep.subr.mxu0 0.0
        %470 = vmatpush2.msra.mxu0 0.0
        %471 = vmatprep.subr.mxu0 0.0
        %472 = vmatpush2.msra.mxu0 0.0
        %473 = vmatprep.subr.mxu0 0.0
        %474 = vmatpush2.msra.mxu0 0.0
        %475 = vmatprep.subr.mxu0 0.0
        %476 = vmatpush2.msra.mxu0 0.0
        %477 = vmatprep.subr.mxu0 0.0
        %478 = vmatpush2.msra.mxu0 0.0
        %479 = vmatprep.subr.mxu0 0.0
        %480 = vmatpush2.msra.mxu0 0.0
        %481 = vmatprep.subr.mxu0 0.0
        %482 = vmatpush2.msra.mxu0 0.0
        %483 = vmatprep.subr.mxu0 0.0
        %484 = vmatpush2.msra.mxu0 0.0
        %485 = vmatprep.subr.mxu0 0.0
        %486 = vmatpush2.msra.mxu0 0.0
        %487 = vmatprep.subr.mxu0 0.0
        %488 = vmatpush2.msra.mxu0 0.0
        %489 = vmatprep.subr.mxu0 0.0
        %490 = vmatpush2.msra.mxu0 0.0
        %491 = vmatprep.subr.mxu0 0.0
        %492 = vmatpush2.msra.mxu0 0.0
        %493 = vmatprep.subr.mxu0 0.0
        %494 = vmatpush2.msra.mxu0 0.0
        %495 = vmatprep.subr.mxu0 0.0
        %496 = vmatpush2.msra.mxu0 0.0
        %497 = vmatprep.subr.mxu0 0.0
        %498 = vmatpush2.msra.mxu0 0.0
        %499 = vmatprep.mubr.f32.mxu0 0.0
        %500 = vmatmul.mubr.f32.gmra.mxu0 %v407
        %v501 = vpop.f32.mrf.mxu0
        %v502 = vadd.f32 %v433, %v501
        %v503 = vpop.f32.mrf.mxu0
        %504 = vmatprep.mubr.f32.mxu0 0.0
        %505 = vmatmul.mubr.f32.gmra.mxu0 %v408
        %v506 = vpop.f32.mrf.mxu0
        %v507 = vadd.f32 %v433, %v506
        %v508 = vpop.f32.mrf.mxu0
        %509 = vmatprep.mubr.f32.mxu0 0.0
        %510 = vmatmul.mubr.f32.gmra.mxu0 %v409
        %v511 = vpop.f32.mrf.mxu0
        %v512 = vadd.f32 %v433, %v511
        %v513 = vpop.f32.mrf.mxu0
        %514 = vmatprep.mubr.f32.mxu0 0.0
        %515 = vmatmul.mubr.f32.gmra.mxu0 %v410
        %v516 = vpop.f32.mrf.mxu0
        %v517 = vadd.f32 %v433, %v516
        %v518 = vpop.f32.mrf.mxu0
        %519 = vmatprep.mubr.f32.mxu0 0.0
        %520 = vmatmul.mubr.f32.gmra.mxu0 %v411
        %v521 = vpop.f32.mrf.mxu0
        %v522 = vadd.f32 %v433, %v521
        %v523 = vpop.f32.mrf.mxu0
        %524 = vdwg.mxu0
        %v525 = vmax.f32 %v502, 0.0
        %v526 = vmax.f32 %v507, 0.0
        %v527 = vmax.f32 %v512, 0.0
        %v528 = vmax.f32 %v517, 0.0
        %v529 = vmax.f32 %v522, 0.0
        %530 = vst [vmem:[#allocation3] sm:$0xff] %v525
        %531 = vst [vmem:[#allocation3 + $0x8] sm:$0xff] %v526
        %532 = vst [vmem:[#allocation3 + $0x10] sm:$0xff] %v527
        %533 = vst [vmem:[#allocation3 + $0x18] sm:$0xff] %v528
        %534 = vst [vmem:[#allocation3 + $0x20] sm:$0xff] %v529
        %v535 = vld [vmem:[%s357] sm:$0xff]
        %v536 = vld [vmem:[%s357 + $0x8] sm:$0xff]
        %v537 = vld [vmem:[%s357 + $0x10] sm:$0xff]
        %v538 = vld [vmem:[%s357 + $0x18] sm:$0xff]
        %v539 = vld [vmem:[%s357 + $0x20] sm:$0xff]
        %v540 = vld [vmem:[%s357 + $0x28] sm:$0xff]
        %v541 = vld [vmem:[%s357 + $0x30] sm:$0xff]
        %v542 = vld [vmem:[%s357 + $0x38] sm:$0xff]
        %v543 = vld [vmem:[%s357 + $0x40] sm:$0xff]
        %v544 = vld [vmem:[%s357 + $0x48] sm:$0xff]
        %v545 = vld [vmem:[%s357 + $0x50] sm:$0xff]
        %v546 = vld [vmem:[%s357 + $0x58] sm:$0xff]
        %v547 = vld [vmem:[%s357 + $0x60] sm:$0xff]
        %v548 = vld [vmem:[%s357 + $0x68] sm:$0xff]
        %v549 = vld [vmem:[%s357 + $0x70] sm:$0xff]
        %v550 = vld [vmem:[%s357 + $0x78] sm:$0xff]
        %v551 = vld [vmem:[%s357 + $0x80] sm:$0xff]
        %v552 = vld [vmem:[%s357 + $0x88] sm:$0xff]
        %v553 = vld [vmem:[%s357 + $0x90] sm:$0xff]
        %v554 = vld [vmem:[%s357 + $0x98] sm:$0xff]
        %v555 = vld [vmem:[%s357 + $0xa0] sm:$0xff]
        %v556 = vld [vmem:[%s357 + $0xa8] sm:$0xff]
        %v557 = vld [vmem:[%s357 + $0xb0] sm:$0xff]
        %v558 = vld [vmem:[%s357 + $0xb8] sm:$0xff]
        %v559 = vld [vmem:[%s357 + $0xc0] sm:$0xff]
        %v560 = vld [vmem:[%s357 + $0xc8] sm:$0xff]
        %v561 = vld [vmem:[#allocation10] sm:$0xff]
        %v562 = vld [vmem:[#allocation10 + $0x8] sm:$0xff]
        %v563 = vld [vmem:[#allocation10 + $0x10] sm:$0xff]
        %v564 = vld [vmem:[#allocation10 + $0x18] sm:$0xff]
        %v565 = vld [vmem:[#allocation10 + $0x20] sm:$0xff]
        %v566 = vld [vmem:[#allocation10 + $0x28] sm:$0xff]
        %v567 = vld [vmem:[#allocation10 + $0x30] sm:$0xff]
        %v568 = vld [vmem:[#allocation10 + $0x38] sm:$0xff]
        %v569 = vld [vmem:[#allocation10 + $0x40] sm:$0xff]
        %v570 = vld [vmem:[#allocation10 + $0x48] sm:$0xff]
        %v571 = vld [vmem:[#allocation10 + $0x50] sm:$0xff]
        %v572 = vld [vmem:[#allocation10 + $0x58] sm:$0xff]
        %v573 = vld [vmem:[#allocation10 + $0x60] sm:$0xff]
        %v574 = vld [vmem:[#allocation10 + $0x68] sm:$0xff]
        %v575 = vld [vmem:[#allocation10 + $0x70] sm:$0xff]
        %v576 = vld [vmem:[#allocation10 + $0x78] sm:$0xff]
        %v577 = vld [vmem:[%s6] sm:$0x1]
        %v579 = vlaneseq
        %v580 = vshrl.u32 %v579, 7
        %v581 = vsub.s32 0, %v580
        %v582 = vrot.slane %v577, %v581
        %584 = vmatprep.subr.mxu0 0.0
        %585 = vmatpush1.msra.mxu0 %v576
        %586 = vmatprep.subr.mxu0 0.0
        %587 = vmatpush1.msra.mxu0 %v575
        %588 = vmatprep.subr.mxu0 0.0
        %589 = vmatpush1.msra.mxu0 %v574
        %590 = vmatprep.subr.mxu0 0.0
        %591 = vmatpush1.msra.mxu0 %v573
        %592 = vmatprep.subr.mxu0 0.0
        %593 = vmatpush1.msra.mxu0 %v572
        %594 = vmatprep.subr.mxu0 0.0
        %595 = vmatpush1.msra.mxu0 %v571
        %596 = vmatprep.subr.mxu0 0.0
        %597 = vmatpush1.msra.mxu0 %v570
        %598 = vmatprep.subr.mxu0 0.0
        %599 = vmatpush1.msra.mxu0 %v569
        %600 = vmatprep.subr.mxu0 0.0
        %601 = vmatpush1.msra.mxu0 %v568
        %602 = vmatprep.subr.mxu0 0.0
        %603 = vmatpush1.msra.mxu0 %v567
        %604 = vmatprep.subr.mxu0 0.0
        %605 = vmatpush1.msra.mxu0 %v566
        %606 = vmatprep.subr.mxu0 0.0
        %607 = vmatpush1.msra.mxu0 %v565
        %608 = vmatprep.subr.mxu0 0.0
        %609 = vmatpush1.msra.mxu0 %v564
        %610 = vmatprep.subr.mxu0 0.0
        %611 = vmatpush1.msra.mxu0 %v563
        %612 = vmatprep.subr.mxu0 0.0
        %613 = vmatpush1.msra.mxu0 %v562
        %614 = vmatprep.subr.mxu0 0.0
        %615 = vmatpush1.msra.mxu0 %v561
        %616 = vmatprep.subr.mxu0 0.0
        %617 = vmatpush2.msra.mxu0 0.0
        %618 = vmatprep.subr.mxu0 0.0
        %619 = vmatpush2.msra.mxu0 0.0
        %620 = vmatprep.subr.mxu0 0.0
        %621 = vmatpush2.msra.mxu0 0.0
        %622 = vmatprep.subr.mxu0 0.0
        %623 = vmatpush2.msra.mxu0 0.0
        %624 = vmatprep.subr.mxu0 0.0
        %625 = vmatpush2.msra.mxu0 0.0
        %626 = vmatprep.subr.mxu0 0.0
        %627 = vmatpush2.msra.mxu0 0.0
        %628 = vmatprep.subr.mxu0 0.0
        %629 = vmatpush2.msra.mxu0 0.0
        %630 = vmatprep.subr.mxu0 0.0
        %631 = vmatpush2.msra.mxu0 0.0
        %632 = vmatprep.subr.mxu0 0.0
        %633 = vmatpush2.msra.mxu0 0.0
        %634 = vmatprep.subr.mxu0 0.0
        %635 = vmatpush2.msra.mxu0 0.0
        %636 = vmatprep.subr.mxu0 0.0
        %637 = vmatpush2.msra.mxu0 0.0
        %638 = vmatprep.subr.mxu0 0.0
        %639 = vmatpush2.msra.mxu0 0.0
        %640 = vmatprep.subr.mxu0 0.0
        %641 = vmatpush2.msra.mxu0 0.0
        %642 = vmatprep.subr.mxu0 0.0
        %643 = vmatpush2.msra.mxu0 0.0
        %644 = vmatprep.subr.mxu0 0.0
        %645 = vmatpush2.msra.mxu0 0.0
        %646 = vmatprep.subr.mxu0 0.0
        %647 = vmatpush2.msra.mxu0 0.0
        %648 = vmatprep.mubr.f32.mxu0 0.0
        %649 = vmatmul.mubr.f32.gmra.mxu0 %v535
        %v650 = vpop.f32.mrf.mxu0
        %v651 = vadd.f32 %v582, %v650
        %v652 = vpop.f32.mrf.mxu0
        %653 = vmatprep.mubr.f32.mxu0 0.0
        %654 = vmatmul.mubr.f32.gmra.mxu0 %v536
        %v655 = vpop.f32.mrf.mxu0
        %v656 = vadd.f32 %v582, %v655
        %v657 = vpop.f32.mrf.mxu0
        %658 = vmatprep.mubr.f32.mxu0 0.0
        %659 = vmatmul.mubr.f32.gmra.mxu0 %v537
        %v660 = vpop.f32.mrf.mxu0
        %v661 = vadd.f32 %v582, %v660
        %v662 = vpop.f32.mrf.mxu0
        %663 = vmatprep.mubr.f32.mxu0 0.0
        %664 = vmatmul.mubr.f32.gmra.mxu0 %v538
        %v665 = vpop.f32.mrf.mxu0
        %v666 = vadd.f32 %v582, %v665
        %v667 = vpop.f32.mrf.mxu0
        %668 = vmatprep.mubr.f32.mxu0 0.0
        %669 = vmatmul.mubr.f32.gmra.mxu0 %v539
        %v670 = vpop.f32.mrf.mxu0
        %v671 = vadd.f32 %v582, %v670
        %v672 = vpop.f32.mrf.mxu0
        %673 = vmatprep.mubr.f32.mxu0 0.0
        %674 = vmatmul.mubr.f32.gmra.mxu0 %v540
        %v675 = vpop.f32.mrf.mxu0
        %v676 = vadd.f32 %v582, %v675
        %v677 = vpop.f32.mrf.mxu0
        %678 = vmatprep.mubr.f32.mxu0 0.0
        %679 = vmatmul.mubr.f32.gmra.mxu0 %v541
        %v680 = vpop.f32.mrf.mxu0
        %v681 = vadd.f32 %v582, %v680
        %v682 = vpop.f32.mrf.mxu0
        %683 = vmatprep.mubr.f32.mxu0 0.0
        %684 = vmatmul.mubr.f32.gmra.mxu0 %v542
        %v685 = vpop.f32.mrf.mxu0
        %v686 = vadd.f32 %v582, %v685
        %v687 = vpop.f32.mrf.mxu0
        %688 = vmatprep.mubr.f32.mxu0 0.0
        %689 = vmatmul.mubr.f32.gmra.mxu0 %v543
        %v690 = vpop.f32.mrf.mxu0
        %v691 = vadd.f32 %v582, %v690
        %v692 = vpop.f32.mrf.mxu0
        %693 = vmatprep.mubr.f32.mxu0 0.0
        %694 = vmatmul.mubr.f32.gmra.mxu0 %v544
        %v695 = vpop.f32.mrf.mxu0
        %v696 = vadd.f32 %v582, %v695
        %v697 = vpop.f32.mrf.mxu0
        %698 = vmatprep.mubr.f32.mxu0 0.0
        %699 = vmatmul.mubr.f32.gmra.mxu0 %v545
        %v700 = vpop.f32.mrf.mxu0
        %v701 = vadd.f32 %v582, %v700
        %v702 = vpop.f32.mrf.mxu0
        %703 = vmatprep.mubr.f32.mxu0 0.0
        %704 = vmatmul.mubr.f32.gmra.mxu0 %v546
        %v705 = vpop.f32.mrf.mxu0
        %v706 = vadd.f32 %v582, %v705
        %v707 = vpop.f32.mrf.mxu0
        %708 = vmatprep.mubr.f32.mxu0 0.0
        %709 = vmatmul.mubr.f32.gmra.mxu0 %v547
        %v710 = vpop.f32.mrf.mxu0
        %v711 = vadd.f32 %v582, %v710
        %v712 = vpop.f32.mrf.mxu0
        %713 = vmatprep.mubr.f32.mxu0 0.0
        %714 = vmatmul.mubr.f32.gmra.mxu0 %v548
        %v715 = vpop.f32.mrf.mxu0
        %v716 = vadd.f32 %v582, %v715
        %v717 = vpop.f32.mrf.mxu0
        %718 = vmatprep.mubr.f32.mxu0 0.0
        %719 = vmatmul.mubr.f32.gmra.mxu0 %v549
        %v720 = vpop.f32.mrf.mxu0
        %v721 = vadd.f32 %v582, %v720
        %v722 = vpop.f32.mrf.mxu0
        %723 = vmatprep.mubr.f32.mxu0 0.0
        %724 = vmatmul.mubr.f32.gmra.mxu0 %v550
        %v725 = vpop.f32.mrf.mxu0
        %v726 = vadd.f32 %v582, %v725
        %v727 = vpop.f32.mrf.mxu0
        %728 = vmatprep.mubr.f32.mxu0 0.0
        %729 = vmatmul.mubr.f32.gmra.mxu0 %v551
        %v730 = vpop.f32.mrf.mxu0
        %v731 = vadd.f32 %v582, %v730
        %v732 = vpop.f32.mrf.mxu0
        %733 = vmatprep.mubr.f32.mxu0 0.0
        %734 = vmatmul.mubr.f32.gmra.mxu0 %v552
        %v735 = vpop.f32.mrf.mxu0
        %v736 = vadd.f32 %v582, %v735
        %v737 = vpop.f32.mrf.mxu0
        %738 = vmatprep.mubr.f32.mxu0 0.0
        %739 = vmatmul.mubr.f32.gmra.mxu0 %v553
        %v740 = vpop.f32.mrf.mxu0
        %v741 = vadd.f32 %v582, %v740
        %v742 = vpop.f32.mrf.mxu0
        %743 = vmatprep.mubr.f32.mxu0 0.0
        %744 = vmatmul.mubr.f32.gmra.mxu0 %v554
        %v745 = vpop.f32.mrf.mxu0
        %v746 = vadd.f32 %v582, %v745
        %v747 = vpop.f32.mrf.mxu0
        %748 = vmatprep.mubr.f32.mxu0 0.0
        %749 = vmatmul.mubr.f32.gmra.mxu0 %v555
        %v750 = vpop.f32.mrf.mxu0
        %v751 = vadd.f32 %v582, %v750
        %v752 = vpop.f32.mrf.mxu0
        %753 = vmatprep.mubr.f32.mxu0 0.0
        %754 = vmatmul.mubr.f32.gmra.mxu0 %v556
        %v755 = vpop.f32.mrf.mxu0
        %v756 = vadd.f32 %v582, %v755
        %v757 = vpop.f32.mrf.mxu0
        %758 = vmatprep.mubr.f32.mxu0 0.0
        %759 = vmatmul.mubr.f32.gmra.mxu0 %v557
        %v760 = vpop.f32.mrf.mxu0
        %v761 = vadd.f32 %v582, %v760
        %v762 = vpop.f32.mrf.mxu0
        %763 = vmatprep.mubr.f32.mxu0 0.0
        %764 = vmatmul.mubr.f32.gmra.mxu0 %v558
        %v765 = vpop.f32.mrf.mxu0
        %v766 = vadd.f32 %v582, %v765
        %v767 = vpop.f32.mrf.mxu0
        %768 = vmatprep.mubr.f32.mxu0 0.0
        %769 = vmatmul.mubr.f32.gmra.mxu0 %v559
        %v770 = vpop.f32.mrf.mxu0
        %v771 = vadd.f32 %v582, %v770
        %v772 = vpop.f32.mrf.mxu0
        %773 = vmatprep.mubr.f32.mxu0 0.0
        %774 = vmatmul.mubr.f32.gmra.mxu0 %v560
        %v775 = vpop.f32.mrf.mxu0
        %v776 = vadd.f32 %v582, %v775
        %v777 = vpop.f32.mrf.mxu0
        %778 = vdwg.mxu0
        %v779 = vmax.f32 %v651, 0.0
        %v780 = vmax.f32 %v656, 0.0
        %v781 = vmax.f32 %v661, 0.0
        %v782 = vmax.f32 %v666, 0.0
        %v783 = vmax.f32 %v671, 0.0
        %v784 = vmax.f32 %v676, 0.0
        %v785 = vmax.f32 %v681, 0.0
        %v786 = vmax.f32 %v686, 0.0
        %v787 = vmax.f32 %v691, 0.0
        %v788 = vmax.f32 %v696, 0.0
        %v789 = vmax.f32 %v701, 0.0
        %v790 = vmax.f32 %v706, 0.0
        %v791 = vmax.f32 %v711, 0.0
        %v792 = vmax.f32 %v716, 0.0
        %v793 = vmax.f32 %v721, 0.0
        %v794 = vmax.f32 %v726, 0.0
        %v795 = vmax.f32 %v731, 0.0
        %v796 = vmax.f32 %v736, 0.0
        %v797 = vmax.f32 %v741, 0.0
        %v798 = vmax.f32 %v746, 0.0
        %v799 = vmax.f32 %v751, 0.0
        %v800 = vmax.f32 %v756, 0.0
        %v801 = vmax.f32 %v761, 0.0
        %v802 = vmax.f32 %v766, 0.0
        %v803 = vmax.f32 %v771, 0.0
        %v804 = vmax.f32 %v776, 0.0
        %805 = vst [vmem:[#allocation2] sm:$0xff] %v779
        %806 = vst [vmem:[#allocation2 + $0x8] sm:$0xff] %v780
        %807 = vst [vmem:[#allocation2 + $0x10] sm:$0xff] %v781
        %808 = vst [vmem:[#allocation2 + $0x18] sm:$0xff] %v782
        %809 = vst [vmem:[#allocation2 + $0x20] sm:$0xff] %v783
        %810 = vst [vmem:[#allocation2 + $0x28] sm:$0xff] %v784
        %811 = vst [vmem:[#allocation2 + $0x30] sm:$0xff] %v785
        %812 = vst [vmem:[#allocation2 + $0x38] sm:$0xff] %v786
        %813 = vst [vmem:[#allocation2 + $0x40] sm:$0xff] %v787
        %814 = vst [vmem:[#allocation2 + $0x48] sm:$0xff] %v788
        %815 = vst [vmem:[#allocation2 + $0x50] sm:$0xff] %v789
        %816 = vst [vmem:[#allocation2 + $0x58] sm:$0xff] %v790
        %817 = vst [vmem:[#allocation2 + $0x60] sm:$0xff] %v791
        %818 = vst [vmem:[#allocation2 + $0x68] sm:$0xff] %v792
        %819 = vst [vmem:[#allocation2 + $0x70] sm:$0xff] %v793
        %820 = vst [vmem:[#allocation2 + $0x78] sm:$0xff] %v794
        %821 = vst [vmem:[#allocation2 + $0x80] sm:$0xff] %v795
        %822 = vst [vmem:[#allocation2 + $0x88] sm:$0xff] %v796
        %823 = vst [vmem:[#allocation2 + $0x90] sm:$0xff] %v797
        %824 = vst [vmem:[#allocation2 + $0x98] sm:$0xff] %v798
        %825 = vst [vmem:[#allocation2 + $0xa0] sm:$0xff] %v799
        %826 = vst [vmem:[#allocation2 + $0xa8] sm:$0xff] %v800
        %827 = vst [vmem:[#allocation2 + $0xb0] sm:$0xff] %v801
        %828 = vst [vmem:[#allocation2 + $0xb8] sm:$0xff] %v802
        %829 = vst [vmem:[#allocation2 + $0xc0] sm:$0xff] %v803
        %830 = vst [vmem:[#allocation2 + $0xc8] sm:$0xff] %v804
        %v831 = vld [vmem:[#allocation2] sm:$0xff]
        %v832 = vld [vmem:[#allocation2 + $0x8] sm:$0xff]
        %v833 = vld [vmem:[#allocation2 + $0x10] sm:$0xff]
        %v834 = vld [vmem:[#allocation2 + $0x18] sm:$0xff]
        %v835 = vld [vmem:[#allocation2 + $0x20] sm:$0xff]
        %v836 = vld [vmem:[#allocation2 + $0x28] sm:$0xff]
        %v837 = vld [vmem:[#allocation2 + $0x30] sm:$0xff]
        %v838 = vld [vmem:[#allocation2 + $0x38] sm:$0xff]
        %v839 = vld [vmem:[#allocation2 + $0x40] sm:$0xff]
        %v840 = vld [vmem:[#allocation2 + $0x48] sm:$0xff]
        %v841 = vld [vmem:[#allocation2 + $0x50] sm:$0xff]
        %v842 = vld [vmem:[#allocation2 + $0x58] sm:$0xff]
        %v843 = vld [vmem:[#allocation2 + $0x60] sm:$0xff]
        %v844 = vld [vmem:[#allocation2 + $0x68] sm:$0xff]
        %v845 = vld [vmem:[#allocation2 + $0x70] sm:$0xff]
        %v846 = vld [vmem:[#allocation2 + $0x78] sm:$0xff]
        %v847 = vld [vmem:[#allocation3] sm:$0x1]
        %v848 = vlaneseq
        %v849 = vshrl.u32 %v848, 7
        %v850 = vsub.s32 0, %v849
        %v851 = vrot.slane %v847, %v850
        %v852 = vmul.f32 %v831, %v851
        %v853 = vmul.f32 %v832, %v851
        %v854 = vmul.f32 %v833, %v851
        %v855 = vmul.f32 %v834, %v851
        %v856 = vmul.f32 %v835, %v851
        %v857 = vmul.f32 %v836, %v851
        %v858 = vmul.f32 %v837, %v851
        %v859 = vmul.f32 %v838, %v851
        %v860 = vmul.f32 %v839, %v851
        %v861 = vmul.f32 %v840, %v851
        %v862 = vmul.f32 %v841, %v851
        %v863 = vmul.f32 %v842, %v851
        %v864 = vmul.f32 %v843, %v851
        %v865 = vmul.f32 %v844, %v851
        %v866 = vmul.f32 %v845, %v851
        %v867 = vmul.f32 %v846, %v851
        %v868 = vadd.f32 %v852, 0.0
        %v869 = vadd.f32 %v853, 0.0
        %v870 = vadd.f32 %v854, 0.0
        %v871 = vadd.f32 %v855, 0.0
        %v872 = vadd.f32 %v856, 0.0
        %v873 = vadd.f32 %v857, 0.0
        %v874 = vadd.f32 %v858, 0.0
        %v875 = vadd.f32 %v859, 0.0
        %v876 = vadd.f32 %v860, 0.0
        %v877 = vadd.f32 %v861, 0.0
        %v878 = vadd.f32 %v862, 0.0
        %v879 = vadd.f32 %v863, 0.0
        %v880 = vadd.f32 %v864, 0.0
        %v881 = vadd.f32 %v865, 0.0
        %v882 = vadd.f32 %v866, 0.0
        %v883 = vadd.f32 %v867, 0.0
        %v884 = vld [vmem:[#allocation2 + $0x1] sm:$0xff]
        %v885 = vld [vmem:[#allocation2 + $0x9] sm:$0xff]
        %v886 = vld [vmem:[#allocation2 + $0x11] sm:$0xff]
        %v887 = vld [vmem:[#allocation2 + $0x19] sm:$0xff]
        %v888 = vld [vmem:[#allocation2 + $0x21] sm:$0xff]
        %v889 = vld [vmem:[#allocation2 + $0x29] sm:$0xff]
        %v890 = vld [vmem:[#allocation2 + $0x31] sm:$0xff]
        %v891 = vld [vmem:[#allocation2 + $0x39] sm:$0xff]
        %v892 = vld [vmem:[#allocation2 + $0x41] sm:$0xff]
        %v893 = vld [vmem:[#allocation2 + $0x49] sm:$0xff]
        %v894 = vld [vmem:[#allocation2 + $0x51] sm:$0xff]
        %v895 = vld [vmem:[#allocation2 + $0x59] sm:$0xff]
        %v896 = vld [vmem:[#allocation2 + $0x61] sm:$0xff]
        %v897 = vld [vmem:[#allocation2 + $0x69] sm:$0xff]
        %v898 = vld [vmem:[#allocation2 + $0x71] sm:$0xff]
        %v899 = vld [vmem:[#allocation2 + $0x79] sm:$0xff]
        %v900 = vld [vmem:[#allocation3 + $0x1] sm:$0x1]
        %v901 = vlaneseq
        %v902 = vshrl.u32 %v901, 7
        %v903 = vsub.s32 0, %v902
        %v904 = vrot.slane %v900, %v903
        %v905 = vmul.f32 %v884, %v904
        %v906 = vmul.f32 %v885, %v904
        %v907 = vmul.f32 %v886, %v904
        %v908 = vmul.f32 %v887, %v904
        %v909 = vmul.f32 %v888, %v904
        %v910 = vmul.f32 %v889, %v904
        %v911 = vmul.f32 %v890, %v904
        %v912 = vmul.f32 %v891, %v904
        %v913 = vmul.f32 %v892, %v904
        %v914 = vmul.f32 %v893, %v904
        %v915 = vmul.f32 %v894, %v904
        %v916 = vmul.f32 %v895, %v904
        %v917 = vmul.f32 %v896, %v904
        %v918 = vmul.f32 %v897, %v904
        %v919 = vmul.f32 %v898, %v904
        %v920 = vmul.f32 %v899, %v904
        %v921 = vadd.f32 %v868, %v905
        %v922 = vadd.f32 %v869, %v906
        %v923 = vadd.f32 %v870, %v907
        %v924 = vadd.f32 %v871, %v908
        %v925 = vadd.f32 %v872, %v909
        %v926 = vadd.f32 %v873, %v910
        %v927 = vadd.f32 %v874, %v911
        %v928 = vadd.f32 %v875, %v912
        %v929 = vadd.f32 %v876, %v913
        %v930 = vadd.f32 %v877, %v914
        %v931 = vadd.f32 %v878, %v915
        %v932 = vadd.f32 %v879, %v916
        %v933 = vadd.f32 %v880, %v917
        %v934 = vadd.f32 %v881, %v918
        %v935 = vadd.f32 %v882, %v919
        %v936 = vadd.f32 %v883, %v920
        %v937 = vld [vmem:[#allocation2 + $0x2] sm:$0xff]
        %v938 = vld [vmem:[#allocation2 + $0xa] sm:$0xff]
        %v939 = vld [vmem:[#allocation2 + $0x12] sm:$0xff]
        %v940 = vld [vmem:[#allocation2 + $0x1a] sm:$0xff]
        %v941 = vld [vmem:[#allocation2 + $0x22] sm:$0xff]
        %v942 = vld [vmem:[#allocation2 + $0x2a] sm:$0xff]
        %v943 = vld [vmem:[#allocation2 + $0x32] sm:$0xff]
        %v944 = vld [vmem:[#allocation2 + $0x3a] sm:$0xff]
        %v945 = vld [vmem:[#allocation2 + $0x42] sm:$0xff]
        %v946 = vld [vmem:[#allocation2 + $0x4a] sm:$0xff]
        %v947 = vld [vmem:[#allocation2 + $0x52] sm:$0xff]
        %v948 = vld [vmem:[#allocation2 + $0x5a] sm:$0xff]
        %v949 = vld [vmem:[#allocation2 + $0x62] sm:$0xff]
        %v950 = vld [vmem:[#allocation2 + $0x6a] sm:$0xff]
        %v951 = vld [vmem:[#allocation2 + $0x72] sm:$0xff]
        %v952 = vld [vmem:[#allocation2 + $0x7a] sm:$0xff]
        %v953 = vld [vmem:[#allocation3 + $0x2] sm:$0x1]
        %v954 = vlaneseq
        %v955 = vshrl.u32 %v954, 7
        %v956 = vsub.s32 0, %v955
        %v957 = vrot.slane %v953, %v956
        %v958 = vmul.f32 %v937, %v957
        %v959 = vmul.f32 %v938, %v957
        %v960 = vmul.f32 %v939, %v957
        %v961 = vmul.f32 %v940, %v957
        %v962 = vmul.f32 %v941, %v957
        %v963 = vmul.f32 %v942, %v957
        %v964 = vmul.f32 %v943, %v957
        %v965 = vmul.f32 %v944, %v957
        %v966 = vmul.f32 %v945, %v957
        %v967 = vmul.f32 %v946, %v957
        %v968 = vmul.f32 %v947, %v957
        %v969 = vmul.f32 %v948, %v957
        %v970 = vmul.f32 %v949, %v957
        %v971 = vmul.f32 %v950, %v957
        %v972 = vmul.f32 %v951, %v957
        %v973 = vmul.f32 %v952, %v957
        %v974 = vadd.f32 %v921, %v958
        %v975 = vadd.f32 %v922, %v959
        %v976 = vadd.f32 %v923, %v960
        %v977 = vadd.f32 %v924, %v961
        %v978 = vadd.f32 %v925, %v962
        %v979 = vadd.f32 %v926, %v963
        %v980 = vadd.f32 %v927, %v964
        %v981 = vadd.f32 %v928, %v965
        %v982 = vadd.f32 %v929, %v966
        %v983 = vadd.f32 %v930, %v967
        %v984 = vadd.f32 %v931, %v968
        %v985 = vadd.f32 %v932, %v969
        %v986 = vadd.f32 %v933, %v970
        %v987 = vadd.f32 %v934, %v971
        %v988 = vadd.f32 %v935, %v972
        %v989 = vadd.f32 %v936, %v973
        %v990 = vld [vmem:[#allocation2 + $0x3] sm:$0xff]
        %v991 = vld [vmem:[#allocation2 + $0xb] sm:$0xff]
        %v992 = vld [vmem:[#allocation2 + $0x13] sm:$0xff]
        %v993 = vld [vmem:[#allocation2 + $0x1b] sm:$0xff]
        %v994 = vld [vmem:[#allocation2 + $0x23] sm:$0xff]
        %v995 = vld [vmem:[#allocation2 + $0x2b] sm:$0xff]
        %v996 = vld [vmem:[#allocation2 + $0x33] sm:$0xff]
        %v997 = vld [vmem:[#allocation2 + $0x3b] sm:$0xff]
        %v998 = vld [vmem:[#allocation2 + $0x43] sm:$0xff]
        %v999 = vld [vmem:[#allocation2 + $0x4b] sm:$0xff]
        %v1000 = vld [vmem:[#allocation2 + $0x53] sm:$0xff]
        %v1001 = vld [vmem:[#allocation2 + $0x5b] sm:$0xff]
        %v1002 = vld [vmem:[#allocation2 + $0x63] sm:$0xff]
        %v1003 = vld [vmem:[#allocation2 + $0x6b] sm:$0xff]
        %v1004 = vld [vmem:[#allocation2 + $0x73] sm:$0xff]
        %v1005 = vld [vmem:[#allocation2 + $0x7b] sm:$0xff]
        %v1006 = vld [vmem:[#allocation3 + $0x3] sm:$0x1]
        %v1007 = vlaneseq
        %v1008 = vshrl.u32 %v1007, 7
        %v1009 = vsub.s32 0, %v1008
        %v1010 = vrot.slane %v1006, %v1009
        %v1011 = vmul.f32 %v990, %v1010
        %v1012 = vmul.f32 %v991, %v1010
        %v1013 = vmul.f32 %v992, %v1010
        %v1014 = vmul.f32 %v993, %v1010
        %v1015 = vmul.f32 %v994, %v1010
        %v1016 = vmul.f32 %v995, %v1010
        %v1017 = vmul.f32 %v996, %v1010
        %v1018 = vmul.f32 %v997, %v1010
        %v1019 = vmul.f32 %v998, %v1010
        %v1020 = vmul.f32 %v999, %v1010
        %v1021 = vmul.f32 %v1000, %v1010
        %v1022 = vmul.f32 %v1001, %v1010
        %v1023 = vmul.f32 %v1002, %v1010
        %v1024 = vmul.f32 %v1003, %v1010
        %v1025 = vmul.f32 %v1004, %v1010
        %v1026 = vmul.f32 %v1005, %v1010
        %v1027 = vadd.f32 %v974, %v1011
        %v1028 = vadd.f32 %v975, %v1012
        %v1029 = vadd.f32 %v976, %v1013
        %v1030 = vadd.f32 %v977, %v1014
        %v1031 = vadd.f32 %v978, %v1015
        %v1032 = vadd.f32 %v979, %v1016
        %v1033 = vadd.f32 %v980, %v1017
        %v1034 = vadd.f32 %v981, %v1018
        %v1035 = vadd.f32 %v982, %v1019
        %v1036 = vadd.f32 %v983, %v1020
        %v1037 = vadd.f32 %v984, %v1021
        %v1038 = vadd.f32 %v985, %v1022
        %v1039 = vadd.f32 %v986, %v1023
        %v1040 = vadd.f32 %v987, %v1024
        %v1041 = vadd.f32 %v988, %v1025
        %v1042 = vadd.f32 %v989, %v1026
        %v1043 = vld [vmem:[#allocation2 + $0x4] sm:$0xff]
        %v1044 = vld [vmem:[#allocation2 + $0xc] sm:$0xff]
        %v1045 = vld [vmem:[#allocation2 + $0x14] sm:$0xff]
        %v1046 = vld [vmem:[#allocation2 + $0x1c] sm:$0xff]
        %v1047 = vld [vmem:[#allocation2 + $0x24] sm:$0xff]
        %v1048 = vld [vmem:[#allocation2 + $0x2c] sm:$0xff]
        %v1049 = vld [vmem:[#allocation2 + $0x34] sm:$0xff]
        %v1050 = vld [vmem:[#allocation2 + $0x3c] sm:$0xff]
        %v1051 = vld [vmem:[#allocation2 + $0x44] sm:$0xff]
        %v1052 = vld [vmem:[#allocation2 + $0x4c] sm:$0xff]
        %v1053 = vld [vmem:[#allocation2 + $0x54] sm:$0xff]
        %v1054 = vld [vmem:[#allocation2 + $0x5c] sm:$0xff]
        %v1055 = vld [vmem:[#allocation2 + $0x64] sm:$0xff]
        %v1056 = vld [vmem:[#allocation2 + $0x6c] sm:$0xff]
        %v1057 = vld [vmem:[#allocation2 + $0x74] sm:$0xff]
        %v1058 = vld [vmem:[#allocation2 + $0x7c] sm:$0xff]
        %v1059 = vld [vmem:[#allocation3 + $0x4] sm:$0x1]
        %v1060 = vlaneseq
        %v1061 = vshrl.u32 %v1060, 7
        %v1062 = vsub.s32 0, %v1061
        %v1063 = vrot.slane %v1059, %v1062
        %v1064 = vmul.f32 %v1043, %v1063
        %v1065 = vmul.f32 %v1044, %v1063
        %v1066 = vmul.f32 %v1045, %v1063
        %v1067 = vmul.f32 %v1046, %v1063
        %v1068 = vmul.f32 %v1047, %v1063
        %v1069 = vmul.f32 %v1048, %v1063
        %v1070 = vmul.f32 %v1049, %v1063
        %v1071 = vmul.f32 %v1050, %v1063
        %v1072 = vmul.f32 %v1051, %v1063
        %v1073 = vmul.f32 %v1052, %v1063
        %v1074 = vmul.f32 %v1053, %v1063
        %v1075 = vmul.f32 %v1054, %v1063
        %v1076 = vmul.f32 %v1055, %v1063
        %v1077 = vmul.f32 %v1056, %v1063
        %v1078 = vmul.f32 %v1057, %v1063
        %v1079 = vmul.f32 %v1058, %v1063
        %v1080 = vadd.f32 %v1027, %v1064
        %v1081 = vadd.f32 %v1028, %v1065
        %v1082 = vadd.f32 %v1029, %v1066
        %v1083 = vadd.f32 %v1030, %v1067
        %v1084 = vadd.f32 %v1031, %v1068
        %v1085 = vadd.f32 %v1032, %v1069
        %v1086 = vadd.f32 %v1033, %v1070
        %v1087 = vadd.f32 %v1034, %v1071
        %v1088 = vadd.f32 %v1035, %v1072
        %v1089 = vadd.f32 %v1036, %v1073
        %v1090 = vadd.f32 %v1037, %v1074
        %v1091 = vadd.f32 %v1038, %v1075
        %v1092 = vadd.f32 %v1039, %v1076
        %v1093 = vadd.f32 %v1040, %v1077
        %v1094 = vadd.f32 %v1041, %v1078
        %v1095 = vadd.f32 %v1042, %v1079
        %v1096 = vld [vmem:[#allocation2 + $0x5] sm:$0xff]
        %v1097 = vld [vmem:[#allocation2 + $0xd] sm:$0xff]
        %v1098 = vld [vmem:[#allocation2 + $0x15] sm:$0xff]
        %v1099 = vld [vmem:[#allocation2 + $0x1d] sm:$0xff]
        %v1100 = vld [vmem:[#allocation2 + $0x25] sm:$0xff]
        %v1101 = vld [vmem:[#allocation2 + $0x2d] sm:$0xff]
        %v1102 = vld [vmem:[#allocation2 + $0x35] sm:$0xff]
        %v1103 = vld [vmem:[#allocation2 + $0x3d] sm:$0xff]
        %v1104 = vld [vmem:[#allocation2 + $0x45] sm:$0xff]
        %v1105 = vld [vmem:[#allocation2 + $0x4d] sm:$0xff]
        %v1106 = vld [vmem:[#allocation2 + $0x55] sm:$0xff]
        %v1107 = vld [vmem:[#allocation2 + $0x5d] sm:$0xff]
        %v1108 = vld [vmem:[#allocation2 + $0x65] sm:$0xff]
        %v1109 = vld [vmem:[#allocation2 + $0x6d] sm:$0xff]
        %v1110 = vld [vmem:[#allocation2 + $0x75] sm:$0xff]
        %v1111 = vld [vmem:[#allocation2 + $0x7d] sm:$0xff]
        %v1112 = vld [vmem:[#allocation3 + $0x5] sm:$0x1]
        %v1113 = vlaneseq
        %v1114 = vshrl.u32 %v1113, 7
        %v1115 = vsub.s32 0, %v1114
        %v1116 = vrot.slane %v1112, %v1115
        %v1117 = vmul.f32 %v1096, %v1116
        %v1118 = vmul.f32 %v1097, %v1116
        %v1119 = vmul.f32 %v1098, %v1116
        %v1120 = vmul.f32 %v1099, %v1116
        %v1121 = vmul.f32 %v1100, %v1116
        %v1122 = vmul.f32 %v1101, %v1116
        %v1123 = vmul.f32 %v1102, %v1116
        %v1124 = vmul.f32 %v1103, %v1116
        %v1125 = vmul.f32 %v1104, %v1116
        %v1126 = vmul.f32 %v1105, %v1116
        %v1127 = vmul.f32 %v1106, %v1116
        %v1128 = vmul.f32 %v1107, %v1116
        %v1129 = vmul.f32 %v1108, %v1116
        %v1130 = vmul.f32 %v1109, %v1116
        %v1131 = vmul.f32 %v1110, %v1116
        %v1132 = vmul.f32 %v1111, %v1116
        %v1133 = vadd.f32 %v1080, %v1117
        %v1134 = vadd.f32 %v1081, %v1118
        %v1135 = vadd.f32 %v1082, %v1119
        %v1136 = vadd.f32 %v1083, %v1120
        %v1137 = vadd.f32 %v1084, %v1121
        %v1138 = vadd.f32 %v1085, %v1122
        %v1139 = vadd.f32 %v1086, %v1123
        %v1140 = vadd.f32 %v1087, %v1124
        %v1141 = vadd.f32 %v1088, %v1125
        %v1142 = vadd.f32 %v1089, %v1126
        %v1143 = vadd.f32 %v1090, %v1127
        %v1144 = vadd.f32 %v1091, %v1128
        %v1145 = vadd.f32 %v1092, %v1129
        %v1146 = vadd.f32 %v1093, %v1130
        %v1147 = vadd.f32 %v1094, %v1131
        %v1148 = vadd.f32 %v1095, %v1132
        %v1149 = vld [vmem:[#allocation2 + $0xe] sm:$0xff]
        %v1150 = vld [vmem:[#allocation2 + $0x16] sm:$0xff]
        %v1151 = vld [vmem:[#allocation2 + $0x1e] sm:$0xff]
        %v1152 = vld [vmem:[#allocation2 + $0x26] sm:$0xff]
        %v1153 = vld [vmem:[#allocation2 + $0x2e] sm:$0xff]
        %v1154 = vld [vmem:[#allocation2 + $0x36] sm:$0xff]
        %v1155 = vld [vmem:[#allocation2 + $0x3e] sm:$0xff]
        %v1156 = vld [vmem:[#allocation2 + $0x46] sm:$0xff]
        %v1157 = vld [vmem:[#allocation2 + $0x4e] sm:$0xff]
        %v1158 = vld [vmem:[#allocation2 + $0x56] sm:$0xff]
        %v1159 = vld [vmem:[#allocation2 + $0x5e] sm:$0xff]
        %v1160 = vld [vmem:[#allocation2 + $0x66] sm:$0xff]
        %v1161 = vld [vmem:[#allocation2 + $0x6e] sm:$0xff]
        %v1162 = vld [vmem:[#allocation2 + $0x76] sm:$0xff]
        %v1163 = vld [vmem:[#allocation2 + $0x7e] sm:$0xff]
        %v1164 = vld [vmem:[#allocation2 + $0x86] sm:$0xff]
        %v1165 = vld [vmem:[#allocation3 + $0x6] sm:$0x1]
        %v1166 = vlaneseq
        %v1167 = vshrl.u32 %v1166, 7
        %v1168 = vsub.s32 0, %v1167
        %v1169 = vrot.slane %v1165, %v1168
        %v1170 = vmul.f32 %v1149, %v1169
        %v1171 = vmul.f32 %v1150, %v1169
        %v1172 = vmul.f32 %v1151, %v1169
        %v1173 = vmul.f32 %v1152, %v1169
        %v1174 = vmul.f32 %v1153, %v1169
        %v1175 = vmul.f32 %v1154, %v1169
        %v1176 = vmul.f32 %v1155, %v1169
        %v1177 = vmul.f32 %v1156, %v1169
        %v1178 = vmul.f32 %v1157, %v1169
        %v1179 = vmul.f32 %v1158, %v1169
        %v1180 = vmul.f32 %v1159, %v1169
        %v1181 = vmul.f32 %v1160, %v1169
        %v1182 = vmul.f32 %v1161, %v1169
        %v1183 = vmul.f32 %v1162, %v1169
        %v1184 = vmul.f32 %v1163, %v1169
        %v1185 = vmul.f32 %v1164, %v1169
        %v1186 = vadd.f32 %v1133, %v1170
        %v1187 = vadd.f32 %v1134, %v1171
        %v1188 = vadd.f32 %v1135, %v1172
        %v1189 = vadd.f32 %v1136, %v1173
        %v1190 = vadd.f32 %v1137, %v1174
        %v1191 = vadd.f32 %v1138, %v1175
        %v1192 = vadd.f32 %v1139, %v1176
        %v1193 = vadd.f32 %v1140, %v1177
        %v1194 = vadd.f32 %v1141, %v1178
        %v1195 = vadd.f32 %v1142, %v1179
        %v1196 = vadd.f32 %v1143, %v1180
        %v1197 = vadd.f32 %v1144, %v1181
        %v1198 = vadd.f32 %v1145, %v1182
        %v1199 = vadd.f32 %v1146, %v1183
        %v1200 = vadd.f32 %v1147, %v1184
        %v1201 = vadd.f32 %v1148, %v1185
        %v1202 = vld [vmem:[#allocation2 + $0xf] sm:$0xff]
        %v1203 = vld [vmem:[#allocation2 + $0x17] sm:$0xff]
        %v1204 = vld [vmem:[#allocation2 + $0x1f] sm:$0xff]
        %v1205 = vld [vmem:[#allocation2 + $0x27] sm:$0xff]
        %v1206 = vld [vmem:[#allocation2 + $0x2f] sm:$0xff]
        %v1207 = vld [vmem:[#allocation2 + $0x37] sm:$0xff]
        %v1208 = vld [vmem:[#allocation2 + $0x3f] sm:$0xff]
        %v1209 = vld [vmem:[#allocation2 + $0x47] sm:$0xff]
        %v1210 = vld [vmem:[#allocation2 + $0x4f] sm:$0xff]
        %v1211 = vld [vmem:[#allocation2 + $0x57] sm:$0xff]
        %v1212 = vld [vmem:[#allocation2 + $0x5f] sm:$0xff]
        %v1213 = vld [vmem:[#allocation2 + $0x67] sm:$0xff]
        %v1214 = vld [vmem:[#allocation2 + $0x6f] sm:$0xff]
        %v1215 = vld [vmem:[#allocation2 + $0x77] sm:$0xff]
        %v1216 = vld [vmem:[#allocation2 + $0x7f] sm:$0xff]
        %v1217 = vld [vmem:[#allocation2 + $0x87] sm:$0xff]
        %v1218 = vld [vmem:[#allocation3 + $0x7] sm:$0x1]
        %v1219 = vlaneseq
        %v1220 = vshrl.u32 %v1219, 7
        %v1221 = vsub.s32 0, %v1220
        %v1222 = vrot.slane %v1218, %v1221
        %v1223 = vmul.f32 %v1202, %v1222
        %v1224 = vmul.f32 %v1203, %v1222
        %v1225 = vmul.f32 %v1204, %v1222
        %v1226 = vmul.f32 %v1205, %v1222
        %v1227 = vmul.f32 %v1206, %v1222
        %v1228 = vmul.f32 %v1207, %v1222
        %v1229 = vmul.f32 %v1208, %v1222
        %v1230 = vmul.f32 %v1209, %v1222
        %v1231 = vmul.f32 %v1210, %v1222
        %v1232 = vmul.f32 %v1211, %v1222
        %v1233 = vmul.f32 %v1212, %v1222
        %v1234 = vmul.f32 %v1213, %v1222
        %v1235 = vmul.f32 %v1214, %v1222
        %v1236 = vmul.f32 %v1215, %v1222
        %v1237 = vmul.f32 %v1216, %v1222
        %v1238 = vmul.f32 %v1217, %v1222
        %v1239 = vadd.f32 %v1186, %v1223
        %v1240 = vadd.f32 %v1187, %v1224
        %v1241 = vadd.f32 %v1188, %v1225
        %v1242 = vadd.f32 %v1189, %v1226
        %v1243 = vadd.f32 %v1190, %v1227
        %v1244 = vadd.f32 %v1191, %v1228
        %v1245 = vadd.f32 %v1192, %v1229
        %v1246 = vadd.f32 %v1193, %v1230
        %v1247 = vadd.f32 %v1194, %v1231
        %v1248 = vadd.f32 %v1195, %v1232
        %v1249 = vadd.f32 %v1196, %v1233
        %v1250 = vadd.f32 %v1197, %v1234
        %v1251 = vadd.f32 %v1198, %v1235
        %v1252 = vadd.f32 %v1199, %v1236
        %v1253 = vadd.f32 %v1200, %v1237
        %v1254 = vadd.f32 %v1201, %v1238
        %v1255 = vld [vmem:[#allocation2 + $0x80] sm:$0xff]
        %v1256 = vld [vmem:[#allocation2 + $0x88] sm:$0xff]
        %v1257 = vld [vmem:[#allocation3 + $0x8] sm:$0x1]
        %v1258 = vlaneseq
        %v1259 = vshrl.u32 %v1258, 7
        %v1260 = vsub.s32 0, %v1259
        %v1261 = vrot.slane %v1257, %v1260
        %v1262 = vmul.f32 %v833, %v1261
        %v1263 = vmul.f32 %v834, %v1261
        %v1264 = vmul.f32 %v835, %v1261
        %v1265 = vmul.f32 %v836, %v1261
        %v1266 = vmul.f32 %v837, %v1261
        %v1267 = vmul.f32 %v838, %v1261
        %v1268 = vmul.f32 %v839, %v1261
        %v1269 = vmul.f32 %v840, %v1261
        %v1270 = vmul.f32 %v841, %v1261
        %v1271 = vmul.f32 %v842, %v1261
        %v1272 = vmul.f32 %v843, %v1261
        %v1273 = vmul.f32 %v844, %v1261
        %v1274 = vmul.f32 %v845, %v1261
        %v1275 = vmul.f32 %v846, %v1261
        %v1276 = vmul.f32 %v1255, %v1261
        %v1277 = vmul.f32 %v1256, %v1261
        %v1278 = vadd.f32 %v1239, %v1262
        %v1279 = vadd.f32 %v1240, %v1263
        %v1280 = vadd.f32 %v1241, %v1264
        %v1281 = vadd.f32 %v1242, %v1265
        %v1282 = vadd.f32 %v1243, %v1266
        %v1283 = vadd.f32 %v1244, %v1267
        %v1284 = vadd.f32 %v1245, %v1268
        %v1285 = vadd.f32 %v1246, %v1269
        %v1286 = vadd.f32 %v1247, %v1270
        %v1287 = vadd.f32 %v1248, %v1271
        %v1288 = vadd.f32 %v1249, %v1272
        %v1289 = vadd.f32 %v1250, %v1273
        %v1290 = vadd.f32 %v1251, %v1274
        %v1291 = vadd.f32 %v1252, %v1275
        %v1292 = vadd.f32 %v1253, %v1276
        %v1293 = vadd.f32 %v1254, %v1277
        %v1294 = vld [vmem:[#allocation2 + $0x81] sm:$0xff]
        %v1295 = vld [vmem:[#allocation2 + $0x89] sm:$0xff]
        %v1296 = vld [vmem:[#allocation3 + $0x9] sm:$0x1]
        %v1297 = vlaneseq
        %v1298 = vshrl.u32 %v1297, 7
        %v1299 = vsub.s32 0, %v1298
        %v1300 = vrot.slane %v1296, %v1299
        %v1301 = vmul.f32 %v886, %v1300
        %v1302 = vmul.f32 %v887, %v1300
        %v1303 = vmul.f32 %v888, %v1300
        %v1304 = vmul.f32 %v889, %v1300
        %v1305 = vmul.f32 %v890, %v1300
        %v1306 = vmul.f32 %v891, %v1300
        %v1307 = vmul.f32 %v892, %v1300
        %v1308 = vmul.f32 %v893, %v1300
        %v1309 = vmul.f32 %v894, %v1300
        %v1310 = vmul.f32 %v895, %v1300
        %v1311 = vmul.f32 %v896, %v1300
        %v1312 = vmul.f32 %v897, %v1300
        %v1313 = vmul.f32 %v898, %v1300
        %v1314 = vmul.f32 %v899, %v1300
        %v1315 = vmul.f32 %v1294, %v1300
        %v1316 = vmul.f32 %v1295, %v1300
        %v1317 = vadd.f32 %v1278, %v1301
        %v1318 = vadd.f32 %v1279, %v1302
        %v1319 = vadd.f32 %v1280, %v1303
        %v1320 = vadd.f32 %v1281, %v1304
        %v1321 = vadd.f32 %v1282, %v1305
        %v1322 = vadd.f32 %v1283, %v1306
        %v1323 = vadd.f32 %v1284, %v1307
        %v1324 = vadd.f32 %v1285, %v1308
        %v1325 = vadd.f32 %v1286, %v1309
        %v1326 = vadd.f32 %v1287, %v1310
        %v1327 = vadd.f32 %v1288, %v1311
        %v1328 = vadd.f32 %v1289, %v1312
        %v1329 = vadd.f32 %v1290, %v1313
        %v1330 = vadd.f32 %v1291, %v1314
        %v1331 = vadd.f32 %v1292, %v1315
        %v1332 = vadd.f32 %v1293, %v1316
        %v1333 = vld [vmem:[#allocation2 + $0x82] sm:$0xff]
        %v1334 = vld [vmem:[#allocation2 + $0x8a] sm:$0xff]
        %v1335 = vld [vmem:[#allocation3 + $0xa] sm:$0x1]
        %v1336 = vlaneseq
        %v1337 = vshrl.u32 %v1336, 7
        %v1338 = vsub.s32 0, %v1337
        %v1339 = vrot.slane %v1335, %v1338
        %v1340 = vmul.f32 %v939, %v1339
        %v1341 = vmul.f32 %v940, %v1339
        %v1342 = vmul.f32 %v941, %v1339
        %v1343 = vmul.f32 %v942, %v1339
        %v1344 = vmul.f32 %v943, %v1339
        %v1345 = vmul.f32 %v944, %v1339
        %v1346 = vmul.f32 %v945, %v1339
        %v1347 = vmul.f32 %v946, %v1339
        %v1348 = vmul.f32 %v947, %v1339
        %v1349 = vmul.f32 %v948, %v1339
        %v1350 = vmul.f32 %v949, %v1339
        %v1351 = vmul.f32 %v950, %v1339
        %v1352 = vmul.f32 %v951, %v1339
        %v1353 = vmul.f32 %v952, %v1339
        %v1354 = vmul.f32 %v1333, %v1339
        %v1355 = vmul.f32 %v1334, %v1339
        %v1356 = vadd.f32 %v1317, %v1340
        %v1357 = vadd.f32 %v1318, %v1341
        %v1358 = vadd.f32 %v1319, %v1342
        %v1359 = vadd.f32 %v1320, %v1343
        %v1360 = vadd.f32 %v1321, %v1344
        %v1361 = vadd.f32 %v1322, %v1345
        %v1362 = vadd.f32 %v1323, %v1346
        %v1363 = vadd.f32 %v1324, %v1347
        %v1364 = vadd.f32 %v1325, %v1348
        %v1365 = vadd.f32 %v1326, %v1349
        %v1366 = vadd.f32 %v1327, %v1350
        %v1367 = vadd.f32 %v1328, %v1351
        %v1368 = vadd.f32 %v1329, %v1352
        %v1369 = vadd.f32 %v1330, %v1353
        %v1370 = vadd.f32 %v1331, %v1354
        %v1371 = vadd.f32 %v1332, %v1355
        %v1372 = vld [vmem:[#allocation2 + $0x83] sm:$0xff]
        %v1373 = vld [vmem:[#allocation2 + $0x8b] sm:$0xff]
        %v1374 = vld [vmem:[#allocation3 + $0xb] sm:$0x1]
        %v1375 = vlaneseq
        %v1376 = vshrl.u32 %v1375, 7
        %v1377 = vsub.s32 0, %v1376
        %v1378 = vrot.slane %v1374, %v1377
        %v1379 = vmul.f32 %v992, %v1378
        %v1380 = vmul.f32 %v993, %v1378
        %v1381 = vmul.f32 %v994, %v1378
        %v1382 = vmul.f32 %v995, %v1378
        %v1383 = vmul.f32 %v996, %v1378
        %v1384 = vmul.f32 %v997, %v1378
        %v1385 = vmul.f32 %v998, %v1378
        %v1386 = vmul.f32 %v999, %v1378
        %v1387 = vmul.f32 %v1000, %v1378
        %v1388 = vmul.f32 %v1001, %v1378
        %v1389 = vmul.f32 %v1002, %v1378
        %v1390 = vmul.f32 %v1003, %v1378
        %v1391 = vmul.f32 %v1004, %v1378
        %v1392 = vmul.f32 %v1005, %v1378
        %v1393 = vmul.f32 %v1372, %v1378
        %v1394 = vmul.f32 %v1373, %v1378
        %v1395 = vadd.f32 %v1356, %v1379
        %v1396 = vadd.f32 %v1357, %v1380
        %v1397 = vadd.f32 %v1358, %v1381
        %v1398 = vadd.f32 %v1359, %v1382
        %v1399 = vadd.f32 %v1360, %v1383
        %v1400 = vadd.f32 %v1361, %v1384
        %v1401 = vadd.f32 %v1362, %v1385
        %v1402 = vadd.f32 %v1363, %v1386
        %v1403 = vadd.f32 %v1364, %v1387
        %v1404 = vadd.f32 %v1365, %v1388
        %v1405 = vadd.f32 %v1366, %v1389
        %v1406 = vadd.f32 %v1367, %v1390
        %v1407 = vadd.f32 %v1368, %v1391
        %v1408 = vadd.f32 %v1369, %v1392
        %v1409 = vadd.f32 %v1370, %v1393
        %v1410 = vadd.f32 %v1371, %v1394
        %v1411 = vld [vmem:[#allocation2 + $0x84] sm:$0xff]
        %v1412 = vld [vmem:[#allocation2 + $0x8c] sm:$0xff]
        %v1413 = vld [vmem:[#allocation2 + $0x94] sm:$0xff]
        %v1414 = vld [vmem:[#allocation3 + $0xc] sm:$0x1]
        %v1415 = vlaneseq
        %v1416 = vshrl.u32 %v1415, 7
        %v1417 = vsub.s32 0, %v1416
        %v1418 = vrot.slane %v1414, %v1417
        %v1419 = vmul.f32 %v1046, %v1418
        %v1420 = vmul.f32 %v1047, %v1418
        %v1421 = vmul.f32 %v1048, %v1418
        %v1422 = vmul.f32 %v1049, %v1418
        %v1423 = vmul.f32 %v1050, %v1418
        %v1424 = vmul.f32 %v1051, %v1418
        %v1425 = vmul.f32 %v1052, %v1418
        %v1426 = vmul.f32 %v1053, %v1418
        %v1427 = vmul.f32 %v1054, %v1418
        %v1428 = vmul.f32 %v1055, %v1418
        %v1429 = vmul.f32 %v1056, %v1418
        %v1430 = vmul.f32 %v1057, %v1418
        %v1431 = vmul.f32 %v1058, %v1418
        %v1432 = vmul.f32 %v1411, %v1418
        %v1433 = vmul.f32 %v1412, %v1418
        %v1434 = vmul.f32 %v1413, %v1418
        %v1435 = vadd.f32 %v1395, %v1419
        %v1436 = vadd.f32 %v1396, %v1420
        %v1437 = vadd.f32 %v1397, %v1421
        %v1438 = vadd.f32 %v1398, %v1422
        %v1439 = vadd.f32 %v1399, %v1423
        %v1440 = vadd.f32 %v1400, %v1424
        %v1441 = vadd.f32 %v1401, %v1425
        %v1442 = vadd.f32 %v1402, %v1426
        %v1443 = vadd.f32 %v1403, %v1427
        %v1444 = vadd.f32 %v1404, %v1428
        %v1445 = vadd.f32 %v1405, %v1429
        %v1446 = vadd.f32 %v1406, %v1430
        %v1447 = vadd.f32 %v1407, %v1431
        %v1448 = vadd.f32 %v1408, %v1432
        %v1449 = vadd.f32 %v1409, %v1433
        %v1450 = vadd.f32 %v1410, %v1434
        %v1451 = vld [vmem:[#allocation2 + $0x85] sm:$0xff]
        %v1452 = vld [vmem:[#allocation2 + $0x8d] sm:$0xff]
        %v1453 = vld [vmem:[#allocation2 + $0x95] sm:$0xff]
        %v1454 = vld [vmem:[#allocation3 + $0xd] sm:$0x1]
        %v1455 = vlaneseq
        %v1456 = vshrl.u32 %v1455, 7
        %v1457 = vsub.s32 0, %v1456
        %v1458 = vrot.slane %v1454, %v1457
        %v1459 = vmul.f32 %v1099, %v1458
        %v1460 = vmul.f32 %v1100, %v1458
        %v1461 = vmul.f32 %v1101, %v1458
        %v1462 = vmul.f32 %v1102, %v1458
        %v1463 = vmul.f32 %v1103, %v1458
        %v1464 = vmul.f32 %v1104, %v1458
        %v1465 = vmul.f32 %v1105, %v1458
        %v1466 = vmul.f32 %v1106, %v1458
        %v1467 = vmul.f32 %v1107, %v1458
        %v1468 = vmul.f32 %v1108, %v1458
        %v1469 = vmul.f32 %v1109, %v1458
        %v1470 = vmul.f32 %v1110, %v1458
        %v1471 = vmul.f32 %v1111, %v1458
        %v1472 = vmul.f32 %v1451, %v1458
        %v1473 = vmul.f32 %v1452, %v1458
        %v1474 = vmul.f32 %v1453, %v1458
        %v1475 = vadd.f32 %v1435, %v1459
        %v1476 = vadd.f32 %v1436, %v1460
        %v1477 = vadd.f32 %v1437, %v1461
        %v1478 = vadd.f32 %v1438, %v1462
        %v1479 = vadd.f32 %v1439, %v1463
        %v1480 = vadd.f32 %v1440, %v1464
        %v1481 = vadd.f32 %v1441, %v1465
        %v1482 = vadd.f32 %v1442, %v1466
        %v1483 = vadd.f32 %v1443, %v1467
        %v1484 = vadd.f32 %v1444, %v1468
        %v1485 = vadd.f32 %v1445, %v1469
        %v1486 = vadd.f32 %v1446, %v1470
        %v1487 = vadd.f32 %v1447, %v1471
        %v1488 = vadd.f32 %v1448, %v1472
        %v1489 = vadd.f32 %v1449, %v1473
        %v1490 = vadd.f32 %v1450, %v1474
        %v1491 = vld [vmem:[#allocation2 + $0x8e] sm:$0xff]
        %v1492 = vld [vmem:[#allocation2 + $0x96] sm:$0xff]
        %v1493 = vld [vmem:[#allocation3 + $0xe] sm:$0x1]
        %v1494 = vlaneseq
        %v1495 = vshrl.u32 %v1494, 7
        %v1496 = vsub.s32 0, %v1495
        %v1497 = vrot.slane %v1493, %v1496
        %v1498 = vmul.f32 %v1151, %v1497
        %v1499 = vmul.f32 %v1152, %v1497
        %v1500 = vmul.f32 %v1153, %v1497
        %v1501 = vmul.f32 %v1154, %v1497
        %v1502 = vmul.f32 %v1155, %v1497
        %v1503 = vmul.f32 %v1156, %v1497
        %v1504 = vmul.f32 %v1157, %v1497
        %v1505 = vmul.f32 %v1158, %v1497
        %v1506 = vmul.f32 %v1159, %v1497
        %v1507 = vmul.f32 %v1160, %v1497
        %v1508 = vmul.f32 %v1161, %v1497
        %v1509 = vmul.f32 %v1162, %v1497
        %v1510 = vmul.f32 %v1163, %v1497
        %v1511 = vmul.f32 %v1164, %v1497
        %v1512 = vmul.f32 %v1491, %v1497
        %v1513 = vmul.f32 %v1492, %v1497
        %v1514 = vadd.f32 %v1475, %v1498
        %v1515 = vadd.f32 %v1476, %v1499
        %v1516 = vadd.f32 %v1477, %v1500
        %v1517 = vadd.f32 %v1478, %v1501
        %v1518 = vadd.f32 %v1479, %v1502
        %v1519 = vadd.f32 %v1480, %v1503
        %v1520 = vadd.f32 %v1481, %v1504
        %v1521 = vadd.f32 %v1482, %v1505
        %v1522 = vadd.f32 %v1483, %v1506
        %v1523 = vadd.f32 %v1484, %v1507
        %v1524 = vadd.f32 %v1485, %v1508
        %v1525 = vadd.f32 %v1486, %v1509
        %v1526 = vadd.f32 %v1487, %v1510
        %v1527 = vadd.f32 %v1488, %v1511
        %v1528 = vadd.f32 %v1489, %v1512
        %v1529 = vadd.f32 %v1490, %v1513
        %v1530 = vld [vmem:[#allocation2 + $0x8f] sm:$0xff]
        %v1531 = vld [vmem:[#allocation2 + $0x97] sm:$0xff]
        %v1532 = vld [vmem:[#allocation3 + $0xf] sm:$0x1]
        %v1533 = vlaneseq
        %v1534 = vshrl.u32 %v1533, 7
        %v1535 = vsub.s32 0, %v1534
        %v1536 = vrot.slane %v1532, %v1535
        %v1537 = vmul.f32 %v1204, %v1536
        %v1538 = vmul.f32 %v1205, %v1536
        %v1539 = vmul.f32 %v1206, %v1536
        %v1540 = vmul.f32 %v1207, %v1536
        %v1541 = vmul.f32 %v1208, %v1536
        %v1542 = vmul.f32 %v1209, %v1536
        %v1543 = vmul.f32 %v1210, %v1536
        %v1544 = vmul.f32 %v1211, %v1536
        %v1545 = vmul.f32 %v1212, %v1536
        %v1546 = vmul.f32 %v1213, %v1536
        %v1547 = vmul.f32 %v1214, %v1536
        %v1548 = vmul.f32 %v1215, %v1536
        %v1549 = vmul.f32 %v1216, %v1536
        %v1550 = vmul.f32 %v1217, %v1536
        %v1551 = vmul.f32 %v1530, %v1536
        %v1552 = vmul.f32 %v1531, %v1536
        %v1553 = vadd.f32 %v1514, %v1537
        %v1554 = vadd.f32 %v1515, %v1538
        %v1555 = vadd.f32 %v1516, %v1539
        %v1556 = vadd.f32 %v1517, %v1540
        %v1557 = vadd.f32 %v1518, %v1541
        %v1558 = vadd.f32 %v1519, %v1542
        %v1559 = vadd.f32 %v1520, %v1543
        %v1560 = vadd.f32 %v1521, %v1544
        %v1561 = vadd.f32 %v1522, %v1545
        %v1562 = vadd.f32 %v1523, %v1546
        %v1563 = vadd.f32 %v1524, %v1547
        %v1564 = vadd.f32 %v1525, %v1548
        %v1565 = vadd.f32 %v1526, %v1549
        %v1566 = vadd.f32 %v1527, %v1550
        %v1567 = vadd.f32 %v1528, %v1551
        %v1568 = vadd.f32 %v1529, %v1552
        %v1569 = vld [vmem:[#allocation2 + $0x90] sm:$0xff]
        %v1570 = vld [vmem:[#allocation2 + $0x98] sm:$0xff]
        %v1571 = vld [vmem:[#allocation3 + $0x10] sm:$0x1]
        %v1572 = vlaneseq
        %v1573 = vshrl.u32 %v1572, 7
        %v1574 = vsub.s32 0, %v1573
        %v1575 = vrot.slane %v1571, %v1574
        %v1576 = vmul.f32 %v835, %v1575
        %v1577 = vmul.f32 %v836, %v1575
        %v1578 = vmul.f32 %v837, %v1575
        %v1579 = vmul.f32 %v838, %v1575
        %v1580 = vmul.f32 %v839, %v1575
        %v1581 = vmul.f32 %v840, %v1575
        %v1582 = vmul.f32 %v841, %v1575
        %v1583 = vmul.f32 %v842, %v1575
        %v1584 = vmul.f32 %v843, %v1575
        %v1585 = vmul.f32 %v844, %v1575
        %v1586 = vmul.f32 %v845, %v1575
        %v1587 = vmul.f32 %v846, %v1575
        %v1588 = vmul.f32 %v1255, %v1575
        %v1589 = vmul.f32 %v1256, %v1575
        %v1590 = vmul.f32 %v1569, %v1575
        %v1591 = vmul.f32 %v1570, %v1575
        %v1592 = vadd.f32 %v1553, %v1576
        %v1593 = vadd.f32 %v1554, %v1577
        %v1594 = vadd.f32 %v1555, %v1578
        %v1595 = vadd.f32 %v1556, %v1579
        %v1596 = vadd.f32 %v1557, %v1580
        %v1597 = vadd.f32 %v1558, %v1581
        %v1598 = vadd.f32 %v1559, %v1582
        %v1599 = vadd.f32 %v1560, %v1583
        %v1600 = vadd.f32 %v1561, %v1584
        %v1601 = vadd.f32 %v1562, %v1585
        %v1602 = vadd.f32 %v1563, %v1586
        %v1603 = vadd.f32 %v1564, %v1587
        %v1604 = vadd.f32 %v1565, %v1588
        %v1605 = vadd.f32 %v1566, %v1589
        %v1606 = vadd.f32 %v1567, %v1590
        %v1607 = vadd.f32 %v1568, %v1591
        %v1608 = vld [vmem:[#allocation2 + $0x91] sm:$0xff]
        %v1609 = vld [vmem:[#allocation2 + $0x99] sm:$0xff]
        %v1610 = vld [vmem:[#allocation3 + $0x11] sm:$0x1]
        %v1611 = vlaneseq
        %v1612 = vshrl.u32 %v1611, 7
        %v1613 = vsub.s32 0, %v1612
        %v1614 = vrot.slane %v1610, %v1613
        %v1615 = vmul.f32 %v888, %v1614
        %v1616 = vmul.f32 %v889, %v1614
        %v1617 = vmul.f32 %v890, %v1614
        %v1618 = vmul.f32 %v891, %v1614
        %v1619 = vmul.f32 %v892, %v1614
        %v1620 = vmul.f32 %v893, %v1614
        %v1621 = vmul.f32 %v894, %v1614
        %v1622 = vmul.f32 %v895, %v1614
        %v1623 = vmul.f32 %v896, %v1614
        %v1624 = vmul.f32 %v897, %v1614
        %v1625 = vmul.f32 %v898, %v1614
        %v1626 = vmul.f32 %v899, %v1614
        %v1627 = vmul.f32 %v1294, %v1614
        %v1628 = vmul.f32 %v1295, %v1614
        %v1629 = vmul.f32 %v1608, %v1614
        %v1630 = vmul.f32 %v1609, %v1614
        %v1631 = vadd.f32 %v1592, %v1615
        %v1632 = vadd.f32 %v1593, %v1616
        %v1633 = vadd.f32 %v1594, %v1617
        %v1634 = vadd.f32 %v1595, %v1618
        %v1635 = vadd.f32 %v1596, %v1619
        %v1636 = vadd.f32 %v1597, %v1620
        %v1637 = vadd.f32 %v1598, %v1621
        %v1638 = vadd.f32 %v1599, %v1622
        %v1639 = vadd.f32 %v1600, %v1623
        %v1640 = vadd.f32 %v1601, %v1624
        %v1641 = vadd.f32 %v1602, %v1625
        %v1642 = vadd.f32 %v1603, %v1626
        %v1643 = vadd.f32 %v1604, %v1627
        %v1644 = vadd.f32 %v1605, %v1628
        %v1645 = vadd.f32 %v1606, %v1629
        %v1646 = vadd.f32 %v1607, %v1630
        %v1647 = vld [vmem:[#allocation2 + $0x92] sm:$0xff]
        %v1648 = vld [vmem:[#allocation2 + $0x9a] sm:$0xff]
        %v1649 = vld [vmem:[#allocation2 + $0xa2] sm:$0xff]
        %v1650 = vld [vmem:[#allocation3 + $0x12] sm:$0x1]
        %v1651 = vlaneseq
        %v1652 = vshrl.u32 %v1651, 7
        %v1653 = vsub.s32 0, %v1652
        %v1654 = vrot.slane %v1650, %v1653
        %v1655 = vmul.f32 %v942, %v1654
        %v1656 = vmul.f32 %v943, %v1654
        %v1657 = vmul.f32 %v944, %v1654
        %v1658 = vmul.f32 %v945, %v1654
        %v1659 = vmul.f32 %v946, %v1654
        %v1660 = vmul.f32 %v947, %v1654
        %v1661 = vmul.f32 %v948, %v1654
        %v1662 = vmul.f32 %v949, %v1654
        %v1663 = vmul.f32 %v950, %v1654
        %v1664 = vmul.f32 %v951, %v1654
        %v1665 = vmul.f32 %v952, %v1654
        %v1666 = vmul.f32 %v1333, %v1654
        %v1667 = vmul.f32 %v1334, %v1654
        %v1668 = vmul.f32 %v1647, %v1654
        %v1669 = vmul.f32 %v1648, %v1654
        %v1670 = vmul.f32 %v1649, %v1654
        %v1671 = vadd.f32 %v1631, %v1655
        %v1672 = vadd.f32 %v1632, %v1656
        %v1673 = vadd.f32 %v1633, %v1657
        %v1674 = vadd.f32 %v1634, %v1658
        %v1675 = vadd.f32 %v1635, %v1659
        %v1676 = vadd.f32 %v1636, %v1660
        %v1677 = vadd.f32 %v1637, %v1661
        %v1678 = vadd.f32 %v1638, %v1662
        %v1679 = vadd.f32 %v1639, %v1663
        %v1680 = vadd.f32 %v1640, %v1664
        %v1681 = vadd.f32 %v1641, %v1665
        %v1682 = vadd.f32 %v1642, %v1666
        %v1683 = vadd.f32 %v1643, %v1667
        %v1684 = vadd.f32 %v1644, %v1668
        %v1685 = vadd.f32 %v1645, %v1669
        %v1686 = vadd.f32 %v1646, %v1670
        %v1687 = vld [vmem:[#allocation2 + $0x93] sm:$0xff]
        %v1688 = vld [vmem:[#allocation2 + $0x9b] sm:$0xff]
        %v1689 = vld [vmem:[#allocation2 + $0xa3] sm:$0xff]
        %v1690 = vld [vmem:[#allocation3 + $0x13] sm:$0x1]
        %v1691 = vlaneseq
        %v1692 = vshrl.u32 %v1691, 7
        %v1693 = vsub.s32 0, %v1692
        %v1694 = vrot.slane %v1690, %v1693
        %v1695 = vmul.f32 %v995, %v1694
        %v1696 = vmul.f32 %v996, %v1694
        %v1697 = vmul.f32 %v997, %v1694
        %v1698 = vmul.f32 %v998, %v1694
        %v1699 = vmul.f32 %v999, %v1694
        %v1700 = vmul.f32 %v1000, %v1694
        %v1701 = vmul.f32 %v1001, %v1694
        %v1702 = vmul.f32 %v1002, %v1694
        %v1703 = vmul.f32 %v1003, %v1694
        %v1704 = vmul.f32 %v1004, %v1694
        %v1705 = vmul.f32 %v1005, %v1694
        %v1706 = vmul.f32 %v1372, %v1694
        %v1707 = vmul.f32 %v1373, %v1694
        %v1708 = vmul.f32 %v1687, %v1694
        %v1709 = vmul.f32 %v1688, %v1694
        %v1710 = vmul.f32 %v1689, %v1694
        %v1711 = vadd.f32 %v1671, %v1695
        %v1712 = vadd.f32 %v1672, %v1696
        %v1713 = vadd.f32 %v1673, %v1697
        %v1714 = vadd.f32 %v1674, %v1698
        %v1715 = vadd.f32 %v1675, %v1699
        %v1716 = vadd.f32 %v1676, %v1700
        %v1717 = vadd.f32 %v1677, %v1701
        %v1718 = vadd.f32 %v1678, %v1702
        %v1719 = vadd.f32 %v1679, %v1703
        %v1720 = vadd.f32 %v1680, %v1704
        %v1721 = vadd.f32 %v1681, %v1705
        %v1722 = vadd.f32 %v1682, %v1706
        %v1723 = vadd.f32 %v1683, %v1707
        %v1724 = vadd.f32 %v1684, %v1708
        %v1725 = vadd.f32 %v1685, %v1709
        %v1726 = vadd.f32 %v1686, %v1710
        %v1727 = vld [vmem:[#allocation2 + $0x9c] sm:$0xff]
        %v1728 = vld [vmem:[#allocation2 + $0xa4] sm:$0xff]
        %v1729 = vld [vmem:[#allocation3 + $0x14] sm:$0x1]
        %v1730 = vlaneseq
        %v1731 = vshrl.u32 %v1730, 7
        %v1732 = vsub.s32 0, %v1731
        %v1733 = vrot.slane %v1729, %v1732
        %v1734 = vmul.f32 %v1048, %v1733
        %v1735 = vmul.f32 %v1049, %v1733
        %v1736 = vmul.f32 %v1050, %v1733
        %v1737 = vmul.f32 %v1051, %v1733
        %v1738 = vmul.f32 %v1052, %v1733
        %v1739 = vmul.f32 %v1053, %v1733
        %v1740 = vmul.f32 %v1054, %v1733
        %v1741 = vmul.f32 %v1055, %v1733
        %v1742 = vmul.f32 %v1056, %v1733
        %v1743 = vmul.f32 %v1057, %v1733
        %v1744 = vmul.f32 %v1058, %v1733
        %v1745 = vmul.f32 %v1411, %v1733
        %v1746 = vmul.f32 %v1412, %v1733
        %v1747 = vmul.f32 %v1413, %v1733
        %v1748 = vmul.f32 %v1727, %v1733
        %v1749 = vmul.f32 %v1728, %v1733
        %v1750 = vadd.f32 %v1711, %v1734
        %v1751 = vadd.f32 %v1712, %v1735
        %v1752 = vadd.f32 %v1713, %v1736
        %v1753 = vadd.f32 %v1714, %v1737
        %v1754 = vadd.f32 %v1715, %v1738
        %v1755 = vadd.f32 %v1716, %v1739
        %v1756 = vadd.f32 %v1717, %v1740
        %v1757 = vadd.f32 %v1718, %v1741
        %v1758 = vadd.f32 %v1719, %v1742
        %v1759 = vadd.f32 %v1720, %v1743
        %v1760 = vadd.f32 %v1721, %v1744
        %v1761 = vadd.f32 %v1722, %v1745
        %v1762 = vadd.f32 %v1723, %v1746
        %v1763 = vadd.f32 %v1724, %v1747
        %v1764 = vadd.f32 %v1725, %v1748
        %v1765 = vadd.f32 %v1726, %v1749
        %v1766 = vld [vmem:[#allocation2 + $0x9d] sm:$0xff]
        %v1767 = vld [vmem:[#allocation2 + $0xa5] sm:$0xff]
        %v1768 = vld [vmem:[#allocation3 + $0x15] sm:$0x1]
        %v1769 = vlaneseq
        %v1770 = vshrl.u32 %v1769, 7
        %v1771 = vsub.s32 0, %v1770
        %v1772 = vrot.slane %v1768, %v1771
        %v1773 = vmul.f32 %v1101, %v1772
        %v1774 = vmul.f32 %v1102, %v1772
        %v1775 = vmul.f32 %v1103, %v1772
        %v1776 = vmul.f32 %v1104, %v1772
        %v1777 = vmul.f32 %v1105, %v1772
        %v1778 = vmul.f32 %v1106, %v1772
        %v1779 = vmul.f32 %v1107, %v1772
        %v1780 = vmul.f32 %v1108, %v1772
        %v1781 = vmul.f32 %v1109, %v1772
        %v1782 = vmul.f32 %v1110, %v1772
        %v1783 = vmul.f32 %v1111, %v1772
        %v1784 = vmul.f32 %v1451, %v1772
        %v1785 = vmul.f32 %v1452, %v1772
        %v1786 = vmul.f32 %v1453, %v1772
        %v1787 = vmul.f32 %v1766, %v1772
        %v1788 = vmul.f32 %v1767, %v1772
        %v1789 = vadd.f32 %v1750, %v1773
        %v1790 = vadd.f32 %v1751, %v1774
        %v1791 = vadd.f32 %v1752, %v1775
        %v1792 = vadd.f32 %v1753, %v1776
        %v1793 = vadd.f32 %v1754, %v1777
        %v1794 = vadd.f32 %v1755, %v1778
        %v1795 = vadd.f32 %v1756, %v1779
        %v1796 = vadd.f32 %v1757, %v1780
        %v1797 = vadd.f32 %v1758, %v1781
        %v1798 = vadd.f32 %v1759, %v1782
        %v1799 = vadd.f32 %v1760, %v1783
        %v1800 = vadd.f32 %v1761, %v1784
        %v1801 = vadd.f32 %v1762, %v1785
        %v1802 = vadd.f32 %v1763, %v1786
        %v1803 = vadd.f32 %v1764, %v1787
        %v1804 = vadd.f32 %v1765, %v1788
        %v1805 = vld [vmem:[#allocation2 + $0x9e] sm:$0xff]
        %v1806 = vld [vmem:[#allocation2 + $0xa6] sm:$0xff]
        %v1807 = vld [vmem:[#allocation3 + $0x16] sm:$0x1]
        %v1808 = vlaneseq
        %v1809 = vshrl.u32 %v1808, 7
        %v1810 = vsub.s32 0, %v1809
        %v1811 = vrot.slane %v1807, %v1810
        %v1812 = vmul.f32 %v1153, %v1811
        %v1813 = vmul.f32 %v1154, %v1811
        %v1814 = vmul.f32 %v1155, %v1811
        %v1815 = vmul.f32 %v1156, %v1811
        %v1816 = vmul.f32 %v1157, %v1811
        %v1817 = vmul.f32 %v1158, %v1811
        %v1818 = vmul.f32 %v1159, %v1811
        %v1819 = vmul.f32 %v1160, %v1811
        %v1820 = vmul.f32 %v1161, %v1811
        %v1821 = vmul.f32 %v1162, %v1811
        %v1822 = vmul.f32 %v1163, %v1811
        %v1823 = vmul.f32 %v1164, %v1811
        %v1824 = vmul.f32 %v1491, %v1811
        %v1825 = vmul.f32 %v1492, %v1811
        %v1826 = vmul.f32 %v1805, %v1811
        %v1827 = vmul.f32 %v1806, %v1811
        %v1828 = vadd.f32 %v1789, %v1812
        %v1829 = vadd.f32 %v1790, %v1813
        %v1830 = vadd.f32 %v1791, %v1814
        %v1831 = vadd.f32 %v1792, %v1815
        %v1832 = vadd.f32 %v1793, %v1816
        %v1833 = vadd.f32 %v1794, %v1817
        %v1834 = vadd.f32 %v1795, %v1818
        %v1835 = vadd.f32 %v1796, %v1819
        %v1836 = vadd.f32 %v1797, %v1820
        %v1837 = vadd.f32 %v1798, %v1821
        %v1838 = vadd.f32 %v1799, %v1822
        %v1839 = vadd.f32 %v1800, %v1823
        %v1840 = vadd.f32 %v1801, %v1824
        %v1841 = vadd.f32 %v1802, %v1825
        %v1842 = vadd.f32 %v1803, %v1826
        %v1843 = vadd.f32 %v1804, %v1827
        %v1844 = vld [vmem:[#allocation2 + $0x9f] sm:$0xff]
        %v1845 = vld [vmem:[#allocation2 + $0xa7] sm:$0xff]
        %v1846 = vld [vmem:[#allocation3 + $0x17] sm:$0x1]
        %v1847 = vlaneseq
        %v1848 = vshrl.u32 %v1847, 7
        %v1849 = vsub.s32 0, %v1848
        %v1850 = vrot.slane %v1846, %v1849
        %v1851 = vmul.f32 %v1206, %v1850
        %v1852 = vmul.f32 %v1207, %v1850
        %v1853 = vmul.f32 %v1208, %v1850
        %v1854 = vmul.f32 %v1209, %v1850
        %v1855 = vmul.f32 %v1210, %v1850
        %v1856 = vmul.f32 %v1211, %v1850
        %v1857 = vmul.f32 %v1212, %v1850
        %v1858 = vmul.f32 %v1213, %v1850
        %v1859 = vmul.f32 %v1214, %v1850
        %v1860 = vmul.f32 %v1215, %v1850
        %v1861 = vmul.f32 %v1216, %v1850
        %v1862 = vmul.f32 %v1217, %v1850
        %v1863 = vmul.f32 %v1530, %v1850
        %v1864 = vmul.f32 %v1531, %v1850
        %v1865 = vmul.f32 %v1844, %v1850
        %v1866 = vmul.f32 %v1845, %v1850
        %v1867 = vadd.f32 %v1828, %v1851
        %v1868 = vadd.f32 %v1829, %v1852
        %v1869 = vadd.f32 %v1830, %v1853
        %v1870 = vadd.f32 %v1831, %v1854
        %v1871 = vadd.f32 %v1832, %v1855
        %v1872 = vadd.f32 %v1833, %v1856
        %v1873 = vadd.f32 %v1834, %v1857
        %v1874 = vadd.f32 %v1835, %v1858
        %v1875 = vadd.f32 %v1836, %v1859
        %v1876 = vadd.f32 %v1837, %v1860
        %v1877 = vadd.f32 %v1838, %v1861
        %v1878 = vadd.f32 %v1839, %v1862
        %v1879 = vadd.f32 %v1840, %v1863
        %v1880 = vadd.f32 %v1841, %v1864
        %v1881 = vadd.f32 %v1842, %v1865
        %v1882 = vadd.f32 %v1843, %v1866
        %v1883 = vld [vmem:[#allocation2 + $0xa0] sm:$0xff]
        %v1884 = vld [vmem:[#allocation2 + $0xa8] sm:$0xff]
        %v1885 = vld [vmem:[#allocation2 + $0xb0] sm:$0xff]
        %v1886 = vld [vmem:[#allocation3 + $0x18] sm:$0x1]
        %v1887 = vlaneseq
        %v1888 = vshrl.u32 %v1887, 7
        %v1889 = vsub.s32 0, %v1888
        %v1890 = vrot.slane %v1886, %v1889
        %v1891 = vmul.f32 %v838, %v1890
        %v1892 = vmul.f32 %v839, %v1890
        %v1893 = vmul.f32 %v840, %v1890
        %v1894 = vmul.f32 %v841, %v1890
        %v1895 = vmul.f32 %v842, %v1890
        %v1896 = vmul.f32 %v843, %v1890
        %v1897 = vmul.f32 %v844, %v1890
        %v1898 = vmul.f32 %v845, %v1890
        %v1899 = vmul.f32 %v846, %v1890
        %v1900 = vmul.f32 %v1255, %v1890
        %v1901 = vmul.f32 %v1256, %v1890
        %v1902 = vmul.f32 %v1569, %v1890
        %v1903 = vmul.f32 %v1570, %v1890
        %v1904 = vmul.f32 %v1883, %v1890
        %v1905 = vmul.f32 %v1884, %v1890
        %v1906 = vmul.f32 %v1885, %v1890
        %v1907 = vadd.f32 %v1867, %v1891
        %v1908 = vadd.f32 %v1868, %v1892
        %v1909 = vadd.f32 %v1869, %v1893
        %v1910 = vadd.f32 %v1870, %v1894
        %v1911 = vadd.f32 %v1871, %v1895
        %v1912 = vadd.f32 %v1872, %v1896
        %v1913 = vadd.f32 %v1873, %v1897
        %v1914 = vadd.f32 %v1874, %v1898
        %v1915 = vadd.f32 %v1875, %v1899
        %v1916 = vadd.f32 %v1876, %v1900
        %v1917 = vadd.f32 %v1877, %v1901
        %v1918 = vadd.f32 %v1878, %v1902
        %v1919 = vadd.f32 %v1879, %v1903
        %v1920 = vadd.f32 %v1880, %v1904
        %v1921 = vadd.f32 %v1881, %v1905
        %v1922 = vadd.f32 %v1882, %v1906
        %v1923 = vld [vmem:[#allocation2 + $0xa1] sm:$0xff]
        %v1924 = vld [vmem:[#allocation2 + $0xa9] sm:$0xff]
        %v1925 = vld [vmem:[#allocation2 + $0xb1] sm:$0xff]
        %v1926 = vld [vmem:[#allocation3 + $0x19] sm:$0x1]
        %v1927 = vlaneseq
        %v1928 = vshrl.u32 %v1927, 7
        %v1929 = vsub.s32 0, %v1928
        %v1930 = vrot.slane %v1926, %v1929
        %v1931 = vmul.f32 %v891, %v1930
        %v1932 = vmul.f32 %v892, %v1930
        %v1933 = vmul.f32 %v893, %v1930
        %v1934 = vmul.f32 %v894, %v1930
        %v1935 = vmul.f32 %v895, %v1930
        %v1936 = vmul.f32 %v896, %v1930
        %v1937 = vmul.f32 %v897, %v1930
        %v1938 = vmul.f32 %v898, %v1930
        %v1939 = vmul.f32 %v899, %v1930
        %v1940 = vmul.f32 %v1294, %v1930
        %v1941 = vmul.f32 %v1295, %v1930
        %v1942 = vmul.f32 %v1608, %v1930
        %v1943 = vmul.f32 %v1609, %v1930
        %v1944 = vmul.f32 %v1923, %v1930
        %v1945 = vmul.f32 %v1924, %v1930
        %v1946 = vmul.f32 %v1925, %v1930
        %v1947 = vadd.f32 %v1907, %v1931
        %v1948 = vadd.f32 %v1908, %v1932
        %v1949 = vadd.f32 %v1909, %v1933
        %v1950 = vadd.f32 %v1910, %v1934
        %v1951 = vadd.f32 %v1911, %v1935
        %v1952 = vadd.f32 %v1912, %v1936
        %v1953 = vadd.f32 %v1913, %v1937
        %v1954 = vadd.f32 %v1914, %v1938
        %v1955 = vadd.f32 %v1915, %v1939
        %v1956 = vadd.f32 %v1916, %v1940
        %v1957 = vadd.f32 %v1917, %v1941
        %v1958 = vadd.f32 %v1918, %v1942
        %v1959 = vadd.f32 %v1919, %v1943
        %v1960 = vadd.f32 %v1920, %v1944
        %v1961 = vadd.f32 %v1921, %v1945
        %v1962 = vadd.f32 %v1922, %v1946
        %v1963 = vld [vmem:[#allocation2 + $0xaa] sm:$0xff]
        %v1964 = vld [vmem:[#allocation2 + $0xb2] sm:$0xff]
        %v1965 = vld [vmem:[#allocation3 + $0x1a] sm:$0x1]
        %v1966 = vlaneseq
        %v1967 = vshrl.u32 %v1966, 7
        %v1968 = vsub.s32 0, %v1967
        %v1969 = vrot.slane %v1965, %v1968
        %v1970 = vmul.f32 %v944, %v1969
        %v1971 = vmul.f32 %v945, %v1969
        %v1972 = vmul.f32 %v946, %v1969
        %v1973 = vmul.f32 %v947, %v1969
        %v1974 = vmul.f32 %v948, %v1969
        %v1975 = vmul.f32 %v949, %v1969
        %v1976 = vmul.f32 %v950, %v1969
        %v1977 = vmul.f32 %v951, %v1969
        %v1978 = vmul.f32 %v952, %v1969
        %v1979 = vmul.f32 %v1333, %v1969
        %v1980 = vmul.f32 %v1334, %v1969
        %v1981 = vmul.f32 %v1647, %v1969
        %v1982 = vmul.f32 %v1648, %v1969
        %v1983 = vmul.f32 %v1649, %v1969
        %v1984 = vmul.f32 %v1963, %v1969
        %v1985 = vmul.f32 %v1964, %v1969
        %v1986 = vadd.f32 %v1947, %v1970
        %v1987 = vadd.f32 %v1948, %v1971
        %v1988 = vadd.f32 %v1949, %v1972
        %v1989 = vadd.f32 %v1950, %v1973
        %v1990 = vadd.f32 %v1951, %v1974
        %v1991 = vadd.f32 %v1952, %v1975
        %v1992 = vadd.f32 %v1953, %v1976
        %v1993 = vadd.f32 %v1954, %v1977
        %v1994 = vadd.f32 %v1955, %v1978
        %v1995 = vadd.f32 %v1956, %v1979
        %v1996 = vadd.f32 %v1957, %v1980
        %v1997 = vadd.f32 %v1958, %v1981
        %v1998 = vadd.f32 %v1959, %v1982
        %v1999 = vadd.f32 %v1960, %v1983
        %v2000 = vadd.f32 %v1961, %v1984
        %v2001 = vadd.f32 %v1962, %v1985
        %v2002 = vld [vmem:[#allocation2 + $0xab] sm:$0xff]
        %v2003 = vld [vmem:[#allocation2 + $0xb3] sm:$0xff]
        %v2004 = vld [vmem:[#allocation3 + $0x1b] sm:$0x1]
        %v2005 = vlaneseq
        %v2006 = vshrl.u32 %v2005, 7
        %v2007 = vsub.s32 0, %v2006
        %v2008 = vrot.slane %v2004, %v2007
        %v2009 = vmul.f32 %v997, %v2008
        %v2010 = vmul.f32 %v998, %v2008
        %v2011 = vmul.f32 %v999, %v2008
        %v2012 = vmul.f32 %v1000, %v2008
        %v2013 = vmul.f32 %v1001, %v2008
        %v2014 = vmul.f32 %v1002, %v2008
        %v2015 = vmul.f32 %v1003, %v2008
        %v2016 = vmul.f32 %v1004, %v2008
        %v2017 = vmul.f32 %v1005, %v2008
        %v2018 = vmul.f32 %v1372, %v2008
        %v2019 = vmul.f32 %v1373, %v2008
        %v2020 = vmul.f32 %v1687, %v2008
        %v2021 = vmul.f32 %v1688, %v2008
        %v2022 = vmul.f32 %v1689, %v2008
        %v2023 = vmul.f32 %v2002, %v2008
        %v2024 = vmul.f32 %v2003, %v2008
        %v2025 = vadd.f32 %v1986, %v2009
        %v2026 = vadd.f32 %v1987, %v2010
        %v2027 = vadd.f32 %v1988, %v2011
        %v2028 = vadd.f32 %v1989, %v2012
        %v2029 = vadd.f32 %v1990, %v2013
        %v2030 = vadd.f32 %v1991, %v2014
        %v2031 = vadd.f32 %v1992, %v2015
        %v2032 = vadd.f32 %v1993, %v2016
        %v2033 = vadd.f32 %v1994, %v2017
        %v2034 = vadd.f32 %v1995, %v2018
        %v2035 = vadd.f32 %v1996, %v2019
        %v2036 = vadd.f32 %v1997, %v2020
        %v2037 = vadd.f32 %v1998, %v2021
        %v2038 = vadd.f32 %v1999, %v2022
        %v2039 = vadd.f32 %v2000, %v2023
        %v2040 = vadd.f32 %v2001, %v2024
        %v2041 = vld [vmem:[#allocation2 + $0xac] sm:$0xff]
        %v2042 = vld [vmem:[#allocation2 + $0xb4] sm:$0xff]
        %v2043 = vld [vmem:[#allocation3 + $0x1c] sm:$0x1]
        %v2044 = vlaneseq
        %v2045 = vshrl.u32 %v2044, 7
        %v2046 = vsub.s32 0, %v2045
        %v2047 = vrot.slane %v2043, %v2046
        %v2048 = vmul.f32 %v1050, %v2047
        %v2049 = vmul.f32 %v1051, %v2047
        %v2050 = vmul.f32 %v1052, %v2047
        %v2051 = vmul.f32 %v1053, %v2047
        %v2052 = vmul.f32 %v1054, %v2047
        %v2053 = vmul.f32 %v1055, %v2047
        %v2054 = vmul.f32 %v1056, %v2047
        %v2055 = vmul.f32 %v1057, %v2047
        %v2056 = vmul.f32 %v1058, %v2047
        %v2057 = vmul.f32 %v1411, %v2047
        %v2058 = vmul.f32 %v1412, %v2047
        %v2059 = vmul.f32 %v1413, %v2047
        %v2060 = vmul.f32 %v1727, %v2047
        %v2061 = vmul.f32 %v1728, %v2047
        %v2062 = vmul.f32 %v2041, %v2047
        %v2063 = vmul.f32 %v2042, %v2047
        %v2064 = vadd.f32 %v2025, %v2048
        %v2065 = vadd.f32 %v2026, %v2049
        %v2066 = vadd.f32 %v2027, %v2050
        %v2067 = vadd.f32 %v2028, %v2051
        %v2068 = vadd.f32 %v2029, %v2052
        %v2069 = vadd.f32 %v2030, %v2053
        %v2070 = vadd.f32 %v2031, %v2054
        %v2071 = vadd.f32 %v2032, %v2055
        %v2072 = vadd.f32 %v2033, %v2056
        %v2073 = vadd.f32 %v2034, %v2057
        %v2074 = vadd.f32 %v2035, %v2058
        %v2075 = vadd.f32 %v2036, %v2059
        %v2076 = vadd.f32 %v2037, %v2060
        %v2077 = vadd.f32 %v2038, %v2061
        %v2078 = vadd.f32 %v2039, %v2062
        %v2079 = vadd.f32 %v2040, %v2063
        %v2080 = vld [vmem:[#allocation2 + $0xad] sm:$0xff]
        %v2081 = vld [vmem:[#allocation2 + $0xb5] sm:$0xff]
        %v2082 = vld [vmem:[#allocation3 + $0x1d] sm:$0x1]
        %v2083 = vlaneseq
        %v2084 = vshrl.u32 %v2083, 7
        %v2085 = vsub.s32 0, %v2084
        %v2086 = vrot.slane %v2082, %v2085
        %v2087 = vmul.f32 %v1103, %v2086
        %v2088 = vmul.f32 %v1104, %v2086
        %v2089 = vmul.f32 %v1105, %v2086
        %v2090 = vmul.f32 %v1106, %v2086
        %v2091 = vmul.f32 %v1107, %v2086
        %v2092 = vmul.f32 %v1108, %v2086
        %v2093 = vmul.f32 %v1109, %v2086
        %v2094 = vmul.f32 %v1110, %v2086
        %v2095 = vmul.f32 %v1111, %v2086
        %v2096 = vmul.f32 %v1451, %v2086
        %v2097 = vmul.f32 %v1452, %v2086
        %v2098 = vmul.f32 %v1453, %v2086
        %v2099 = vmul.f32 %v1766, %v2086
        %v2100 = vmul.f32 %v1767, %v2086
        %v2101 = vmul.f32 %v2080, %v2086
        %v2102 = vmul.f32 %v2081, %v2086
        %v2103 = vadd.f32 %v2064, %v2087
        %v2104 = vadd.f32 %v2065, %v2088
        %v2105 = vadd.f32 %v2066, %v2089
        %v2106 = vadd.f32 %v2067, %v2090
        %v2107 = vadd.f32 %v2068, %v2091
        %v2108 = vadd.f32 %v2069, %v2092
        %v2109 = vadd.f32 %v2070, %v2093
        %v2110 = vadd.f32 %v2071, %v2094
        %v2111 = vadd.f32 %v2072, %v2095
        %v2112 = vadd.f32 %v2073, %v2096
        %v2113 = vadd.f32 %v2074, %v2097
        %v2114 = vadd.f32 %v2075, %v2098
        %v2115 = vadd.f32 %v2076, %v2099
        %v2116 = vadd.f32 %v2077, %v2100
        %v2117 = vadd.f32 %v2078, %v2101
        %v2118 = vadd.f32 %v2079, %v2102
        %v2119 = vld [vmem:[#allocation2 + $0xae] sm:$0xff]
        %v2120 = vld [vmem:[#allocation2 + $0xb6] sm:$0xff]
        %v2121 = vld [vmem:[#allocation2 + $0xbe] sm:$0xff]
        %v2122 = vld [vmem:[#allocation3 + $0x1e] sm:$0x1]
        %v2123 = vlaneseq
        %v2124 = vshrl.u32 %v2123, 7
        %v2125 = vsub.s32 0, %v2124
        %v2126 = vrot.slane %v2122, %v2125
        %v2127 = vmul.f32 %v1156, %v2126
        %v2128 = vmul.f32 %v1157, %v2126
        %v2129 = vmul.f32 %v1158, %v2126
        %v2130 = vmul.f32 %v1159, %v2126
        %v2131 = vmul.f32 %v1160, %v2126
        %v2132 = vmul.f32 %v1161, %v2126
        %v2133 = vmul.f32 %v1162, %v2126
        %v2134 = vmul.f32 %v1163, %v2126
        %v2135 = vmul.f32 %v1164, %v2126
        %v2136 = vmul.f32 %v1491, %v2126
        %v2137 = vmul.f32 %v1492, %v2126
        %v2138 = vmul.f32 %v1805, %v2126
        %v2139 = vmul.f32 %v1806, %v2126
        %v2140 = vmul.f32 %v2119, %v2126
        %v2141 = vmul.f32 %v2120, %v2126
        %v2142 = vmul.f32 %v2121, %v2126
        %v2143 = vadd.f32 %v2103, %v2127
        %v2144 = vadd.f32 %v2104, %v2128
        %v2145 = vadd.f32 %v2105, %v2129
        %v2146 = vadd.f32 %v2106, %v2130
        %v2147 = vadd.f32 %v2107, %v2131
        %v2148 = vadd.f32 %v2108, %v2132
        %v2149 = vadd.f32 %v2109, %v2133
        %v2150 = vadd.f32 %v2110, %v2134
        %v2151 = vadd.f32 %v2111, %v2135
        %v2152 = vadd.f32 %v2112, %v2136
        %v2153 = vadd.f32 %v2113, %v2137
        %v2154 = vadd.f32 %v2114, %v2138
        %v2155 = vadd.f32 %v2115, %v2139
        %v2156 = vadd.f32 %v2116, %v2140
        %v2157 = vadd.f32 %v2117, %v2141
        %v2158 = vadd.f32 %v2118, %v2142
        %v2159 = vld [vmem:[#allocation2 + $0xaf] sm:$0xff]
        %v2160 = vld [vmem:[#allocation2 + $0xb7] sm:$0xff]
        %v2161 = vld [vmem:[#allocation2 + $0xbf] sm:$0xff]
        %v2162 = vld [vmem:[#allocation3 + $0x1f] sm:$0x1]
        %v2163 = vlaneseq
        %v2164 = vshrl.u32 %v2163, 7
        %v2165 = vsub.s32 0, %v2164
        %v2166 = vrot.slane %v2162, %v2165
        %v2167 = vmul.f32 %v1209, %v2166
        %v2168 = vmul.f32 %v1210, %v2166
        %v2169 = vmul.f32 %v1211, %v2166
        %v2170 = vmul.f32 %v1212, %v2166
        %v2171 = vmul.f32 %v1213, %v2166
        %v2172 = vmul.f32 %v1214, %v2166
        %v2173 = vmul.f32 %v1215, %v2166
        %v2174 = vmul.f32 %v1216, %v2166
        %v2175 = vmul.f32 %v1217, %v2166
        %v2176 = vmul.f32 %v1530, %v2166
        %v2177 = vmul.f32 %v1531, %v2166
        %v2178 = vmul.f32 %v1844, %v2166
        %v2179 = vmul.f32 %v1845, %v2166
        %v2180 = vmul.f32 %v2159, %v2166
        %v2181 = vmul.f32 %v2160, %v2166
        %v2182 = vmul.f32 %v2161, %v2166
        %v2183 = vadd.f32 %v2143, %v2167
        %v2184 = vadd.f32 %v2144, %v2168
        %v2185 = vadd.f32 %v2145, %v2169
        %v2186 = vadd.f32 %v2146, %v2170
        %v2187 = vadd.f32 %v2147, %v2171
        %v2188 = vadd.f32 %v2148, %v2172
        %v2189 = vadd.f32 %v2149, %v2173
        %v2190 = vadd.f32 %v2150, %v2174
        %v2191 = vadd.f32 %v2151, %v2175
        %v2192 = vadd.f32 %v2152, %v2176
        %v2193 = vadd.f32 %v2153, %v2177
        %v2194 = vadd.f32 %v2154, %v2178
        %v2195 = vadd.f32 %v2155, %v2179
        %v2196 = vadd.f32 %v2156, %v2180
        %v2197 = vadd.f32 %v2157, %v2181
        %v2198 = vadd.f32 %v2158, %v2182
        %v2199 = vld [vmem:[#allocation2 + $0xb8] sm:$0xff]
        %v2200 = vld [vmem:[#allocation2 + $0xc0] sm:$0xff]
        %v2201 = vld [vmem:[#allocation3 + $0x20] sm:$0x1]
        %v2202 = vlaneseq
        %v2203 = vshrl.u32 %v2202, 7
        %v2204 = vsub.s32 0, %v2203
        %v2205 = vrot.slane %v2201, %v2204
        %v2206 = vmul.f32 %v840, %v2205
        %v2207 = vmul.f32 %v841, %v2205
        %v2208 = vmul.f32 %v842, %v2205
        %v2209 = vmul.f32 %v843, %v2205
        %v2210 = vmul.f32 %v844, %v2205
        %v2211 = vmul.f32 %v845, %v2205
        %v2212 = vmul.f32 %v846, %v2205
        %v2213 = vmul.f32 %v1255, %v2205
        %v2214 = vmul.f32 %v1256, %v2205
        %v2215 = vmul.f32 %v1569, %v2205
        %v2216 = vmul.f32 %v1570, %v2205
        %v2217 = vmul.f32 %v1883, %v2205
        %v2218 = vmul.f32 %v1884, %v2205
        %v2219 = vmul.f32 %v1885, %v2205
        %v2220 = vmul.f32 %v2199, %v2205
        %v2221 = vmul.f32 %v2200, %v2205
        %v2222 = vadd.f32 %v2183, %v2206
        %v2223 = vadd.f32 %v2184, %v2207
        %v2224 = vadd.f32 %v2185, %v2208
        %v2225 = vadd.f32 %v2186, %v2209
        %v2226 = vadd.f32 %v2187, %v2210
        %v2227 = vadd.f32 %v2188, %v2211
        %v2228 = vadd.f32 %v2189, %v2212
        %v2229 = vadd.f32 %v2190, %v2213
        %v2230 = vadd.f32 %v2191, %v2214
        %v2231 = vadd.f32 %v2192, %v2215
        %v2232 = vadd.f32 %v2193, %v2216
        %v2233 = vadd.f32 %v2194, %v2217
        %v2234 = vadd.f32 %v2195, %v2218
        %v2235 = vadd.f32 %v2196, %v2219
        %v2236 = vadd.f32 %v2197, %v2220
        %v2237 = vadd.f32 %v2198, %v2221
        %v2238 = vld [vmem:[#allocation2 + $0xb9] sm:$0xff]
        %v2239 = vld [vmem:[#allocation2 + $0xc1] sm:$0xff]
        %v2240 = vld [vmem:[#allocation3 + $0x21] sm:$0x1]
        %v2241 = vlaneseq
        %v2242 = vshrl.u32 %v2241, 7
        %v2243 = vsub.s32 0, %v2242
        %v2244 = vrot.slane %v2240, %v2243
        %v2245 = vmul.f32 %v893, %v2244
        %v2246 = vmul.f32 %v894, %v2244
        %v2247 = vmul.f32 %v895, %v2244
        %v2248 = vmul.f32 %v896, %v2244
        %v2249 = vmul.f32 %v897, %v2244
        %v2250 = vmul.f32 %v898, %v2244
        %v2251 = vmul.f32 %v899, %v2244
        %v2252 = vmul.f32 %v1294, %v2244
        %v2253 = vmul.f32 %v1295, %v2244
        %v2254 = vmul.f32 %v1608, %v2244
        %v2255 = vmul.f32 %v1609, %v2244
        %v2256 = vmul.f32 %v1923, %v2244
        %v2257 = vmul.f32 %v1924, %v2244
        %v2258 = vmul.f32 %v1925, %v2244
        %v2259 = vmul.f32 %v2238, %v2244
        %v2260 = vmul.f32 %v2239, %v2244
        %v2261 = vadd.f32 %v2222, %v2245
        %v2262 = vadd.f32 %v2223, %v2246
        %v2263 = vadd.f32 %v2224, %v2247
        %v2264 = vadd.f32 %v2225, %v2248
        %v2265 = vadd.f32 %v2226, %v2249
        %v2266 = vadd.f32 %v2227, %v2250
        %v2267 = vadd.f32 %v2228, %v2251
        %v2268 = vadd.f32 %v2229, %v2252
        %v2269 = vadd.f32 %v2230, %v2253
        %v2270 = vadd.f32 %v2231, %v2254
        %v2271 = vadd.f32 %v2232, %v2255
        %v2272 = vadd.f32 %v2233, %v2256
        %v2273 = vadd.f32 %v2234, %v2257
        %v2274 = vadd.f32 %v2235, %v2258
        %v2275 = vadd.f32 %v2236, %v2259
        %v2276 = vadd.f32 %v2237, %v2260
        %v2277 = vld [vmem:[#allocation2 + $0xba] sm:$0xff]
        %v2278 = vld [vmem:[#allocation2 + $0xc2] sm:$0xff]
        %v2279 = vld [vmem:[#allocation3 + $0x22] sm:$0x1]
        %v2280 = vlaneseq
        %v2281 = vshrl.u32 %v2280, 7
        %v2282 = vsub.s32 0, %v2281
        %v2283 = vrot.slane %v2279, %v2282
        %v2284 = vmul.f32 %v946, %v2283
        %v2285 = vmul.f32 %v947, %v2283
        %v2286 = vmul.f32 %v948, %v2283
        %v2287 = vmul.f32 %v949, %v2283
        %v2288 = vmul.f32 %v950, %v2283
        %v2289 = vmul.f32 %v951, %v2283
        %v2290 = vmul.f32 %v952, %v2283
        %v2291 = vmul.f32 %v1333, %v2283
        %v2292 = vmul.f32 %v1334, %v2283
        %v2293 = vmul.f32 %v1647, %v2283
        %v2294 = vmul.f32 %v1648, %v2283
        %v2295 = vmul.f32 %v1649, %v2283
        %v2296 = vmul.f32 %v1963, %v2283
        %v2297 = vmul.f32 %v1964, %v2283
        %v2298 = vmul.f32 %v2277, %v2283
        %v2299 = vmul.f32 %v2278, %v2283
        %v2300 = vadd.f32 %v2261, %v2284
        %v2301 = vadd.f32 %v2262, %v2285
        %v2302 = vadd.f32 %v2263, %v2286
        %v2303 = vadd.f32 %v2264, %v2287
        %v2304 = vadd.f32 %v2265, %v2288
        %v2305 = vadd.f32 %v2266, %v2289
        %v2306 = vadd.f32 %v2267, %v2290
        %v2307 = vadd.f32 %v2268, %v2291
        %v2308 = vadd.f32 %v2269, %v2292
        %v2309 = vadd.f32 %v2270, %v2293
        %v2310 = vadd.f32 %v2271, %v2294
        %v2311 = vadd.f32 %v2272, %v2295
        %v2312 = vadd.f32 %v2273, %v2296
        %v2313 = vadd.f32 %v2274, %v2297
        %v2314 = vadd.f32 %v2275, %v2298
        %v2315 = vadd.f32 %v2276, %v2299
        %v2316 = vld [vmem:[#allocation2 + $0xbb] sm:$0xff]
        %v2317 = vld [vmem:[#allocation2 + $0xc3] sm:$0xff]
        %v2318 = vld [vmem:[#allocation3 + $0x23] sm:$0x1]
        %v2319 = vlaneseq
        %v2320 = vshrl.u32 %v2319, 7
        %v2321 = vsub.s32 0, %v2320
        %v2322 = vrot.slane %v2318, %v2321
        %v2323 = vmul.f32 %v999, %v2322
        %v2324 = vmul.f32 %v1000, %v2322
        %v2325 = vmul.f32 %v1001, %v2322
        %v2326 = vmul.f32 %v1002, %v2322
        %v2327 = vmul.f32 %v1003, %v2322
        %v2328 = vmul.f32 %v1004, %v2322
        %v2329 = vmul.f32 %v1005, %v2322
        %v2330 = vmul.f32 %v1372, %v2322
        %v2331 = vmul.f32 %v1373, %v2322
        %v2332 = vmul.f32 %v1687, %v2322
        %v2333 = vmul.f32 %v1688, %v2322
        %v2334 = vmul.f32 %v1689, %v2322
        %v2335 = vmul.f32 %v2002, %v2322
        %v2336 = vmul.f32 %v2003, %v2322
        %v2337 = vmul.f32 %v2316, %v2322
        %v2338 = vmul.f32 %v2317, %v2322
        %v2339 = vadd.f32 %v2300, %v2323
        %v2340 = vadd.f32 %v2301, %v2324
        %v2341 = vadd.f32 %v2302, %v2325
        %v2342 = vadd.f32 %v2303, %v2326
        %v2343 = vadd.f32 %v2304, %v2327
        %v2344 = vadd.f32 %v2305, %v2328
        %v2345 = vadd.f32 %v2306, %v2329
        %v2346 = vadd.f32 %v2307, %v2330
        %v2347 = vadd.f32 %v2308, %v2331
        %v2348 = vadd.f32 %v2309, %v2332
        %v2349 = vadd.f32 %v2310, %v2333
        %v2350 = vadd.f32 %v2311, %v2334
        %v2351 = vadd.f32 %v2312, %v2335
        %v2352 = vadd.f32 %v2313, %v2336
        %v2353 = vadd.f32 %v2314, %v2337
        %v2354 = vadd.f32 %v2315, %v2338
        %v2355 = vld [vmem:[#allocation12] sm:$0xff]
        %v2356 = vld [vmem:[#allocation12 + $0x8] sm:$0xff]
        %v2357 = vld [vmem:[#allocation12 + $0x10] sm:$0xff]
        %v2358 = vld [vmem:[#allocation12 + $0x18] sm:$0xff]
        %v2359 = vld [vmem:[#allocation12 + $0x20] sm:$0xff]
        %v2360 = vld [vmem:[#allocation12 + $0x28] sm:$0xff]
        %v2361 = vld [vmem:[#allocation12 + $0x30] sm:$0xff]
        %v2362 = vld [vmem:[#allocation12 + $0x38] sm:$0xff]
        %v2363 = vld [vmem:[#allocation12 + $0x40] sm:$0xff]
        %v2364 = vld [vmem:[#allocation12 + $0x48] sm:$0xff]
        %v2365 = vld [vmem:[#allocation12 + $0x50] sm:$0xff]
        %v2366 = vld [vmem:[#allocation12 + $0x58] sm:$0xff]
        %v2367 = vld [vmem:[#allocation12 + $0x60] sm:$0xff]
        %v2368 = vld [vmem:[#allocation12 + $0x68] sm:$0xff]
        %v2369 = vld [vmem:[#allocation12 + $0x70] sm:$0xff]
        %v2370 = vld [vmem:[#allocation12 + $0x78] sm:$0xff]
        %v2371 = vld [vmem:[%s7] sm:$0x1]
        %v2373 = vlaneseq
        %v2374 = vshrl.u32 %v2373, 7
        %v2375 = vsub.s32 0, %v2374
        %v2376 = vrot.slane %v2371, %v2375
        %2378 = vmatprep.subr.mxu0 0.0
        %2379 = vmatpush1.msra.mxu0 %v2370
        %2380 = vmatprep.subr.mxu0 0.0
        %2381 = vmatpush1.msra.mxu0 %v2369
        %2382 = vmatprep.subr.mxu0 0.0
        %2383 = vmatpush1.msra.mxu0 %v2368
        %2384 = vmatprep.subr.mxu0 0.0
        %2385 = vmatpush1.msra.mxu0 %v2367
        %2386 = vmatprep.subr.mxu0 0.0
        %2387 = vmatpush1.msra.mxu0 %v2366
        %2388 = vmatprep.subr.mxu0 0.0
        %2389 = vmatpush1.msra.mxu0 %v2365
        %2390 = vmatprep.subr.mxu0 0.0
        %2391 = vmatpush1.msra.mxu0 %v2364
        %2392 = vmatprep.subr.mxu0 0.0
        %2393 = vmatpush1.msra.mxu0 %v2363
        %2394 = vmatprep.subr.mxu0 0.0
        %2395 = vmatpush1.msra.mxu0 %v2362
        %2396 = vmatprep.subr.mxu0 0.0
        %2397 = vmatpush1.msra.mxu0 %v2361
        %2398 = vmatprep.subr.mxu0 0.0
        %2399 = vmatpush1.msra.mxu0 %v2360
        %2400 = vmatprep.subr.mxu0 0.0
        %2401 = vmatpush1.msra.mxu0 %v2359
        %2402 = vmatprep.subr.mxu0 0.0
        %2403 = vmatpush1.msra.mxu0 %v2358
        %2404 = vmatprep.subr.mxu0 0.0
        %2405 = vmatpush1.msra.mxu0 %v2357
        %2406 = vmatprep.subr.mxu0 0.0
        %2407 = vmatpush1.msra.mxu0 %v2356
        %2408 = vmatprep.subr.mxu0 0.0
        %2409 = vmatpush1.msra.mxu0 %v2355
        %2410 = vmatprep.subr.mxu0 0.0
        %2411 = vmatpush2.msra.mxu0 0.0
        %2412 = vmatprep.subr.mxu0 0.0
        %2413 = vmatpush2.msra.mxu0 0.0
        %2414 = vmatprep.subr.mxu0 0.0
        %2415 = vmatpush2.msra.mxu0 0.0
        %2416 = vmatprep.subr.mxu0 0.0
        %2417 = vmatpush2.msra.mxu0 0.0
        %2418 = vmatprep.subr.mxu0 0.0
        %2419 = vmatpush2.msra.mxu0 0.0
        %2420 = vmatprep.subr.mxu0 0.0
        %2421 = vmatpush2.msra.mxu0 0.0
        %2422 = vmatprep.subr.mxu0 0.0
        %2423 = vmatpush2.msra.mxu0 0.0
        %2424 = vmatprep.subr.mxu0 0.0
        %2425 = vmatpush2.msra.mxu0 0.0
        %2426 = vmatprep.subr.mxu0 0.0
        %2427 = vmatpush2.msra.mxu0 0.0
        %2428 = vmatprep.subr.mxu0 0.0
        %2429 = vmatpush2.msra.mxu0 0.0
        %2430 = vmatprep.subr.mxu0 0.0
        %2431 = vmatpush2.msra.mxu0 0.0
        %2432 = vmatprep.subr.mxu0 0.0
        %2433 = vmatpush2.msra.mxu0 0.0
        %2434 = vmatprep.subr.mxu0 0.0
        %2435 = vmatpush2.msra.mxu0 0.0
        %2436 = vmatprep.subr.mxu0 0.0
        %2437 = vmatpush2.msra.mxu0 0.0
        %2438 = vmatprep.subr.mxu0 0.0
        %2439 = vmatpush2.msra.mxu0 0.0
        %2440 = vmatprep.subr.mxu0 0.0
        %2441 = vmatpush2.msra.mxu0 0.0
        %2442 = vmatprep.mubr.f32.mxu0 0.0
        %2443 = vmatmul.mubr.f32.gmra.mxu0 %v2339
        %v2444 = vpop.f32.mrf.mxu0
        %v2445 = vadd.f32 %v2376, %v2444
        %v2446 = vpop.f32.mrf.mxu0
        %2447 = vmatprep.mubr.f32.mxu0 0.0
        %2448 = vmatmul.mubr.f32.gmra.mxu0 %v2340
        %v2449 = vpop.f32.mrf.mxu0
        %v2450 = vadd.f32 %v2376, %v2449
        %v2451 = vpop.f32.mrf.mxu0
        %2452 = vmatprep.mubr.f32.mxu0 0.0
        %2453 = vmatmul.mubr.f32.gmra.mxu0 %v2341
        %v2454 = vpop.f32.mrf.mxu0
        %v2455 = vadd.f32 %v2376, %v2454
        %v2456 = vpop.f32.mrf.mxu0
        %2457 = vmatprep.mubr.f32.mxu0 0.0
        %2458 = vmatmul.mubr.f32.gmra.mxu0 %v2342
        %v2459 = vpop.f32.mrf.mxu0
        %v2460 = vadd.f32 %v2376, %v2459
        %v2461 = vpop.f32.mrf.mxu0
        %2462 = vmatprep.mubr.f32.mxu0 0.0
        %2463 = vmatmul.mubr.f32.gmra.mxu0 %v2343
        %v2464 = vpop.f32.mrf.mxu0
        %v2465 = vadd.f32 %v2376, %v2464
        %v2466 = vpop.f32.mrf.mxu0
        %2467 = vmatprep.mubr.f32.mxu0 0.0
        %2468 = vmatmul.mubr.f32.gmra.mxu0 %v2344
        %v2469 = vpop.f32.mrf.mxu0
        %v2470 = vadd.f32 %v2376, %v2469
        %v2471 = vpop.f32.mrf.mxu0
        %2472 = vmatprep.mubr.f32.mxu0 0.0
        %2473 = vmatmul.mubr.f32.gmra.mxu0 %v2345
        %v2474 = vpop.f32.mrf.mxu0
        %v2475 = vadd.f32 %v2376, %v2474
        %v2476 = vpop.f32.mrf.mxu0
        %2477 = vmatprep.mubr.f32.mxu0 0.0
        %2478 = vmatmul.mubr.f32.gmra.mxu0 %v2346
        %v2479 = vpop.f32.mrf.mxu0
        %v2480 = vadd.f32 %v2376, %v2479
        %v2481 = vpop.f32.mrf.mxu0
        %2482 = vmatprep.mubr.f32.mxu0 0.0
        %2483 = vmatmul.mubr.f32.gmra.mxu0 %v2347
        %v2484 = vpop.f32.mrf.mxu0
        %v2485 = vadd.f32 %v2376, %v2484
        %v2486 = vpop.f32.mrf.mxu0
        %2487 = vmatprep.mubr.f32.mxu0 0.0
        %2488 = vmatmul.mubr.f32.gmra.mxu0 %v2348
        %v2489 = vpop.f32.mrf.mxu0
        %v2490 = vadd.f32 %v2376, %v2489
        %v2491 = vpop.f32.mrf.mxu0
        %2492 = vmatprep.mubr.f32.mxu0 0.0
        %2493 = vmatmul.mubr.f32.gmra.mxu0 %v2349
        %v2494 = vpop.f32.mrf.mxu0
        %v2495 = vadd.f32 %v2376, %v2494
        %v2496 = vpop.f32.mrf.mxu0
        %2497 = vmatprep.mubr.f32.mxu0 0.0
        %2498 = vmatmul.mubr.f32.gmra.mxu0 %v2350
        %v2499 = vpop.f32.mrf.mxu0
        %v2500 = vadd.f32 %v2376, %v2499
        %v2501 = vpop.f32.mrf.mxu0
        %2502 = vmatprep.mubr.f32.mxu0 0.0
        %2503 = vmatmul.mubr.f32.gmra.mxu0 %v2351
        %v2504 = vpop.f32.mrf.mxu0
        %v2505 = vadd.f32 %v2376, %v2504
        %v2506 = vpop.f32.mrf.mxu0
        %2507 = vmatprep.mubr.f32.mxu0 0.0
        %2508 = vmatmul.mubr.f32.gmra.mxu0 %v2352
        %v2509 = vpop.f32.mrf.mxu0
        %v2510 = vadd.f32 %v2376, %v2509
        %v2511 = vpop.f32.mrf.mxu0
        %2512 = vmatprep.mubr.f32.mxu0 0.0
        %2513 = vmatmul.mubr.f32.gmra.mxu0 %v2353
        %v2514 = vpop.f32.mrf.mxu0
        %v2515 = vadd.f32 %v2376, %v2514
        %v2516 = vpop.f32.mrf.mxu0
        %2517 = vmatprep.mubr.f32.mxu0 0.0
        %2518 = vmatmul.mubr.f32.gmra.mxu0 %v2354
        %v2519 = vpop.f32.mrf.mxu0
        %v2520 = vadd.f32 %v2376, %v2519
        %v2521 = vpop.f32.mrf.mxu0
        %2522 = vdwg.mxu0
        %v2523 = vmax.f32 %v2445, 0.0
        %v2524 = vmax.f32 %v2450, 0.0
        %v2525 = vmax.f32 %v2455, 0.0
        %v2526 = vmax.f32 %v2460, 0.0
        %v2527 = vmax.f32 %v2465, 0.0
        %v2528 = vmax.f32 %v2470, 0.0
        %v2529 = vmax.f32 %v2475, 0.0
        %v2530 = vmax.f32 %v2480, 0.0
        %v2531 = vmax.f32 %v2485, 0.0
        %v2532 = vmax.f32 %v2490, 0.0
        %v2533 = vmax.f32 %v2495, 0.0
        %v2534 = vmax.f32 %v2500, 0.0
        %v2535 = vmax.f32 %v2505, 0.0
        %v2536 = vmax.f32 %v2510, 0.0
        %v2537 = vmax.f32 %v2515, 0.0
        %v2538 = vmax.f32 %v2520, 0.0
        %2539 = vst [vmem:[%s406] sm:$0xff] %v2523
        %2540 = vst [vmem:[%s406 + $0x8] sm:$0xff] %v2524
        %2541 = vst [vmem:[%s406 + $0x10] sm:$0xff] %v2525
        %2542 = vst [vmem:[%s406 + $0x18] sm:$0xff] %v2526
        %2543 = vst [vmem:[%s406 + $0x20] sm:$0xff] %v2527
        %2544 = vst [vmem:[%s406 + $0x28] sm:$0xff] %v2528
        %2545 = vst [vmem:[%s406 + $0x30] sm:$0xff] %v2529
        %2546 = vst [vmem:[%s406 + $0x38] sm:$0xff] %v2530
        %2547 = vst [vmem:[%s406 + $0x40] sm:$0xff] %v2531
        %2548 = vst [vmem:[%s406 + $0x48] sm:$0xff] %v2532
        %2549 = vst [vmem:[%s406 + $0x50] sm:$0xff] %v2533
        %2550 = vst [vmem:[%s406 + $0x58] sm:$0xff] %v2534
        %2551 = vst [vmem:[%s406 + $0x60] sm:$0xff] %v2535
        %2552 = vst [vmem:[%s406 + $0x68] sm:$0xff] %v2536
        %2553 = vst [vmem:[%s406 + $0x70] sm:$0xff] %v2537
        %2554 = vst [vmem:[%s406 + $0x78] sm:$0xff] %v2538
        %s2555 = sand.u32 %s215, 1
        %s2556 = scalar_lea.sflag [#allocation6], %s2555
        %s2557 = sand.u32 %s215, 1
        %s2558 = smul.addr %s2557, 128
        %s2559 = scalar_lea.vmem [#allocation13], %s2558
        // Predicated region
        $region73: #{tpu_custom_call.1} parent=51 // pred_check
          %p2560 = pneg %p225
        $region74: #{tpu_custom_call.1} parent=51 // pred_check_branch
          %2562 = sbr.rel (%p2560) target = $region76
        $region75: #{tpu_custom_call.1} parent=51 // pred_region
          %s2564 = ssub.s32 2048, 2048
          %2565 = vsyncadd %s2556, %s2564
          %s2566 = smul.addr %s29, 16
          %s2567 = smul.addr %s2566, 128
          %s2568 = scalar_lea.hbm %s8, %s2567
          %s2569 = sshll.u32 %s2559, 4
          %s2570 = int_to_ptr.vmem [resolvable:$true] %s2569
          %2575 = dma.vmem_to_hbm [thread:$0]  %s2570, 2048, %s2568, %s2556, 128, 128, 8
        $region76: #{tpu_custom_call.1} parent=51 // pred_fallthru
          _
      $region52: #{tpu_custom_call.1} parent=5 // pred_fallthru
        _
      %p2576 = scmp.le.s32.totalorder 2, %s24
      // Predicated region
      $region77: #{tpu_custom_call.1} parent=5 // pred_check
        %p2577 = pneg %p2576
      $region78: #{tpu_custom_call.1} parent=5 // pred_check_branch
        %2579 = sbr.rel (%p2577) target = $region80
      $region79: #{tpu_custom_call.1} parent=5 // pred_region
        %s2580 = ssub.s32 %s24, 2
        // Predicated region
        $region81: #{tpu_custom_call.1} parent=79 // pred_check
          %p2581 = pneg %p231
        $region82: #{tpu_custom_call.1} parent=79 // pred_check_branch
          %2583 = sbr.rel (%p2581) target = $region84
        $region83: #{tpu_custom_call.1} parent=79 // pred_region
          %s2584 = sand.u32 %s216, 1
          %s2585 = scalar_lea.sflag [#allocation6], %s2584
          %s2586 = sand.u32 %s216, 1
          %s2587 = smul.addr %s2586, 128
          %s2588 = scalar_lea.vmem [#allocation13], %s2587
          %2589 = dma.done %s2585, 2048
        $region84: #{tpu_custom_call.1} parent=79 // pred_fallthru
          _
      $region80: #{tpu_custom_call.1} parent=5 // pred_fallthru
        _
    $region6: #{tpu_custom_call.1} parent=1 // loop_footer
      %s28 = sadd.s32 1, %s24
    $region7: #{tpu_custom_call.1} parent=1 // loop_footer_branch
      %23 = sbr.rel target = $region3
    $region8: #{tpu_custom_call.1} parent=1 // loop_exit
      _
    %2590 = vsyncpa [#allocation5], 1
    %s2591 = scalar_lea.sflag [#allocation5], 1
    %2592 = vsyncpa %s2591, 1
    %2593 = vsyncpa [#allocation8], 1
    %s2594 = scalar_lea.sflag [#allocation8], 1
    %2595 = vsyncpa %s2594, 1
    %2596 = vsyncpa [#allocation11], 1
    %2597 = vsyncpa [#allocation6], 1
    %s2598 = scalar_lea.sflag [#allocation6], 1
    %2599 = vsyncpa %s2598, 1

</llo_original>
